<compile_context>
chip_gen: v7x
topology: tpu7x:2x2x1
jax: 0.10.0
libtpu: 0.0.40
codegen_flags: <defaults>
</compile_context>

<pallas_src>
import jax
import jax.numpy as jnp
from jax.experimental import pallas as pl
from jax.experimental.pallas import tpu as pltpu

EPS = 1e-8
LEAKY = 0.2


# ---------------------------- fused Pallas kernel ----------------------------

def _make_generator_block_kernel(K, H, W, Cin, F, has_prev):
    HW = H * W

    def _im2col(ximg, C):
        # ximg: (H+K-1, W+K-1, C) -> (H*W, K*K*C); column order = (ky, kx, c),
        # matching the pre-arranged weight row order.
        cols = []
        for ky in range(K):
            for kx in range(K):
                cols.append(ximg[ky:ky + H, kx:kx + W, :].reshape(HW, C))
        return jnp.concatenate(cols, axis=1)

    def kernel(istyle_ref, wsty_ref, bsty_ref, xpad_ref, w1_ref, wsq1_ref,
               w2_ref, wsq2_ref, wrgb_ref, nprm_ref, nmap_ref, *rest):
        if has_prev:
            prev_ref, h2_ref, rgb_ref, pad_scr = rest
        else:
            h2_ref, rgb_ref, pad_scr = rest

        # ---- all three style projections in one tiny matmul; bias already has +1
        mods = jnp.dot(istyle_ref[0], wsty_ref[...],
                       preferred_element_type=jnp.float32) + bsty_ref[...]  # (1, Cin+2F)
        mod1 = mods[:, :Cin]                      # (1, Cin)   conv1 modulation (s+1)
        mod2 = mods[:, Cin:Cin + F]               # (1, F)     conv2 modulation
        modr = mods[:, Cin + F:Cin + 2 * F]       # (1, F)     rgb   modulation

        nmap = nmap_ref[0]                        # (HW, 1) spatially-transposed noise
        nw1 = nprm_ref[0]                         # (1, F)  to_noise1 weight
        nb1 = nprm_ref[1]                         # (1, F)  to_noise1 bias
        nw2 = nprm_ref[2]
        nb2 = nprm_ref[3]

        # ---- conv1: 3x3 modulated conv with demod, fused noise add + LeakyReLU
        # demod scale d[o] = rsqrt(sum_c mod1[c]^2 * wsq1[c,o] + eps); wsq precomputed.
        d1 = jax.lax.rsqrt(
            jnp.dot(mod1 * mod1, wsq1_ref[...],
                    preferred_element_type=jnp.float32) + EPS)              # (1, F)
        x1 = xpad_ref[0] * mod1                   # modulate the input ONCE (not per tap)
        p1 = _im2col(x1, Cin)                     # (HW, K*K*Cin)
        h1 = jnp.dot(p1, w1_ref[...] * d1,        # demod folded into the weight lanes
                     preferred_element_type=jnp.float32)                    # (HW, F)
        h1 = h1 + nmap * nw1 + nb1                # fused to_noise1 Linear(1, F)
        h1 = jnp.where(h1 >= 0.0, h1, LEAKY * h1)

        # ---- conv2: 3x3 modulated conv with demod (h1 stays in VMEM, zero halo
        #      built in scratch), fused noise add + LeakyReLU
        d2 = jax.lax.rsqrt(
            jnp.dot(mod2 * mod2, wsq2_ref[...],
                    preferred_element_type=jnp.float32) + EPS)              # (1, F)
        pad_scr[...] = jnp.zeros_like(pad_scr)
        pad_scr[1:H + 1, 1:W + 1, :] = (h1 * mod2).reshape(H, W, F)
        p2 = _im2col(pad_scr[...], F)             # (HW, K*K*F)
        h2 = jnp.dot(p2, w2_ref[...] * d2,
                     preferred_element_type=jnp.float32)                    # (HW, F)
        h2 = h2 + nmap * nw2 + nb2
        h2 = jnp.where(h2 >= 0.0, h2, LEAKY * h2)
        h2_ref[0] = h2.astype(h2_ref.dtype)

        # ---- RGBBlock: 1x1 modulated conv (no demod) + prev_rgb
        rgb = jnp.dot(h2 * modr, wrgb_ref[...],
                      preferred_element_type=jnp.float32)                   # (HW, 3)
        if has_prev:
            rgb = rgb + prev_ref[0]
        rgb_ref[0] = rgb.astype(rgb_ref.dtype)

    return kernel


def generator_block_pallas(params, x_pad_nhwc, nmap, prev_flat, istyle, *, K, H, W):
    """Run the fused GeneratorBlock kernel. Returns (h2 (B,HW,F), rgb (B,HW,3))."""
    B, Hp, Wp, Cin = x_pad_nhwc.shape
    F = params["nparams"].shape[-1]
    HW = H * W
    L = istyle.shape[-1]
    CF = Cin + 2 * F
    has_prev = prev_flat is not None

    istyle3 = istyle.reshape(B, 1, L)

    in_arrays = [istyle3, params["w_style"], params["b_style_p1"], x_pad_nhwc,
                 params["conv1_w"], params["conv1_wsq"],
                 params["conv2_w"], params["conv2_wsq"],
                 params["convrgb_w"], params["nparams"], nmap]
    in_specs = [
        pl.BlockSpec((1, 1, L), lambda b: (b, 0, 0)),
        pl.BlockSpec((L, CF), lambda b: (0, 0)),
        pl.BlockSpec((1, CF), lambda b: (0, 0)),
        pl.BlockSpec((1, Hp, Wp, Cin), lambda b: (b, 0, 0, 0)),
        pl.BlockSpec((K * K * Cin, F), lambda b: (0, 0)),
        pl.BlockSpec((Cin, F), lambda b: (0, 0)),
        pl.BlockSpec((K * K * F, F), lambda b: (0, 0)),
        pl.BlockSpec((F, F), lambda b: (0, 0)),
        pl.BlockSpec((F, 3), lambda b: (0, 0)),
        pl.BlockSpec((4, 1, F), lambda b: (0, 0, 0)),
        pl.BlockSpec((1, HW, 1), lambda b: (b, 0, 0)),
    ]
    if has_prev:
        in_arrays.append(prev_flat)
        in_specs.append(pl.BlockSpec((1, HW, 3), lambda b: (b, 0, 0)))

    kernel = _make_generator_block_kernel(K, H, W, Cin, F, has_prev)
    h2, rgb = pl.pallas_call(
        kernel,
        out_shape=(jax.ShapeDtypeStruct((B, HW, F), jnp.float32),
                   jax.ShapeDtypeStruct((B, HW, 3), jnp.float32)),
        grid=(B,),
        in_specs=in_specs,
        out_specs=(pl.BlockSpec((1, HW, F), lambda b: (b, 0, 0)),
                   pl.BlockSpec((1, HW, 3), lambda b: (b, 0, 0))),
        scratch_shapes=[pltpu.VMEM((H + K - 1, W + K - 1, F), jnp.float32)],
        compiler_params=pltpu.CompilerParams(
            dimension_semantics=("parallel",),
            vmem_limit_bytes=64 * 1024 * 1024),
    )(*in_arrays)
    return h2, rgb


# ---------------------------- parameters ----------------------------

def init_params(key, latent_dim, in_ch, filters):
    ks = jax.random.split(key, 13)

    def linear_init(kw, kb, fin, fout):
        w_t = jax.random.normal(kw, (fin, fout), jnp.float32) / jnp.sqrt(float(fin))
        b = jax.random.normal(kb, (fout,), jnp.float32) * 0.05
        return w_t, b

    def conv_init(k, o, c, ksz):
        std = (2.0 / (c * ksz * ksz)) ** 0.5   # kaiming_normal, fan_in, leaky_relu a=0
        w = jax.random.normal(k, (o, c, ksz, ksz), jnp.float32) * std
        # (O, C, K, K) -> (K*K*C, O); row index = (ky*K + kx)*C + c (matches im2col).
        w_kkco = jnp.transpose(w, (2, 3, 1, 0)).reshape(ksz * ksz * c, o)
        # Precomputed demod square-sum: wsq[c, o] = sum_{ky,kx} w[o,c,ky,kx]^2.
        wsq = jnp.sum(w * w, axis=(2, 3)).T
        return w_kkco, wsq

    ws1_t, bs1 = linear_init(ks[0], ks[1], latent_dim, in_ch)
    wn1_t, bn1 = linear_init(ks[2], ks[3], 1, filters)
    conv1_w, conv1_wsq = conv_init(ks[4], filters, in_ch, 3)
    ws2_t, bs2 = linear_init(ks[5], ks[6], latent_dim, filters)
    wn2_t, bn2 = linear_init(ks[7], ks[8], 1, filters)
    conv2_w, conv2_wsq = conv_init(ks[9], filters, filters, 3)
    wsr_t, bsr = linear_init(ks[10], ks[11], latent_dim, filters)
    convrgb_w, _ = conv_init(ks[12], 3, filters, 1)          # (F, 3), demod=False

    # Collapse the three style Linears into one (latent, Cin + 2F) matmul and fold
    # the "(style + 1)" into the bias.
    w_style = jnp.concatenate([ws1_t, ws2_t, wsr_t], axis=1)
    b_style_p1 = (jnp.concatenate([bs1, bs2, bsr], axis=0) + 1.0).reshape(1, -1)

    # to_noise Linears (Linear(1, F)) packed as (4, 1, F): [w1, b1, w2, b2].
    nparams = jnp.stack([wn1_t.reshape(filters), bn1,
                         wn2_t.reshape(filters), bn2], axis=0).reshape(4, 1, filters)

    return dict(
        w_style=w_style, b_style_p1=b_style_p1,
        conv1_w=conv1_w, conv1_wsq=conv1_wsq,
        conv2_w=conv2_w, conv2_wsq=conv2_wsq,
        convrgb_w=convrgb_w, nparams=nparams,
    )


# ---------------------------- forward (glue + fused kernel) ----------------------------

def generator_block_forward(params, x, prev_rgb, istyle, inoise,
                            upsample=True, upsample_rgb=True):
    B, cin, H, W = x.shape
    if upsample:
        H, W = 2 * H, 2 * W
        # glue: nn.Upsample(scale_factor=2, mode='bilinear', align_corners=False)
        x = jax.image.resize(x, (B, cin, H, W), method="bilinear")
    F = params["nparams"].shape[-1]
    HW = H * W
    K = 3

    # inoise[:, :H, :W, :]; PyTorch's .permute((0,3,2,1)) transposes the spatial map,
    # replicated by swapping (H, W) before flattening: nmap[b, h*W+w] = inoise[b, w, h, 0].
    noise_c = inoise[:, :H, :W, 0]
    nmap = jnp.transpose(noise_c, (0, 2, 1)).reshape(B, HW, 1)

    # NHWC + 1-px zero halo for the first 3x3 conv (wrapper glue; conv2's halo is in-kernel).
    x_pad = jnp.pad(jnp.transpose(x, (0, 2, 3, 1)), ((0, 0), (1, 1), (1, 1), (0, 0)))

    prev_flat = None
    if prev_rgb is not None:
        prev_flat = jnp.transpose(prev_rgb, (0, 2, 3, 1)).reshape(B, HW, 3)

    h2, rgb = generator_block_pallas(params, x_pad, nmap, prev_flat, istyle,
                                     K=K, H=H, W=W)

    # back to NCHW (PyTorch convention)
    x_out = jnp.transpose(h2.reshape(B, H, W, F), (0, 3, 1, 2))
    rgb_out = jnp.transpose(rgb.reshape(B, H, W, 3), (0, 3, 1, 2))
    if upsample_rgb:
        # glue: bilinear 2x upsample of the rgb output
        rgb_out = jax.image.resize(rgb_out, (B, 3, 2 * H, 2 * W), method="bilinear")
    return x_out, rgb_out


# ---------------------------- main ----------------------------

if __name__ == "__main__":
    key = jax.random.PRNGKey(0)
    latent_dim, in_ch, filters = 32, 4, 8
    B, H0, W0 = 2, 8, 8

    k1, k2, k3, k4, kp = jax.random.split(key, 5)
    x = jax.random.normal(k1, (B, in_ch, H0, W0), jnp.float32)
    istyle = jax.random.normal(k2, (B, latent_dim), jnp.float32)
    inoise = jax.random.uniform(k3, (B, 4 * H0, 4 * W0, 1), jnp.float32)
    prev_rgb = jax.random.normal(k4, (B, 3, 2 * H0, 2 * W0), jnp.float32)

    params = init_params(kp, latent_dim, in_ch, filters)

    x_out, rgb_out = generator_block_forward(params, x, prev_rgb, istyle, inoise,
                                             upsample=True, upsample_rgb=True)
    jax.block_until_ready((x_out, rgb_out))

    assert x_out.shape == (B, filters, 2 * H0, 2 * W0)
    assert rgb_out.shape == (B, 3, 4 * H0, 4 * W0)
    assert bool(jnp.all(jnp.isfinite(x_out))) and bool(jnp.all(jnp.isfinite(rgb_out)))
    print("KERNEL_OK")
</pallas_src>

<mosaic_0001>
module attributes {stable_mosaic.version = 11 : i64} {
  func.func @kernel(%arg0: i32, %arg1: memref<1x1x32xf32, #tpu.memory_space<vmem>>, %arg2: memref<32x20xf32, #tpu.memory_space<vmem>>, %arg3: memref<1x20xf32, #tpu.memory_space<vmem>>, %arg4: memref<1x18x18x4xf32, #tpu.memory_space<vmem>>, %arg5: memref<36x8xf32, #tpu.memory_space<vmem>>, %arg6: memref<4x8xf32, #tpu.memory_space<vmem>>, %arg7: memref<72x8xf32, #tpu.memory_space<vmem>>, %arg8: memref<8x8xf32, #tpu.memory_space<vmem>>, %arg9: memref<8x3xf32, #tpu.memory_space<vmem>>, %arg10: memref<4x1x8xf32, #tpu.memory_space<vmem>>, %arg11: memref<1x256x1xf32, #tpu.memory_space<vmem>>, %arg12: memref<1x256x3xf32, #tpu.memory_space<vmem>>, %arg13: memref<1x256x8xf32, #tpu.memory_space<vmem>>, %arg14: memref<1x256x3xf32, #tpu.memory_space<vmem>>, %arg15: memref<18x18x8xf32, #tpu.memory_space<vmem>>) attributes {dimension_semantics = [#tpu.dimension_semantics<parallel>], iteration_bounds = array<i64: 2>, scalar_prefetch = 0 : i64, scratch_operands = 1 : i64, tpu.core_type = #tpu.core_type<tc>, window_params = [{transform_indices = @transform_0, window_bounds = array<i64: 1, 1, 32>}, {pipeline_mode = #tpu.pipeline_mode<synchronous>, transform_indices = @transform_1, window_bounds = array<i64: 32, 20>}, {pipeline_mode = #tpu.pipeline_mode<synchronous>, transform_indices = @transform_2, window_bounds = array<i64: 1, 20>}, {transform_indices = @transform_3, window_bounds = array<i64: 1, 18, 18, 4>}, {pipeline_mode = #tpu.pipeline_mode<synchronous>, transform_indices = @transform_4, window_bounds = array<i64: 36, 8>}, {pipeline_mode = #tpu.pipeline_mode<synchronous>, transform_indices = @transform_5, window_bounds = array<i64: 4, 8>}, {pipeline_mode = #tpu.pipeline_mode<synchronous>, transform_indices = @transform_6, window_bounds = array<i64: 72, 8>}, {pipeline_mode = #tpu.pipeline_mode<synchronous>, transform_indices = @transform_7, window_bounds = array<i64: 8, 8>}, {pipeline_mode = #tpu.pipeline_mode<synchronous>, transform_indices = @transform_8, window_bounds = array<i64: 8, 3>}, {pipeline_mode = #tpu.pipeline_mode<synchronous>, transform_indices = @transform_9, window_bounds = array<i64: 4, 1, 8>}, {transform_indices = @transform_10, window_bounds = array<i64: 1, 256, 1>}, {transform_indices = @transform_11, window_bounds = array<i64: 1, 256, 3>}, {transform_indices = @transform_12, window_bounds = array<i64: 1, 256, 8>}, {transform_indices = @transform_13, window_bounds = array<i64: 1, 256, 3>}]} {
    %c0 = arith.constant 0 : index
    %c0_0 = arith.constant 0 : index
    %c0_1 = arith.constant 0 : index
    %0 = vector.load %arg1[%c0, %c0_0, %c0_1] : memref<1x1x32xf32, #tpu.memory_space<vmem>>, vector<1x1x32xf32>
    %1 = vector.shape_cast %0 : vector<1x1x32xf32> to vector<1x32xf32>
    %c0_2 = arith.constant 0 : index
    %c0_3 = arith.constant 0 : index
    %2 = vector.load %arg2[%c0_2, %c0_3] : memref<32x20xf32, #tpu.memory_space<vmem>>, vector<32x20xf32>
    %cst = arith.constant dense<0.000000e+00> : vector<1x20xf32>
    %3 = tpu.matmul %1, %2, %cst {dimension_numbers = #tpu.dot_dimension_numbers<[1], [0], [0], [1], [0, 0, 1, 1], [], []>} : vector<1x32xf32>, vector<32x20xf32>, vector<1x20xf32> -> vector<1x20xf32>
    %c0_4 = arith.constant 0 : index
    %c0_5 = arith.constant 0 : index
    %4 = vector.load %arg3[%c0_4, %c0_5] : memref<1x20xf32, #tpu.memory_space<vmem>>, vector<1x20xf32>
    %5 = arith.addf %3, %4 : vector<1x20xf32>
    %6 = vector.extract_strided_slice %5 {offsets = [0, 0], sizes = [1, 4], strides = [1, 1]} : vector<1x20xf32> to vector<1x4xf32>
    %7 = vector.extract_strided_slice %5 {offsets = [0, 4], sizes = [1, 8], strides = [1, 1]} : vector<1x20xf32> to vector<1x8xf32>
    %8 = vector.extract_strided_slice %5 {offsets = [0, 12], sizes = [1, 8], strides = [1, 1]} : vector<1x20xf32> to vector<1x8xf32>
    %c0_6 = arith.constant 0 : index
    %c0_7 = arith.constant 0 : index
    %c0_8 = arith.constant 0 : index
    %9 = vector.load %arg11[%c0_6, %c0_7, %c0_8] : memref<1x256x1xf32, #tpu.memory_space<vmem>>, vector<1x256x1xf32>
    %10 = vector.shape_cast %9 : vector<1x256x1xf32> to vector<256x1xf32>
    %c0_9 = arith.constant 0 : index
    %c0_10 = arith.constant 0 : index
    %c0_11 = arith.constant 0 : index
    %11 = vector.load %arg10[%c0_9, %c0_10, %c0_11] : memref<4x1x8xf32, #tpu.memory_space<vmem>>, vector<1x1x8xf32>
    %12 = vector.shape_cast %11 : vector<1x1x8xf32> to vector<1x8xf32>
    %c1 = arith.constant 1 : index
    %c0_12 = arith.constant 0 : index
    %c0_13 = arith.constant 0 : index
    %13 = vector.load %arg10[%c1, %c0_12, %c0_13] : memref<4x1x8xf32, #tpu.memory_space<vmem>>, vector<1x1x8xf32>
    %14 = vector.shape_cast %13 : vector<1x1x8xf32> to vector<1x8xf32>
    %c2 = arith.constant 2 : index
    %c0_14 = arith.constant 0 : index
    %c0_15 = arith.constant 0 : index
    %15 = vector.load %arg10[%c2, %c0_14, %c0_15] : memref<4x1x8xf32, #tpu.memory_space<vmem>>, vector<1x1x8xf32>
    %16 = vector.shape_cast %15 : vector<1x1x8xf32> to vector<1x8xf32>
    %c3 = arith.constant 3 : index
    %c0_16 = arith.constant 0 : index
    %c0_17 = arith.constant 0 : index
    %17 = vector.load %arg10[%c3, %c0_16, %c0_17] : memref<4x1x8xf32, #tpu.memory_space<vmem>>, vector<1x1x8xf32>
    %18 = vector.shape_cast %17 : vector<1x1x8xf32> to vector<1x8xf32>
    %19 = arith.mulf %6, %6 : vector<1x4xf32>
    %c0_18 = arith.constant 0 : index
    %c0_19 = arith.constant 0 : index
    %20 = vector.load %arg6[%c0_18, %c0_19] : memref<4x8xf32, #tpu.memory_space<vmem>>, vector<4x8xf32>
    %cst_20 = arith.constant dense<0.000000e+00> : vector<1x8xf32>
    %21 = tpu.matmul %19, %20, %cst_20 {dimension_numbers = #tpu.dot_dimension_numbers<[1], [0], [0], [1], [0, 0, 1, 1], [], []>} : vector<1x4xf32>, vector<4x8xf32>, vector<1x8xf32> -> vector<1x8xf32>
    %cst_21 = arith.constant 9.99999993E-9 : f32
    %22 = vector.broadcast %cst_21 : f32 to vector<1x8xf32>
    %23 = arith.addf %21, %22 : vector<1x8xf32>
    %24 = math.rsqrt %23 : vector<1x8xf32>
    %c0_22 = arith.constant 0 : index
    %c0_23 = arith.constant 0 : index
    %c0_24 = arith.constant 0 : index
    %c0_25 = arith.constant 0 : index
    %25 = vector.load %arg4[%c0_22, %c0_23, %c0_24, %c0_25] : memref<1x18x18x4xf32, #tpu.memory_space<vmem>>, vector<1x18x18x4xf32>
    %26 = vector.shape_cast %25 : vector<1x18x18x4xf32> to vector<18x18x4xf32>
    %27 = vector.shape_cast %6 : vector<1x4xf32> to vector<1x1x4xf32>
    %28 = vector.broadcast %27 : vector<1x1x4xf32> to vector<18x18x4xf32>
    %29 = arith.mulf %26, %28 : vector<18x18x4xf32>
    %30 = vector.extract_strided_slice %29 {offsets = [0, 0, 0], sizes = [16, 16, 4], strides = [1, 1, 1]} : vector<18x18x4xf32> to vector<16x16x4xf32>
    %31 = vector.shape_cast %30 : vector<16x16x4xf32> to vector<256x4xf32>
    %32 = vector.extract_strided_slice %29 {offsets = [0, 1, 0], sizes = [16, 16, 4], strides = [1, 1, 1]} : vector<18x18x4xf32> to vector<16x16x4xf32>
    %33 = vector.shape_cast %32 : vector<16x16x4xf32> to vector<256x4xf32>
    %34 = vector.extract_strided_slice %29 {offsets = [0, 2, 0], sizes = [16, 16, 4], strides = [1, 1, 1]} : vector<18x18x4xf32> to vector<16x16x4xf32>
    %35 = vector.shape_cast %34 : vector<16x16x4xf32> to vector<256x4xf32>
    %36 = vector.extract_strided_slice %29 {offsets = [1, 0, 0], sizes = [16, 16, 4], strides = [1, 1, 1]} : vector<18x18x4xf32> to vector<16x16x4xf32>
    %37 = vector.shape_cast %36 : vector<16x16x4xf32> to vector<256x4xf32>
    %38 = vector.extract_strided_slice %29 {offsets = [1, 1, 0], sizes = [16, 16, 4], strides = [1, 1, 1]} : vector<18x18x4xf32> to vector<16x16x4xf32>
    %39 = vector.shape_cast %38 : vector<16x16x4xf32> to vector<256x4xf32>
    %40 = vector.extract_strided_slice %29 {offsets = [1, 2, 0], sizes = [16, 16, 4], strides = [1, 1, 1]} : vector<18x18x4xf32> to vector<16x16x4xf32>
    %41 = vector.shape_cast %40 : vector<16x16x4xf32> to vector<256x4xf32>
    %42 = vector.extract_strided_slice %29 {offsets = [2, 0, 0], sizes = [16, 16, 4], strides = [1, 1, 1]} : vector<18x18x4xf32> to vector<16x16x4xf32>
    %43 = vector.shape_cast %42 : vector<16x16x4xf32> to vector<256x4xf32>
    %44 = vector.extract_strided_slice %29 {offsets = [2, 1, 0], sizes = [16, 16, 4], strides = [1, 1, 1]} : vector<18x18x4xf32> to vector<16x16x4xf32>
    %45 = vector.shape_cast %44 : vector<16x16x4xf32> to vector<256x4xf32>
    %46 = vector.extract_strided_slice %29 {offsets = [2, 2, 0], sizes = [16, 16, 4], strides = [1, 1, 1]} : vector<18x18x4xf32> to vector<16x16x4xf32>
    %47 = vector.shape_cast %46 : vector<16x16x4xf32> to vector<256x4xf32>
    %48 = tpu.concatenate %31, %33, %35, %37, %39, %41, %43, %45, %47 in 1 : vector<256x4xf32>, vector<256x4xf32>, vector<256x4xf32>, vector<256x4xf32>, vector<256x4xf32>, vector<256x4xf32>, vector<256x4xf32>, vector<256x4xf32>, vector<256x4xf32> -> vector<256x36xf32>
    %c0_26 = arith.constant 0 : index
    %c0_27 = arith.constant 0 : index
    %49 = vector.load %arg5[%c0_26, %c0_27] : memref<36x8xf32, #tpu.memory_space<vmem>>, vector<36x8xf32>
    %50 = vector.broadcast %24 : vector<1x8xf32> to vector<36x8xf32>
    %51 = arith.mulf %49, %50 : vector<36x8xf32>
    %cst_28 = arith.constant dense<0.000000e+00> : vector<256x8xf32>
    %52 = tpu.matmul %48, %51, %cst_28 {dimension_numbers = #tpu.dot_dimension_numbers<[1], [0], [0], [1], [0, 0, 1, 1], [], []>} : vector<256x36xf32>, vector<36x8xf32>, vector<256x8xf32> -> vector<256x8xf32>
    %53 = vector.broadcast %10 : vector<256x1xf32> to vector<256x8xf32>
    %54 = vector.broadcast %12 : vector<1x8xf32> to vector<256x8xf32>
    %55 = arith.mulf %53, %54 : vector<256x8xf32>
    %56 = arith.addf %52, %55 : vector<256x8xf32>
    %57 = vector.broadcast %14 : vector<1x8xf32> to vector<256x8xf32>
    %58 = arith.addf %56, %57 : vector<256x8xf32>
    %cst_29 = arith.constant 0.000000e+00 : f32
    %59 = vector.broadcast %cst_29 : f32 to vector<256x8xf32>
    %60 = arith.cmpf oge, %58, %59 : vector<256x8xf32>
    %cst_30 = arith.constant 2.000000e-01 : f32
    %61 = vector.broadcast %cst_30 : f32 to vector<256x8xf32>
    %62 = arith.mulf %61, %58 : vector<256x8xf32>
    %63 = arith.select %60, %58, %62 : vector<256x8xi1>, vector<256x8xf32>
    %64 = arith.mulf %7, %7 : vector<1x8xf32>
    %c0_31 = arith.constant 0 : index
    %c0_32 = arith.constant 0 : index
    %65 = vector.load %arg8[%c0_31, %c0_32] : memref<8x8xf32, #tpu.memory_space<vmem>>, vector<8x8xf32>
    %cst_33 = arith.constant dense<0.000000e+00> : vector<1x8xf32>
    %66 = tpu.matmul %64, %65, %cst_33 {dimension_numbers = #tpu.dot_dimension_numbers<[1], [0], [0], [1], [0, 0, 1, 1], [], []>} : vector<1x8xf32>, vector<8x8xf32>, vector<1x8xf32> -> vector<1x8xf32>
    %cst_34 = arith.constant 9.99999993E-9 : f32
    %67 = vector.broadcast %cst_34 : f32 to vector<1x8xf32>
    %68 = arith.addf %66, %67 : vector<1x8xf32>
    %69 = math.rsqrt %68 : vector<1x8xf32>
    %cst_35 = arith.constant 0.000000e+00 : f32
    %70 = vector.broadcast %cst_35 : f32 to vector<18x18x8xf32>
    %c0_36 = arith.constant 0 : index
    %c0_37 = arith.constant 0 : index
    %c0_38 = arith.constant 0 : index
    %71 = vector.load %arg15[%c0_36, %c0_37, %c0_38] : memref<18x18x8xf32, #tpu.memory_space<vmem>>, vector<18x18x8xf32>
    tpu.vector_store %arg15[%c0_36, %c0_37, %c0_38], %70 {strides = array<i32>} : memref<18x18x8xf32, #tpu.memory_space<vmem>>, vector<18x18x8xf32>,
    %72 = vector.broadcast %7 : vector<1x8xf32> to vector<256x8xf32>
    %73 = arith.mulf %63, %72 : vector<256x8xf32>
    %74 = vector.shape_cast %73 : vector<256x8xf32> to vector<16x16x8xf32>
    %c1_39 = arith.constant 1 : index
    %c1_40 = arith.constant 1 : index
    %c0_41 = arith.constant 0 : index
    %75 = vector.load %arg15[%c1_39, %c1_40, %c0_41] : memref<18x18x8xf32, #tpu.memory_space<vmem>>, vector<16x16x8xf32>
    tpu.vector_store %arg15[%c1_39, %c1_40, %c0_41], %74 {strides = array<i32>} : memref<18x18x8xf32, #tpu.memory_space<vmem>>, vector<16x16x8xf32>,
    %c0_42 = arith.constant 0 : index
    %c0_43 = arith.constant 0 : index
    %c0_44 = arith.constant 0 : index
    %76 = vector.load %arg15[%c0_42, %c0_43, %c0_44] : memref<18x18x8xf32, #tpu.memory_space<vmem>>, vector<18x18x8xf32>
    %77 = vector.extract_strided_slice %76 {offsets = [0, 0, 0], sizes = [16, 16, 8], strides = [1, 1, 1]} : vector<18x18x8xf32> to vector<16x16x8xf32>
    %78 = vector.shape_cast %77 : vector<16x16x8xf32> to vector<256x8xf32>
    %79 = vector.extract_strided_slice %76 {offsets = [0, 1, 0], sizes = [16, 16, 8], strides = [1, 1, 1]} : vector<18x18x8xf32> to vector<16x16x8xf32>
    %80 = vector.shape_cast %79 : vector<16x16x8xf32> to vector<256x8xf32>
    %81 = vector.extract_strided_slice %76 {offsets = [0, 2, 0], sizes = [16, 16, 8], strides = [1, 1, 1]} : vector<18x18x8xf32> to vector<16x16x8xf32>
    %82 = vector.shape_cast %81 : vector<16x16x8xf32> to vector<256x8xf32>
    %83 = vector.extract_strided_slice %76 {offsets = [1, 0, 0], sizes = [16, 16, 8], strides = [1, 1, 1]} : vector<18x18x8xf32> to vector<16x16x8xf32>
    %84 = vector.shape_cast %83 : vector<16x16x8xf32> to vector<256x8xf32>
    %85 = vector.extract_strided_slice %76 {offsets = [1, 1, 0], sizes = [16, 16, 8], strides = [1, 1, 1]} : vector<18x18x8xf32> to vector<16x16x8xf32>
    %86 = vector.shape_cast %85 : vector<16x16x8xf32> to vector<256x8xf32>
    %87 = vector.extract_strided_slice %76 {offsets = [1, 2, 0], sizes = [16, 16, 8], strides = [1, 1, 1]} : vector<18x18x8xf32> to vector<16x16x8xf32>
    %88 = vector.shape_cast %87 : vector<16x16x8xf32> to vector<256x8xf32>
    %89 = vector.extract_strided_slice %76 {offsets = [2, 0, 0], sizes = [16, 16, 8], strides = [1, 1, 1]} : vector<18x18x8xf32> to vector<16x16x8xf32>
    %90 = vector.shape_cast %89 : vector<16x16x8xf32> to vector<256x8xf32>
    %91 = vector.extract_strided_slice %76 {offsets = [2, 1, 0], sizes = [16, 16, 8], strides = [1, 1, 1]} : vector<18x18x8xf32> to vector<16x16x8xf32>
    %92 = vector.shape_cast %91 : vector<16x16x8xf32> to vector<256x8xf32>
    %93 = vector.extract_strided_slice %76 {offsets = [2, 2, 0], sizes = [16, 16, 8], strides = [1, 1, 1]} : vector<18x18x8xf32> to vector<16x16x8xf32>
    %94 = vector.shape_cast %93 : vector<16x16x8xf32> to vector<256x8xf32>
    %95 = tpu.concatenate %78, %80, %82, %84, %86, %88, %90, %92, %94 in 1 : vector<256x8xf32>, vector<256x8xf32>, vector<256x8xf32>, vector<256x8xf32>, vector<256x8xf32>, vector<256x8xf32>, vector<256x8xf32>, vector<256x8xf32>, vector<256x8xf32> -> vector<256x72xf32>
    %c0_45 = arith.constant 0 : index
    %c0_46 = arith.constant 0 : index
    %96 = vector.load %arg7[%c0_45, %c0_46] : memref<72x8xf32, #tpu.memory_space<vmem>>, vector<72x8xf32>
    %97 = vector.broadcast %69 : vector<1x8xf32> to vector<72x8xf32>
    %98 = arith.mulf %96, %97 : vector<72x8xf32>
    %cst_47 = arith.constant dense<0.000000e+00> : vector<256x8xf32>
    %99 = tpu.matmul %95, %98, %cst_47 {dimension_numbers = #tpu.dot_dimension_numbers<[1], [0], [0], [1], [0, 0, 1, 1], [], []>} : vector<256x72xf32>, vector<72x8xf32>, vector<256x8xf32> -> vector<256x8xf32>
    %100 = vector.broadcast %10 : vector<256x1xf32> to vector<256x8xf32>
    %101 = vector.broadcast %16 : vector<1x8xf32> to vector<256x8xf32>
    %102 = arith.mulf %100, %101 : vector<256x8xf32>
    %103 = arith.addf %99, %102 : vector<256x8xf32>
    %104 = vector.broadcast %18 : vector<1x8xf32> to vector<256x8xf32>
    %105 = arith.addf %103, %104 : vector<256x8xf32>
    %cst_48 = arith.constant 0.000000e+00 : f32
    %106 = vector.broadcast %cst_48 : f32 to vector<256x8xf32>
    %107 = arith.cmpf oge, %105, %106 : vector<256x8xf32>
    %cst_49 = arith.constant 2.000000e-01 : f32
    %108 = vector.broadcast %cst_49 : f32 to vector<256x8xf32>
    %109 = arith.mulf %108, %105 : vector<256x8xf32>
    %110 = arith.select %107, %105, %109 : vector<256x8xi1>, vector<256x8xf32>
    %c0_50 = arith.constant 0 : index
    %c0_51 = arith.constant 0 : index
    %c0_52 = arith.constant 0 : index
    %111 = vector.load %arg13[%c0_50, %c0_51, %c0_52] : memref<1x256x8xf32, #tpu.memory_space<vmem>>, vector<1x256x8xf32>
    %112 = vector.shape_cast %111 : vector<1x256x8xf32> to vector<256x8xf32>
    %113 = vector.shape_cast %110 : vector<256x8xf32> to vector<1x256x8xf32>
    tpu.vector_store %arg13[%c0_50, %c0_51, %c0_52], %113 {strides = array<i32>} : memref<1x256x8xf32, #tpu.memory_space<vmem>>, vector<1x256x8xf32>,
    %114 = vector.broadcast %8 : vector<1x8xf32> to vector<256x8xf32>
    %115 = arith.mulf %110, %114 : vector<256x8xf32>
    %c0_53 = arith.constant 0 : index
    %c0_54 = arith.constant 0 : index
    %116 = vector.load %arg9[%c0_53, %c0_54] : memref<8x3xf32, #tpu.memory_space<vmem>>, vector<8x3xf32>
    %cst_55 = arith.constant dense<0.000000e+00> : vector<256x3xf32>
    %117 = tpu.matmul %115, %116, %cst_55 {dimension_numbers = #tpu.dot_dimension_numbers<[1], [0], [0], [1], [0, 0, 1, 1], [], []>} : vector<256x8xf32>, vector<8x3xf32>, vector<256x3xf32> -> vector<256x3xf32>
    %c0_56 = arith.constant 0 : index
    %c0_57 = arith.constant 0 : index
    %c0_58 = arith.constant 0 : index
    %118 = vector.load %arg12[%c0_56, %c0_57, %c0_58] : memref<1x256x3xf32, #tpu.memory_space<vmem>>, vector<1x256x3xf32>
    %119 = vector.shape_cast %118 : vector<1x256x3xf32> to vector<256x3xf32>
    %120 = arith.addf %117, %119 : vector<256x3xf32>
    %c0_59 = arith.constant 0 : index
    %c0_60 = arith.constant 0 : index
    %c0_61 = arith.constant 0 : index
    %121 = vector.load %arg14[%c0_59, %c0_60, %c0_61] : memref<1x256x3xf32, #tpu.memory_space<vmem>>, vector<1x256x3xf32>
    %122 = vector.shape_cast %121 : vector<1x256x3xf32> to vector<256x3xf32>
    %123 = vector.shape_cast %120 : vector<256x3xf32> to vector<1x256x3xf32>
    tpu.vector_store %arg14[%c0_59, %c0_60, %c0_61], %123 {strides = array<i32>} : memref<1x256x3xf32, #tpu.memory_space<vmem>>, vector<1x256x3xf32>,
    return
  }
  func.func @transform_0(%arg0: i32) -> (i32, i32, i32) {
    %c0_i32 = arith.constant 0 : i32
    %c0_i32_0 = arith.constant 0 : i32
    %c0_i32_1 = arith.constant 0 : i32
    return %arg0, %c0_i32, %c0_i32_0 : i32, i32, i32
  }
  func.func @transform_1(%arg0: i32) -> (i32, i32) {
    %c0_i32 = arith.constant 0 : i32
    %c0_i32_0 = arith.constant 0 : i32
    %c0_i32_1 = arith.constant 0 : i32
    return %c0_i32, %c0_i32_0 : i32, i32
  }
  func.func @transform_2(%arg0: i32) -> (i32, i32) {
    %c0_i32 = arith.constant 0 : i32
    %c0_i32_0 = arith.constant 0 : i32
    %c0_i32_1 = arith.constant 0 : i32
    return %c0_i32, %c0_i32_0 : i32, i32
  }
  func.func @transform_3(%arg0: i32) -> (i32, i32, i32, i32) {
    %c0_i32 = arith.constant 0 : i32
    %c0_i32_0 = arith.constant 0 : i32
    %c0_i32_1 = arith.constant 0 : i32
    %c0_i32_2 = arith.constant 0 : i32
    return %arg0, %c0_i32, %c0_i32_0, %c0_i32_1 : i32, i32, i32, i32
  }
  func.func @transform_4(%arg0: i32) -> (i32, i32) {
    %c0_i32 = arith.constant 0 : i32
    %c0_i32_0 = arith.constant 0 : i32
    %c0_i32_1 = arith.constant 0 : i32
    return %c0_i32, %c0_i32_0 : i32, i32
  }
  func.func @transform_5(%arg0: i32) -> (i32, i32) {
    %c0_i32 = arith.constant 0 : i32
    %c0_i32_0 = arith.constant 0 : i32
    %c0_i32_1 = arith.constant 0 : i32
    return %c0_i32, %c0_i32_0 : i32, i32
  }
  func.func @transform_6(%arg0: i32) -> (i32, i32) {
    %c0_i32 = arith.constant 0 : i32
    %c0_i32_0 = arith.constant 0 : i32
    %c0_i32_1 = arith.constant 0 : i32
    return %c0_i32, %c0_i32_0 : i32, i32
  }
  func.func @transform_7(%arg0: i32) -> (i32, i32) {
    %c0_i32 = arith.constant 0 : i32
    %c0_i32_0 = arith.constant 0 : i32
    %c0_i32_1 = arith.constant 0 : i32
    return %c0_i32, %c0_i32_0 : i32, i32
  }
  func.func @transform_8(%arg0: i32) -> (i32, i32) {
    %c0_i32 = arith.constant 0 : i32
    %c0_i32_0 = arith.constant 0 : i32
    %c0_i32_1 = arith.constant 0 : i32
    return %c0_i32, %c0_i32_0 : i32, i32
  }
  func.func @transform_9(%arg0: i32) -> (i32, i32, i32) {
    %c0_i32 = arith.constant 0 : i32
    %c0_i32_0 = arith.constant 0 : i32
    %c0_i32_1 = arith.constant 0 : i32
    %c0_i32_2 = arith.constant 0 : i32
    return %c0_i32, %c0_i32_0, %c0_i32_1 : i32, i32, i32
  }
  func.func @transform_10(%arg0: i32) -> (i32, i32, i32) {
    %c0_i32 = arith.constant 0 : i32
    %c0_i32_0 = arith.constant 0 : i32
    %c0_i32_1 = arith.constant 0 : i32
    return %arg0, %c0_i32, %c0_i32_0 : i32, i32, i32
  }
  func.func @transform_11(%arg0: i32) -> (i32, i32, i32) {
    %c0_i32 = arith.constant 0 : i32
    %c0_i32_0 = arith.constant 0 : i32
    %c0_i32_1 = arith.constant 0 : i32
    return %arg0, %c0_i32, %c0_i32_0 : i32, i32, i32
  }
  func.func @transform_12(%arg0: i32) -> (i32, i32, i32) {
    %c0_i32 = arith.constant 0 : i32
    %c0_i32_0 = arith.constant 0 : i32
    %c0_i32_1 = arith.constant 0 : i32
    return %arg0, %c0_i32, %c0_i32_0 : i32, i32, i32
  }
  func.func @transform_13(%arg0: i32) -> (i32, i32, i32) {
    %c0_i32 = arith.constant 0 : i32
    %c0_i32_0 = arith.constant 0 : i32
    %c0_i32_1 = arith.constant 0 : i32
    return %arg0, %c0_i32, %c0_i32_0 : i32, i32, i32
  }
}

</mosaic_0001>

<llo_original>
// kernel: tpu_custom_call.1
$region0: #{tpu_custom_call.1}
  #allocation0 [shape = 'u32[]', space=smem, size = 0x4, offset = 0x4, fixed_abs, tag = 'smem constant byte address 0x4 - core index']
  #allocation1 [shape = 'u32[144,128]{1,0:T(1,128)}', space=vmem, size = 0x12000, scoped, tag = 'internal scratch']
  #allocation2 [shape = 'f32[18,18,8]{2,1,0:T(8,128)}', space=vmem, size = 0x36000, scoped, tag = 'scratch operand']
  %s0 = inlined_call_operand.hbm [shape: f32[2,1,32], index: 0, kind: input, shape index: {}]
  %s1 = inlined_call_operand.hbm [shape: f32[32,20], index: 1, kind: input, shape index: {}]
  %s2 = inlined_call_operand.hbm [shape: f32[1,20], index: 2, kind: input, shape index: {}]
  %s3 = inlined_call_operand.hbm [shape: f32[2,18,18,4], index: 3, kind: input, shape index: {}]
  %s4 = inlined_call_operand.hbm [shape: f32[36,8], index: 4, kind: input, shape index: {}]
  %s5 = inlined_call_operand.hbm [shape: f32[4,8], index: 5, kind: input, shape index: {}]
  %s6 = inlined_call_operand.hbm [shape: f32[72,8], index: 6, kind: input, shape index: {}]
  %s7 = inlined_call_operand.hbm [shape: f32[8,8], index: 7, kind: input, shape index: {}]
  %s8 = inlined_call_operand.hbm [shape: f32[8,3], index: 8, kind: input, shape index: {}]
  %s9 = inlined_call_operand.hbm [shape: f32[4,1,8], index: 9, kind: input, shape index: {}]
  %s10 = inlined_call_operand.hbm [shape: f32[2,256,1], index: 10, kind: input, shape index: {}]
  %s11 = inlined_call_operand.hbm [shape: f32[2,256,3], index: 11, kind: input, shape index: {}]
  %s12 = inlined_call_operand.hbm [shape: f32[2,256,8], index: 12, kind: output, shape index: {0}]
  %s13 = inlined_call_operand.hbm [shape: f32[2,256,3], index: 13, kind: output, shape index: {1}]
  %14 = xla_tuple %s12, %s13
  %s15 = sld [smem:[#allocation0]]
  $region137: #{tpu_custom_call.1} parent=0
    _
  %s17 = ssub.s32 1, %s15
  %s18 = scalar_select 0, %s17, %s15
  $region1: #{tpu_custom_call.1} parent=0
    #allocation3 [shape = 'u8[1024]{0}', space=vmem, size = 0x400, scoped, tag = 'input window, operand 0']
    #allocation4 [shape = 's32[2]{0}', space=sflag, size = 0x8, scoped, tag = 'scoped memory for tpu_custom_call.1']
    #allocation5 [shape = 's32[2]{0}', space=sflag, size = 0x8, scoped, tag = 'scoped memory for tpu_custom_call.1']
    #allocation6 [shape = 'u8[16384]{0}', space=vmem, size = 0x4000, scoped, tag = 'input window, operand 1, single buffered']
    #allocation7 [shape = 's32[1]{0}', space=sflag, size = 0x4, scoped, tag = 'scoped memory for tpu_custom_call.1']
    #allocation8 [shape = 'u8[512]{0}', space=vmem, size = 0x400, scoped, tag = 'input window, operand 2, single buffered']
    #allocation9 [shape = 'u8[442368]{0}', space=vmem, size = 0x6c000, scoped, tag = 'input window, operand 3']
    #allocation10 [shape = 's32[2]{0}', space=sflag, size = 0x8, scoped, tag = 'scoped memory for tpu_custom_call.1']
    #allocation11 [shape = 'u8[20480]{0}', space=vmem, size = 0x5000, scoped, tag = 'input window, operand 4, single buffered']
    #allocation12 [shape = 'u8[2048]{0}', space=vmem, size = 0x800, scoped, tag = 'input window, operand 5, single buffered']
    #allocation13 [shape = 's32[1]{0}', space=sflag, size = 0x4, scoped, tag = 'scoped memory for tpu_custom_call.1']
    #allocation14 [shape = 'u8[36864]{0}', space=vmem, size = 0x9000, scoped, tag = 'input window, operand 6, single buffered']
    #allocation15 [shape = 'u8[4096]{0}', space=vmem, size = 0x1000, scoped, tag = 'input window, operand 7, single buffered']
    #allocation16 [shape = 's32[1]{0}', space=sflag, size = 0x4, scoped, tag = 'scoped memory for tpu_custom_call.1']
    #allocation17 [shape = 'u8[4096]{0}', space=vmem, size = 0x1000, scoped, tag = 'input window, operand 8, single buffered']
    #allocation18 [shape = 'u8[2048]{0}', space=vmem, size = 0x800, scoped, tag = 'input window, operand 9, single buffered']
    #allocation19 [shape = 's32[1]{0}', space=sflag, size = 0x4, scoped, tag = 'scoped memory for tpu_custom_call.1']
    #allocation20 [shape = 'u8[262144]{0}', space=vmem, size = 0x40000, scoped, tag = 'input window, operand 10']
    #allocation21 [shape = 'u8[262144]{0}', space=vmem, size = 0x40000, scoped, tag = 'input window, operand 11']
    #allocation22 [shape = 'u8[262144]{0}', space=vmem, size = 0x40000, scoped, tag = 'output window, operand 0']
    #allocation23 [shape = 'u8[262144]{0}', space=vmem, size = 0x40000, scoped, tag = 'output window, operand 1']
    #allocation24 [shape = 's32[2]{0}', space=sflag, size = 0x8, scoped, tag = 'scoped memory for tpu_custom_call.1']
    %19 = vsyncpa [#allocation4], 0
    %s20 = scalar_lea.sflag [#allocation4], 1
    %21 = vsyncpa %s20, 0
    %22 = vsyncpa [#allocation7], 0
    %23 = vsyncpa [#allocation10], 0
    %s24 = scalar_lea.sflag [#allocation10], 1
    %25 = vsyncpa %s24, 0
    %26 = vsyncpa [#allocation13], 0
    %27 = vsyncpa [#allocation16], 0
    %28 = vsyncpa [#allocation19], 0
    %29 = vsyncpa [#allocation5], 0
    %s30 = scalar_lea.sflag [#allocation5], 1
    %31 = vsyncpa %s30, 0
    %32 = vsyncpa [#allocation24], 0
    %s33 = scalar_lea.sflag [#allocation24], 1
    %34 = vsyncpa %s33, 0
    loop: start=0, step=1, limit=4
    $region2: #{tpu_custom_call.1} parent=1 // loop_pre_header
      _
    $region3: #{tpu_custom_call.1} parent=1 // loop_header
      %s36 = sphi 0, %s40
      %p37 = scmp.ge.s32.totalorder %s36, 4
      %s46 = sphi 0, %s48
      %s49 = sphi 0, %s46
      %s50 = sphi 0, %s49
      %s66 = sphi 0, %s50
      %s70 = sphi 0, %s70
      %s72 = sphi 0, %s70
      %s73 = sphi 0, %s72
      %s87 = sphi 0, %s73
      %s91 = sphi 0, %s91
      %s93 = sphi 0, %s91
      %s94 = sphi 0, %s93
      %s108 = sphi 0, %s94
      %s114 = sphi 0, %s116
      %s117 = sphi 0, %s114
      %s118 = sphi 0, %s117
      %s134 = sphi 0, %s118
      %s138 = sphi 0, %s138
      %s140 = sphi 0, %s138
      %s141 = sphi 0, %s140
      %s155 = sphi 0, %s141
      %s159 = sphi 0, %s159
      %s161 = sphi 0, %s159
      %s162 = sphi 0, %s161
      %s176 = sphi 0, %s162
      %s180 = sphi 0, %s180
      %s182 = sphi 0, %s180
      %s183 = sphi 0, %s182
      %s197 = sphi 0, %s183
      %s201 = sphi 0, %s201
      %s203 = sphi 0, %s201
      %s204 = sphi 0, %s203
      %s218 = sphi 0, %s204
      %s222 = sphi 0, %s222
      %s224 = sphi 0, %s222
      %s225 = sphi 0, %s224
      %s239 = sphi 0, %s225
      %s243 = sphi 0, %s243
      %s245 = sphi 0, %s243
      %s246 = sphi 0, %s245
      %s260 = sphi 0, %s246
      %s266 = sphi 0, %s268
      %s269 = sphi 0, %s266
      %s270 = sphi 0, %s269
      %s286 = sphi 0, %s270
      %s292 = sphi 0, %s294
      %s295 = sphi 0, %s292
      %s296 = sphi 0, %s295
      %s312 = sphi 0, %s296
      %s318 = sphi 0, %s320
      %s321 = sphi 0, %s318
      %s322 = sphi 0, %s321
      %s338 = sphi 0, %s322
      %s344 = sphi 0, %s346
      %s347 = sphi 0, %s344
      %s348 = sphi 0, %s347
      %s364 = sphi 0, %s348
    $region4: #{tpu_custom_call.1} parent=1 // loop_header_branch
      %39 = sbr.rel (%p37) target = $region8
    $region5: #{tpu_custom_call.1} parent=1 // loop_body
      %s41 = ssub.s32 %s36, 1
      %s42 = ssub.s32 %s36, 2
      %s43 = sadd.s32 %s36, 1
      %s44 = ssub.s32 %s36, %s43
      %p45 = scmp.eq.s32.totalorder %s44, 0
      %s47 = sadd.s32 %s46, 1
      %s48 = scalar_select %p45, %s46, %s47
      %p51 = pneg %p45
      %p52 = scmp.eq.s32.totalorder %s36, 1
      %p53 = por %p51, %p52
      %p54 = scmp.ne.s32.totalorder %s46, %s49
      %p55 = scmp.eq.s32.totalorder %s36, 0
      %p56 = por %p54, %p55
      %p57 = scmp.ne.s32.totalorder %s46, %s49
      %p58 = scmp.eq.s32.totalorder %s41, 1
      %p59 = por %p57, %p58
      %p60 = scmp.ne.s32.totalorder %s49, %s50
      %p61 = scmp.eq.s32.totalorder %s41, 0
      %p62 = por %p60, %p61
      %p63 = scmp.ne.s32.totalorder %s49, %s50
      %p64 = scmp.eq.s32.totalorder %s42, 1
      %p65 = por %p63, %p64
      %p67 = scmp.ne.s32.totalorder %s50, %s66
      %p68 = scmp.eq.s32.totalorder %s42, 0
      %p69 = por %p67, %p68
      %s71 = sadd.s32 %s70, 1
      %p74 = scmp.eq.s32.totalorder %s36, 1
      %p75 = scmp.ne.s32.totalorder %s70, %s72
      %p76 = scmp.eq.s32.totalorder %s36, 0
      %p77 = por %p75, %p76
      %p78 = scmp.ne.s32.totalorder %s70, %s72
      %p79 = scmp.eq.s32.totalorder %s41, 1
      %p80 = por %p78, %p79
      %p81 = scmp.ne.s32.totalorder %s72, %s73
      %p82 = scmp.eq.s32.totalorder %s41, 0
      %p83 = por %p81, %p82
      %p84 = scmp.ne.s32.totalorder %s72, %s73
      %p85 = scmp.eq.s32.totalorder %s42, 1
      %p86 = por %p84, %p85
      %p88 = scmp.ne.s32.totalorder %s73, %s87
      %p89 = scmp.eq.s32.totalorder %s42, 0
      %p90 = por %p88, %p89
      %s92 = sadd.s32 %s91, 1
      %p95 = scmp.eq.s32.totalorder %s36, 1
      %p96 = scmp.ne.s32.totalorder %s91, %s93
      %p97 = scmp.eq.s32.totalorder %s36, 0
      %p98 = por %p96, %p97
      %p99 = scmp.ne.s32.totalorder %s91, %s93
      %p100 = scmp.eq.s32.totalorder %s41, 1
      %p101 = por %p99, %p100
      %p102 = scmp.ne.s32.totalorder %s93, %s94
      %p103 = scmp.eq.s32.totalorder %s41, 0
      %p104 = por %p102, %p103
      %p105 = scmp.ne.s32.totalorder %s93, %s94
      %p106 = scmp.eq.s32.totalorder %s42, 1
      %p107 = por %p105, %p106
      %p109 = scmp.ne.s32.totalorder %s94, %s108
      %p110 = scmp.eq.s32.totalorder %s42, 0
      %p111 = por %p109, %p110
      %s112 = ssub.s32 %s36, %s43
      %p113 = scmp.eq.s32.totalorder %s112, 0
      %s115 = sadd.s32 %s114, 1
      %s116 = scalar_select %p113, %s114, %s115
      %p119 = pneg %p113
      %p120 = scmp.eq.s32.totalorder %s36, 1
      %p121 = por %p119, %p120
      %p122 = scmp.ne.s32.totalorder %s114, %s117
      %p123 = scmp.eq.s32.totalorder %s36, 0
      %p124 = por %p122, %p123
      %p125 = scmp.ne.s32.totalorder %s114, %s117
      %p126 = scmp.eq.s32.totalorder %s41, 1
      %p127 = por %p125, %p126
      %p128 = scmp.ne.s32.totalorder %s117, %s118
      %p129 = scmp.eq.s32.totalorder %s41, 0
      %p130 = por %p128, %p129
      %p131 = scmp.ne.s32.totalorder %s117, %s118
      %p132 = scmp.eq.s32.totalorder %s42, 1
      %p133 = por %p131, %p132
      %p135 = scmp.ne.s32.totalorder %s118, %s134
      %p136 = scmp.eq.s32.totalorder %s42, 0
      %p137 = por %p135, %p136
      %s139 = sadd.s32 %s138, 1
      %p142 = scmp.eq.s32.totalorder %s36, 1
      %p143 = scmp.ne.s32.totalorder %s138, %s140
      %p144 = scmp.eq.s32.totalorder %s36, 0
      %p145 = por %p143, %p144
      %p146 = scmp.ne.s32.totalorder %s138, %s140
      %p147 = scmp.eq.s32.totalorder %s41, 1
      %p148 = por %p146, %p147
      %p149 = scmp.ne.s32.totalorder %s140, %s141
      %p150 = scmp.eq.s32.totalorder %s41, 0
      %p151 = por %p149, %p150
      %p152 = scmp.ne.s32.totalorder %s140, %s141
      %p153 = scmp.eq.s32.totalorder %s42, 1
      %p154 = por %p152, %p153
      %p156 = scmp.ne.s32.totalorder %s141, %s155
      %p157 = scmp.eq.s32.totalorder %s42, 0
      %p158 = por %p156, %p157
      %s160 = sadd.s32 %s159, 1
      %p163 = scmp.eq.s32.totalorder %s36, 1
      %p164 = scmp.ne.s32.totalorder %s159, %s161
      %p165 = scmp.eq.s32.totalorder %s36, 0
      %p166 = por %p164, %p165
      %p167 = scmp.ne.s32.totalorder %s159, %s161
      %p168 = scmp.eq.s32.totalorder %s41, 1
      %p169 = por %p167, %p168
      %p170 = scmp.ne.s32.totalorder %s161, %s162
      %p171 = scmp.eq.s32.totalorder %s41, 0
      %p172 = por %p170, %p171
      %p173 = scmp.ne.s32.totalorder %s161, %s162
      %p174 = scmp.eq.s32.totalorder %s42, 1
      %p175 = por %p173, %p174
      %p177 = scmp.ne.s32.totalorder %s162, %s176
      %p178 = scmp.eq.s32.totalorder %s42, 0
      %p179 = por %p177, %p178
      %s181 = sadd.s32 %s180, 1
      %p184 = scmp.eq.s32.totalorder %s36, 1
      %p185 = scmp.ne.s32.totalorder %s180, %s182
      %p186 = scmp.eq.s32.totalorder %s36, 0
      %p187 = por %p185, %p186
      %p188 = scmp.ne.s32.totalorder %s180, %s182
      %p189 = scmp.eq.s32.totalorder %s41, 1
      %p190 = por %p188, %p189
      %p191 = scmp.ne.s32.totalorder %s182, %s183
      %p192 = scmp.eq.s32.totalorder %s41, 0
      %p193 = por %p191, %p192
      %p194 = scmp.ne.s32.totalorder %s182, %s183
      %p195 = scmp.eq.s32.totalorder %s42, 1
      %p196 = por %p194, %p195
      %p198 = scmp.ne.s32.totalorder %s183, %s197
      %p199 = scmp.eq.s32.totalorder %s42, 0
      %p200 = por %p198, %p199
      %s202 = sadd.s32 %s201, 1
      %p205 = scmp.eq.s32.totalorder %s36, 1
      %p206 = scmp.ne.s32.totalorder %s201, %s203
      %p207 = scmp.eq.s32.totalorder %s36, 0
      %p208 = por %p206, %p207
      %p209 = scmp.ne.s32.totalorder %s201, %s203
      %p210 = scmp.eq.s32.totalorder %s41, 1
      %p211 = por %p209, %p210
      %p212 = scmp.ne.s32.totalorder %s203, %s204
      %p213 = scmp.eq.s32.totalorder %s41, 0
      %p214 = por %p212, %p213
      %p215 = scmp.ne.s32.totalorder %s203, %s204
      %p216 = scmp.eq.s32.totalorder %s42, 1
      %p217 = por %p215, %p216
      %p219 = scmp.ne.s32.totalorder %s204, %s218
      %p220 = scmp.eq.s32.totalorder %s42, 0
      %p221 = por %p219, %p220
      %s223 = sadd.s32 %s222, 1
      %p226 = scmp.eq.s32.totalorder %s36, 1
      %p227 = scmp.ne.s32.totalorder %s222, %s224
      %p228 = scmp.eq.s32.totalorder %s36, 0
      %p229 = por %p227, %p228
      %p230 = scmp.ne.s32.totalorder %s222, %s224
      %p231 = scmp.eq.s32.totalorder %s41, 1
      %p232 = por %p230, %p231
      %p233 = scmp.ne.s32.totalorder %s224, %s225
      %p234 = scmp.eq.s32.totalorder %s41, 0
      %p235 = por %p233, %p234
      %p236 = scmp.ne.s32.totalorder %s224, %s225
      %p237 = scmp.eq.s32.totalorder %s42, 1
      %p238 = por %p236, %p237
      %p240 = scmp.ne.s32.totalorder %s225, %s239
      %p241 = scmp.eq.s32.totalorder %s42, 0
      %p242 = por %p240, %p241
      %s244 = sadd.s32 %s243, 1
      %p247 = scmp.eq.s32.totalorder %s36, 1
      %p248 = scmp.ne.s32.totalorder %s243, %s245
      %p249 = scmp.eq.s32.totalorder %s36, 0
      %p250 = por %p248, %p249
      %p251 = scmp.ne.s32.totalorder %s243, %s245
      %p252 = scmp.eq.s32.totalorder %s41, 1
      %p253 = por %p251, %p252
      %p254 = scmp.ne.s32.totalorder %s245, %s246
      %p255 = scmp.eq.s32.totalorder %s41, 0
      %p256 = por %p254, %p255
      %p257 = scmp.ne.s32.totalorder %s245, %s246
      %p258 = scmp.eq.s32.totalorder %s42, 1
      %p259 = por %p257, %p258
      %p261 = scmp.ne.s32.totalorder %s246, %s260
      %p262 = scmp.eq.s32.totalorder %s42, 0
      %p263 = por %p261, %p262
      %s264 = ssub.s32 %s36, %s43
      %p265 = scmp.eq.s32.totalorder %s264, 0
      %s267 = sadd.s32 %s266, 1
      %s268 = scalar_select %p265, %s266, %s267
      %p271 = pneg %p265
      %p272 = scmp.eq.s32.totalorder %s36, 1
      %p273 = por %p271, %p272
      %p274 = scmp.ne.s32.totalorder %s266, %s269
      %p275 = scmp.eq.s32.totalorder %s36, 0
      %p276 = por %p274, %p275
      %p277 = scmp.ne.s32.totalorder %s266, %s269
      %p278 = scmp.eq.s32.totalorder %s41, 1
      %p279 = por %p277, %p278
      %p280 = scmp.ne.s32.totalorder %s269, %s270
      %p281 = scmp.eq.s32.totalorder %s41, 0
      %p282 = por %p280, %p281
      %p283 = scmp.ne.s32.totalorder %s269, %s270
      %p284 = scmp.eq.s32.totalorder %s42, 1
      %p285 = por %p283, %p284
      %p287 = scmp.ne.s32.totalorder %s270, %s286
      %p288 = scmp.eq.s32.totalorder %s42, 0
      %p289 = por %p287, %p288
      %s290 = ssub.s32 %s36, %s43
      %p291 = scmp.eq.s32.totalorder %s290, 0
      %s293 = sadd.s32 %s292, 1
      %s294 = scalar_select %p291, %s292, %s293
      %p297 = pneg %p291
      %p298 = scmp.eq.s32.totalorder %s36, 1
      %p299 = por %p297, %p298
      %p300 = scmp.ne.s32.totalorder %s292, %s295
      %p301 = scmp.eq.s32.totalorder %s36, 0
      %p302 = por %p300, %p301
      %p303 = scmp.ne.s32.totalorder %s292, %s295
      %p304 = scmp.eq.s32.totalorder %s41, 1
      %p305 = por %p303, %p304
      %p306 = scmp.ne.s32.totalorder %s295, %s296
      %p307 = scmp.eq.s32.totalorder %s41, 0
      %p308 = por %p306, %p307
      %p309 = scmp.ne.s32.totalorder %s295, %s296
      %p310 = scmp.eq.s32.totalorder %s42, 1
      %p311 = por %p309, %p310
      %p313 = scmp.ne.s32.totalorder %s296, %s312
      %p314 = scmp.eq.s32.totalorder %s42, 0
      %p315 = por %p313, %p314
      %s316 = ssub.s32 %s36, %s43
      %p317 = scmp.eq.s32.totalorder %s316, 0
      %s319 = sadd.s32 %s318, 1
      %s320 = scalar_select %p317, %s318, %s319
      %p323 = pneg %p317
      %p324 = scmp.eq.s32.totalorder %s36, 1
      %p325 = por %p323, %p324
      %p326 = scmp.ne.s32.totalorder %s318, %s321
      %p327 = scmp.eq.s32.totalorder %s36, 0
      %p328 = por %p326, %p327
      %p329 = scmp.ne.s32.totalorder %s318, %s321
      %p330 = scmp.eq.s32.totalorder %s41, 1
      %p331 = por %p329, %p330
      %p332 = scmp.ne.s32.totalorder %s321, %s322
      %p333 = scmp.eq.s32.totalorder %s41, 0
      %p334 = por %p332, %p333
      %p335 = scmp.ne.s32.totalorder %s321, %s322
      %p336 = scmp.eq.s32.totalorder %s42, 1
      %p337 = por %p335, %p336
      %p339 = scmp.ne.s32.totalorder %s322, %s338
      %p340 = scmp.eq.s32.totalorder %s42, 0
      %p341 = por %p339, %p340
      %s342 = ssub.s32 %s36, %s43
      %p343 = scmp.eq.s32.totalorder %s342, 0
      %s345 = sadd.s32 %s344, 1
      %s346 = scalar_select %p343, %s344, %s345
      %p349 = pneg %p343
      %p350 = scmp.eq.s32.totalorder %s36, 1
      %p351 = por %p349, %p350
      %p352 = scmp.ne.s32.totalorder %s344, %s347
      %p353 = scmp.eq.s32.totalorder %s36, 0
      %p354 = por %p352, %p353
      %p355 = scmp.ne.s32.totalorder %s344, %s347
      %p356 = scmp.eq.s32.totalorder %s41, 1
      %p357 = por %p355, %p356
      %p358 = scmp.ne.s32.totalorder %s347, %s348
      %p359 = scmp.eq.s32.totalorder %s41, 0
      %p360 = por %p358, %p359
      %p361 = scmp.ne.s32.totalorder %s347, %s348
      %p362 = scmp.eq.s32.totalorder %s42, 1
      %p363 = por %p361, %p362
      %p365 = scmp.ne.s32.totalorder %s348, %s364
      %p366 = scmp.eq.s32.totalorder %s42, 0
      %p367 = por %p365, %p366
      %p368 = scmp.le.s32.totalorder 1, %s36
      %p369 = scmp.lt.s32.totalorder %s36, 3
      %p370 = pnand %p368, %p369
      %p371 = pneg %p370
      // Predicated region
      $region9: #{tpu_custom_call.1} parent=5 // pred_check
        _
      $region10: #{tpu_custom_call.1} parent=5 // pred_check_branch
        %373 = sbr.rel (%p370) target = $region12
      $region11: #{tpu_custom_call.1} parent=5 // pred_region
        %s374 = ssub.s32 %s36, 1
        // Predicated region
        $region13: #{tpu_custom_call.1} parent=11 // pred_check
          %p375 = pneg %p83
        $region14: #{tpu_custom_call.1} parent=11 // pred_check_branch
          %377 = sbr.rel (%p375) target = $region16
        $region15: #{tpu_custom_call.1} parent=11 // pred_region
          %s379 = ssub.s32 512, 512
          %380 = vsyncadd [#allocation7], %s379
          %s381 = sshll.u32 [#allocation6], 4
          %s382 = int_to_ptr.vmem [resolvable:$true] %s381
          %387 = dma.hbm_to_vmem [thread:$0]  %s1, 512, %s382, [#allocation7], 128, 128, 8
        $region16: #{tpu_custom_call.1} parent=11 // pred_fallthru
          _
        // Predicated region
        $region17: #{tpu_custom_call.1} parent=11 // pred_check
          %p388 = pneg %p104
        $region18: #{tpu_custom_call.1} parent=11 // pred_check_branch
          %390 = sbr.rel (%p388) target = $region20
        $region19: #{tpu_custom_call.1} parent=11 // pred_region
          %s392 = ssub.s32 16, 16
          %393 = vsyncadd [#allocation7], %s392
          %s395 = sshll.u32 [#allocation8], 4
          %s396 = int_to_ptr.vmem [resolvable:$true] %s395
          %398 = dma.hbm_to_vmem [thread:$0]  %s2, 16, %s396, [#allocation7]
        $region20: #{tpu_custom_call.1} parent=11 // pred_fallthru
          _
        // Predicated region
        $region21: #{tpu_custom_call.1} parent=11 // pred_check
          %p399 = pneg %p151
        $region22: #{tpu_custom_call.1} parent=11 // pred_check_branch
          %401 = sbr.rel (%p399) target = $region24
        $region23: #{tpu_custom_call.1} parent=11 // pred_region
          %s403 = ssub.s32 640, 640
          %404 = vsyncadd [#allocation10], %s403
          %s405 = sshll.u32 [#allocation11], 4
          %s406 = int_to_ptr.vmem [resolvable:$true] %s405
          %411 = dma.hbm_to_vmem [thread:$0]  %s4, 640, %s406, [#allocation10], 128, 128, 8
        $region24: #{tpu_custom_call.1} parent=11 // pred_fallthru
          _
        // Predicated region
        $region25: #{tpu_custom_call.1} parent=11 // pred_check
          %p412 = pneg %p172
        $region26: #{tpu_custom_call.1} parent=11 // pred_check_branch
          %414 = sbr.rel (%p412) target = $region28
        $region27: #{tpu_custom_call.1} parent=11 // pred_region
          %s416 = ssub.s32 64, 64
          %417 = vsyncadd [#allocation13], %s416
          %s419 = sshll.u32 [#allocation12], 4
          %s420 = int_to_ptr.vmem [resolvable:$true] %s419
          %422 = dma.hbm_to_vmem [thread:$0]  %s5, 64, %s420, [#allocation13]
        $region28: #{tpu_custom_call.1} parent=11 // pred_fallthru
          _
        // Predicated region
        $region29: #{tpu_custom_call.1} parent=11 // pred_check
          %p423 = pneg %p193
        $region30: #{tpu_custom_call.1} parent=11 // pred_check_branch
          %425 = sbr.rel (%p423) target = $region32
        $region31: #{tpu_custom_call.1} parent=11 // pred_region
          %s427 = ssub.s32 1152, 1152
          %428 = vsyncadd [#allocation13], %s427
          %s429 = sshll.u32 [#allocation14], 4
          %s430 = int_to_ptr.vmem [resolvable:$true] %s429
          %435 = dma.hbm_to_vmem [thread:$0]  %s6, 1152, %s430, [#allocation13], 128, 128, 8
        $region32: #{tpu_custom_call.1} parent=11 // pred_fallthru
          _
        // Predicated region
        $region33: #{tpu_custom_call.1} parent=11 // pred_check
          %p436 = pneg %p214
        $region34: #{tpu_custom_call.1} parent=11 // pred_check_branch
          %438 = sbr.rel (%p436) target = $region36
        $region35: #{tpu_custom_call.1} parent=11 // pred_region
          %s440 = ssub.s32 128, 128
          %441 = vsyncadd [#allocation16], %s440
          %s443 = sshll.u32 [#allocation15], 4
          %s444 = int_to_ptr.vmem [resolvable:$true] %s443
          %446 = dma.hbm_to_vmem [thread:$0]  %s7, 128, %s444, [#allocation16]
        $region36: #{tpu_custom_call.1} parent=11 // pred_fallthru
          _
        // Predicated region
        $region37: #{tpu_custom_call.1} parent=11 // pred_check
          %p447 = pneg %p235
        $region38: #{tpu_custom_call.1} parent=11 // pred_check_branch
          %449 = sbr.rel (%p447) target = $region40
        $region39: #{tpu_custom_call.1} parent=11 // pred_region
          %s451 = ssub.s32 128, 128
          %452 = vsyncadd [#allocation16], %s451
          %s454 = sshll.u32 [#allocation17], 4
          %s455 = int_to_ptr.vmem [resolvable:$true] %s454
          %457 = dma.hbm_to_vmem [thread:$0]  %s8, 128, %s455, [#allocation16]
        $region40: #{tpu_custom_call.1} parent=11 // pred_fallthru
          _
        // Predicated region
        $region41: #{tpu_custom_call.1} parent=11 // pred_check
          %p458 = pneg %p256
        $region42: #{tpu_custom_call.1} parent=11 // pred_check_branch
          %460 = sbr.rel (%p458) target = $region44
        $region43: #{tpu_custom_call.1} parent=11 // pred_region
          %s462 = ssub.s32 64, 64
          %463 = vsyncadd [#allocation19], %s462
          %s464 = sshll.u32 [#allocation18], 4
          %s465 = int_to_ptr.vmem [resolvable:$true] %s464
          %470 = dma.hbm_to_vmem [thread:$0]  %s9, 64, %s465, [#allocation19], 16, 16, 1
        $region44: #{tpu_custom_call.1} parent=11 // pred_fallthru
          _
      $region12: #{tpu_custom_call.1} parent=5 // pred_fallthru
        _
      %p471 = scmp.lt.s32.totalorder %s36, 2
      // Predicated region
      $region45: #{tpu_custom_call.1} parent=5 // pred_check
        %p472 = pneg %p471
      $region46: #{tpu_custom_call.1} parent=5 // pred_check_branch
        %474 = sbr.rel (%p472) target = $region48
      $region47: #{tpu_custom_call.1} parent=5 // pred_region
        // Predicated region
        $region49: #{tpu_custom_call.1} parent=47 // pred_check
          %p475 = pneg %p56
        $region50: #{tpu_custom_call.1} parent=47 // pred_check_branch
          %477 = sbr.rel (%p475) target = $region52
        $region51: #{tpu_custom_call.1} parent=47 // pred_region
          %s478 = sand.u32 %s36, 1
          %s479 = scalar_lea.sflag [#allocation4], %s478
          %s480 = sand.u32 %s46, 1
          %s481 = scalar_lea.vmem [#allocation3], %s480
          %s483 = ssub.s32 16, 16
          %484 = vsyncadd %s479, %s483
          %s485 = smul.addr %s36, 16
          %s486 = scalar_lea.hbm %s0, %s485
          %s488 = sshll.u32 %s481, 4
          %s489 = int_to_ptr.vmem [resolvable:$true] %s488
          %491 = dma.hbm_to_vmem [thread:$0]  %s486, 16, %s489, %s479
        $region52: #{tpu_custom_call.1} parent=47 // pred_fallthru
          _
        // Predicated region
        $region53: #{tpu_custom_call.1} parent=47 // pred_check
          %p492 = pneg %p124
        $region54: #{tpu_custom_call.1} parent=47 // pred_check_branch
          %494 = sbr.rel (%p492) target = $region56
        $region55: #{tpu_custom_call.1} parent=47 // pred_region
          %s495 = sand.u32 %s36, 1
          %s496 = scalar_lea.sflag [#allocation10], %s495
          %s497 = sand.u32 %s114, 1
          %s498 = smul.addr %s497, 432
          %s499 = scalar_lea.vmem [#allocation9], %s498
          %s501 = ssub.s32 6912, 6912
          %502 = vsyncadd %s496, %s501
          %s503 = smul.addr %s36, 54
          %s504 = smul.addr %s503, 128
          %s505 = scalar_lea.hbm %s3, %s504
          %s506 = sshll.u32 %s499, 4
          %s507 = int_to_ptr.vmem [resolvable:$true] %s506
          %512 = dma.hbm_to_vmem [thread:$0]  %s505, 6912, %s507, %s496, 128, 128, 8
        $region56: #{tpu_custom_call.1} parent=47 // pred_fallthru
          _
        // Predicated region
        $region57: #{tpu_custom_call.1} parent=47 // pred_check
          %p513 = pneg %p276
        $region58: #{tpu_custom_call.1} parent=47 // pred_check_branch
          %515 = sbr.rel (%p513) target = $region60
        $region59: #{tpu_custom_call.1} parent=47 // pred_region
          %s516 = sand.u32 %s36, 1
          %s517 = scalar_lea.sflag [#allocation4], %s516
          %s518 = sand.u32 %s266, 1
          %s519 = smul.addr %s518, 256
          %s520 = scalar_lea.vmem [#allocation20], %s519
          %s522 = ssub.s32 4096, 4096
          %523 = vsyncadd %s517, %s522
          %s524 = smul.addr %s36, 32
          %s525 = smul.addr %s524, 128
          %s526 = scalar_lea.hbm %s10, %s525
          %s527 = sshll.u32 %s520, 4
          %s528 = int_to_ptr.vmem [resolvable:$true] %s527
          %533 = dma.hbm_to_vmem [thread:$0]  %s526, 4096, %s528, %s517, 128, 128, 8
        $region60: #{tpu_custom_call.1} parent=47 // pred_fallthru
          _
        // Predicated region
        $region61: #{tpu_custom_call.1} parent=47 // pred_check
          %p534 = pneg %p302
        $region62: #{tpu_custom_call.1} parent=47 // pred_check_branch
          %536 = sbr.rel (%p534) target = $region64
        $region63: #{tpu_custom_call.1} parent=47 // pred_region
          %s537 = sand.u32 %s36, 1
          %s538 = scalar_lea.sflag [#allocation10], %s537
          %s539 = sand.u32 %s292, 1
          %s540 = smul.addr %s539, 256
          %s541 = scalar_lea.vmem [#allocation21], %s540
          %s543 = ssub.s32 4096, 4096
          %544 = vsyncadd %s538, %s543
          %s545 = smul.addr %s36, 32
          %s546 = smul.addr %s545, 128
          %s547 = scalar_lea.hbm %s11, %s546
          %s548 = sshll.u32 %s541, 4
          %s549 = int_to_ptr.vmem [resolvable:$true] %s548
          %554 = dma.hbm_to_vmem [thread:$0]  %s547, 4096, %s549, %s538, 128, 128, 8
        $region64: #{tpu_custom_call.1} parent=47 // pred_fallthru
          _
      $region48: #{tpu_custom_call.1} parent=5 // pred_fallthru
        _
      %p555 = scmp.le.s32.totalorder 1, %s36
      %p556 = scmp.lt.s32.totalorder %s36, 3
      %p557 = pnand %p555, %p556
      %p558 = pneg %p557
      // Predicated region
      $region65: #{tpu_custom_call.1} parent=5 // pred_check
        _
      $region66: #{tpu_custom_call.1} parent=5 // pred_check_branch
        %560 = sbr.rel (%p557) target = $region68
      $region67: #{tpu_custom_call.1} parent=5 // pred_region
        %s561 = ssub.s32 %s36, 1
        %s562 = sand.u32 %s41, 1
        %s563 = scalar_lea.sflag [#allocation4], %s562
        %s564 = sand.u32 %s49, 1
        %s565 = scalar_lea.vmem [#allocation3], %s564
        // Predicated region
        $region69: #{tpu_custom_call.1} parent=67 // pred_check
          %p566 = pneg %p62
        $region70: #{tpu_custom_call.1} parent=67 // pred_check_branch
          %568 = sbr.rel (%p566) target = $region72
        $region71: #{tpu_custom_call.1} parent=67 // pred_region
          %569 = dma.done %s563, 16
        $region72: #{tpu_custom_call.1} parent=67 // pred_fallthru
          _
        // Predicated region
        $region73: #{tpu_custom_call.1} parent=67 // pred_check
          %p570 = pneg %p83
        $region74: #{tpu_custom_call.1} parent=67 // pred_check_branch
          %572 = sbr.rel (%p570) target = $region76
        $region75: #{tpu_custom_call.1} parent=67 // pred_region
          %573 = dma.done [#allocation7], 512
        $region76: #{tpu_custom_call.1} parent=67 // pred_fallthru
          _
        // Predicated region
        $region77: #{tpu_custom_call.1} parent=67 // pred_check
          %p574 = pneg %p104
        $region78: #{tpu_custom_call.1} parent=67 // pred_check_branch
          %576 = sbr.rel (%p574) target = $region80
        $region79: #{tpu_custom_call.1} parent=67 // pred_region
          %577 = dma.done [#allocation7], 16
        $region80: #{tpu_custom_call.1} parent=67 // pred_fallthru
          _
        %s578 = sand.u32 %s41, 1
        %s579 = scalar_lea.sflag [#allocation10], %s578
        %s580 = sand.u32 %s117, 1
        %s581 = smul.addr %s580, 432
        %s582 = scalar_lea.vmem [#allocation9], %s581
        // Predicated region
        $region81: #{tpu_custom_call.1} parent=67 // pred_check
          %p583 = pneg %p130
        $region82: #{tpu_custom_call.1} parent=67 // pred_check_branch
          %585 = sbr.rel (%p583) target = $region84
        $region83: #{tpu_custom_call.1} parent=67 // pred_region
          %586 = dma.done %s579, 6912
        $region84: #{tpu_custom_call.1} parent=67 // pred_fallthru
          _
        // Predicated region
        $region85: #{tpu_custom_call.1} parent=67 // pred_check
          %p587 = pneg %p151
        $region86: #{tpu_custom_call.1} parent=67 // pred_check_branch
          %589 = sbr.rel (%p587) target = $region88
        $region87: #{tpu_custom_call.1} parent=67 // pred_region
          %590 = dma.done [#allocation10], 640
        $region88: #{tpu_custom_call.1} parent=67 // pred_fallthru
          _
        // Predicated region
        $region89: #{tpu_custom_call.1} parent=67 // pred_check
          %p591 = pneg %p172
        $region90: #{tpu_custom_call.1} parent=67 // pred_check_branch
          %593 = sbr.rel (%p591) target = $region92
        $region91: #{tpu_custom_call.1} parent=67 // pred_region
          %594 = dma.done [#allocation13], 64
        $region92: #{tpu_custom_call.1} parent=67 // pred_fallthru
          _
        // Predicated region
        $region93: #{tpu_custom_call.1} parent=67 // pred_check
          %p595 = pneg %p193
        $region94: #{tpu_custom_call.1} parent=67 // pred_check_branch
          %597 = sbr.rel (%p595) target = $region96
        $region95: #{tpu_custom_call.1} parent=67 // pred_region
          %598 = dma.done [#allocation13], 1152
        $region96: #{tpu_custom_call.1} parent=67 // pred_fallthru
          _
        // Predicated region
        $region97: #{tpu_custom_call.1} parent=67 // pred_check
          %p599 = pneg %p214
        $region98: #{tpu_custom_call.1} parent=67 // pred_check_branch
          %601 = sbr.rel (%p599) target = $region100
        $region99: #{tpu_custom_call.1} parent=67 // pred_region
          %602 = dma.done [#allocation16], 128
        $region100: #{tpu_custom_call.1} parent=67 // pred_fallthru
          _
        // Predicated region
        $region101: #{tpu_custom_call.1} parent=67 // pred_check
          %p603 = pneg %p235
        $region102: #{tpu_custom_call.1} parent=67 // pred_check_branch
          %605 = sbr.rel (%p603) target = $region104
        $region103: #{tpu_custom_call.1} parent=67 // pred_region
          %606 = dma.done [#allocation16], 128
        $region104: #{tpu_custom_call.1} parent=67 // pred_fallthru
          _
        // Predicated region
        $region105: #{tpu_custom_call.1} parent=67 // pred_check
          %p607 = pneg %p256
        $region106: #{tpu_custom_call.1} parent=67 // pred_check_branch
          %609 = sbr.rel (%p607) target = $region108
        $region107: #{tpu_custom_call.1} parent=67 // pred_region
          %610 = dma.done [#allocation19], 64
        $region108: #{tpu_custom_call.1} parent=67 // pred_fallthru
          _
        %s611 = sand.u32 %s41, 1
        %s612 = scalar_lea.sflag [#allocation4], %s611
        %s613 = sand.u32 %s269, 1
        %s614 = smul.addr %s613, 256
        %s615 = scalar_lea.vmem [#allocation20], %s614
        // Predicated region
        $region109: #{tpu_custom_call.1} parent=67 // pred_check
          %p616 = pneg %p282
        $region110: #{tpu_custom_call.1} parent=67 // pred_check_branch
          %618 = sbr.rel (%p616) target = $region112
        $region111: #{tpu_custom_call.1} parent=67 // pred_region
          %619 = dma.done %s612, 4096
        $region112: #{tpu_custom_call.1} parent=67 // pred_fallthru
          _
        %s620 = sand.u32 %s41, 1
        %s621 = scalar_lea.sflag [#allocation10], %s620
        %s622 = sand.u32 %s295, 1
        %s623 = smul.addr %s622, 256
        %s624 = scalar_lea.vmem [#allocation21], %s623
        // Predicated region
        $region113: #{tpu_custom_call.1} parent=67 // pred_check
          %p625 = pneg %p308
        $region114: #{tpu_custom_call.1} parent=67 // pred_check_branch
          %627 = sbr.rel (%p625) target = $region116
        $region115: #{tpu_custom_call.1} parent=67 // pred_region
          %628 = dma.done %s621, 4096
        $region116: #{tpu_custom_call.1} parent=67 // pred_fallthru
          _
        %s629 = sand.u32 %s41, 1
        %s630 = scalar_lea.sflag [#allocation4], %s629
        %s631 = sand.u32 %s49, 1
        %s632 = scalar_lea.vmem [#allocation3], %s631
        %p633 = pneg %p62
        %p634 = pneg %p59
        %p635 = pneg %p83
        %p636 = pneg %p80
        %p637 = pneg %p104
        %p638 = pneg %p101
        %s639 = sand.u32 %s41, 1
        %s640 = scalar_lea.sflag [#allocation10], %s639
        %s641 = sand.u32 %s117, 1
        %s642 = smul.addr %s641, 432
        %s643 = scalar_lea.vmem [#allocation9], %s642
        %p644 = pneg %p130
        %p645 = pneg %p127
        %p646 = pneg %p151
        %p647 = pneg %p148
        %p648 = pneg %p172
        %p649 = pneg %p169
        %p650 = pneg %p193
        %p651 = pneg %p190
        %p652 = pneg %p214
        %p653 = pneg %p211
        %p654 = pneg %p235
        %p655 = pneg %p232
        %p656 = pneg %p256
        %p657 = pneg %p253
        %s658 = sand.u32 %s41, 1
        %s659 = scalar_lea.sflag [#allocation4], %s658
        %s660 = sand.u32 %s269, 1
        %s661 = smul.addr %s660, 256
        %s662 = scalar_lea.vmem [#allocation20], %s661
        %p663 = pneg %p282
        %p664 = pneg %p279
        %s665 = sand.u32 %s41, 1
        %s666 = scalar_lea.sflag [#allocation10], %s665
        %s667 = sand.u32 %s295, 1
        %s668 = smul.addr %s667, 256
        %s669 = scalar_lea.vmem [#allocation21], %s668
        %p670 = pneg %p308
        %p671 = pneg %p305
        %p672 = pneg %p334
        %p673 = pneg %p331
        %s674 = sand.u32 %s321, 1
        %s675 = scalar_lea.sflag [#allocation5], %s674
        %s676 = sand.u32 %s321, 1
        %s677 = smul.addr %s676, 256
        %s678 = scalar_lea.vmem [#allocation22], %s677
        %p679 = pneg %p360
        %p680 = pneg %p357
        %s681 = sand.u32 %s347, 1
        %s682 = scalar_lea.sflag [#allocation24], %s681
        %s683 = sand.u32 %s347, 1
        %s684 = smul.addr %s683, 256
        %s685 = scalar_lea.vmem [#allocation23], %s684
        %v686 = vld [vmem:[%s565] sm:$0x1]
        %v687 = vld [vmem:[#allocation6] sm:$0xff]
        %v688 = vld [vmem:[#allocation6 + $0x8] sm:$0xff]
        %v689 = vld [vmem:[#allocation6 + $0x10] sm:$0xff]
        %v690 = vld [vmem:[#allocation6 + $0x18] sm:$0xff]
        %v691 = vld [vmem:[#allocation8] sm:$0x1]
        %vm692 = vcmask 261120
        %v694 = vsel %vm692, %v686, 0
        %696 = vmatprep.subr.mxu0 0.0
        %697 = vmatpush1.msra.mxu0 %v687
        %698 = vmatprep.subr.mxu0 0.0
        %699 = vmatpush1.msra.mxu0 %v688
        %700 = vmatprep.subr.mxu0 0.0
        %701 = vmatpush1.msra.mxu0 %v689
        %702 = vmatprep.subr.mxu0 0.0
        %703 = vmatpush1.msra.mxu0 %v690
        %704 = vmatprep.subr.mxu0 0.0
        %705 = vmatpush1.msra.mxu0 0.0
        %706 = vmatprep.subr.mxu0 0.0
        %707 = vmatpush1.msra.mxu0 0.0
        %708 = vmatprep.subr.mxu0 0.0
        %709 = vmatpush1.msra.mxu0 0.0
        %710 = vmatprep.subr.mxu0 0.0
        %711 = vmatpush1.msra.mxu0 0.0
        %712 = vmatprep.subr.mxu0 0.0
        %713 = vmatpush1.msra.mxu0 0.0
        %714 = vmatprep.subr.mxu0 0.0
        %715 = vmatpush1.msra.mxu0 0.0
        %716 = vmatprep.subr.mxu0 0.0
        %717 = vmatpush1.msra.mxu0 0.0
        %718 = vmatprep.subr.mxu0 0.0
        %719 = vmatpush1.msra.mxu0 0.0
        %720 = vmatprep.subr.mxu0 0.0
        %721 = vmatpush1.msra.mxu0 0.0
        %722 = vmatprep.subr.mxu0 0.0
        %723 = vmatpush1.msra.mxu0 0.0
        %724 = vmatprep.subr.mxu0 0.0
        %725 = vmatpush1.msra.mxu0 0.0
        %726 = vmatprep.subr.mxu0 0.0
        %727 = vmatpush1.msra.mxu0 0.0
        %728 = vmatprep.subr.mxu0 0.0
        %729 = vmatpush1.msra.mxu0 0.0
        %730 = vmatprep.subr.mxu0 0.0
        %731 = vmatpush1.msra.mxu0 0.0
        %732 = vmatprep.subr.mxu0 0.0
        %733 = vmatpush1.msra.mxu0 0.0
        %734 = vmatprep.subr.mxu0 0.0
        %735 = vmatpush1.msra.mxu0 0.0
        %736 = vmatprep.subr.mxu0 0.0
        %737 = vmatpush1.msra.mxu0 0.0
        %738 = vmatprep.subr.mxu0 0.0
        %739 = vmatpush1.msra.mxu0 0.0
        %740 = vmatprep.subr.mxu0 0.0
        %741 = vmatpush1.msra.mxu0 0.0
        %742 = vmatprep.subr.mxu0 0.0
        %743 = vmatpush1.msra.mxu0 0.0
        %744 = vmatprep.subr.mxu0 0.0
        %745 = vmatpush1.msra.mxu0 0.0
        %746 = vmatprep.subr.mxu0 0.0
        %747 = vmatpush1.msra.mxu0 0.0
        %748 = vmatprep.subr.mxu0 0.0
        %749 = vmatpush1.msra.mxu0 0.0
        %750 = vmatprep.subr.mxu0 0.0
        %751 = vmatpush1.msra.mxu0 0.0
        %752 = vmatprep.subr.mxu0 0.0
        %753 = vmatpush1.msra.mxu0 0.0
        %754 = vmatprep.subr.mxu0 0.0
        %755 = vmatpush1.msra.mxu0 0.0
        %756 = vmatprep.subr.mxu0 0.0
        %757 = vmatpush1.msra.mxu0 0.0
        %758 = vmatprep.subr.mxu0 0.0
        %759 = vmatpush1.msra.mxu0 0.0
        %760 = vmatprep.mubr.f32.mxu0 0.0
        %761 = vmatmul.mubr.f32.gmra.mrb[0].mxu0 %v694
        %v762 = vpop.f32.mrb[0].mxu0
        %v763 = vadd.f32 %v691, %v762
        %v764 = vpop.f32.mrb[0].mxu0
        %765 = vdwg.mxu0
        %v766 = vld [vmem:[%s615] sm:$0xff]
        %v767 = vld [vmem:[%s615 + $0x8] sm:$0xff]
        %v768 = vld [vmem:[%s615 + $0x10] sm:$0xff]
        %v769 = vld [vmem:[%s615 + $0x18] sm:$0xff]
        %v770 = vld [vmem:[%s615 + $0x20] sm:$0xff]
        %v771 = vld [vmem:[%s615 + $0x28] sm:$0xff]
        %v772 = vld [vmem:[%s615 + $0x30] sm:$0xff]
        %v773 = vld [vmem:[%s615 + $0x38] sm:$0xff]
        %v774 = vld [vmem:[%s615 + $0x40] sm:$0xff]
        %v775 = vld [vmem:[%s615 + $0x48] sm:$0xff]
        %v776 = vld [vmem:[%s615 + $0x50] sm:$0xff]
        %v777 = vld [vmem:[%s615 + $0x58] sm:$0xff]
        %v778 = vld [vmem:[%s615 + $0x60] sm:$0xff]
        %v779 = vld [vmem:[%s615 + $0x68] sm:$0xff]
        %v780 = vld [vmem:[%s615 + $0x70] sm:$0xff]
        %v781 = vld [vmem:[%s615 + $0x78] sm:$0xff]
        %v782 = vld [vmem:[%s615 + $0x80] sm:$0xff]
        %v783 = vld [vmem:[%s615 + $0x88] sm:$0xff]
        %v784 = vld [vmem:[%s615 + $0x90] sm:$0xff]
        %v785 = vld [vmem:[%s615 + $0x98] sm:$0xff]
        %v786 = vld [vmem:[%s615 + $0xa0] sm:$0xff]
        %v787 = vld [vmem:[%s615 + $0xa8] sm:$0xff]
        %v788 = vld [vmem:[%s615 + $0xb0] sm:$0xff]
        %v789 = vld [vmem:[%s615 + $0xb8] sm:$0xff]
        %v790 = vld [vmem:[%s615 + $0xc0] sm:$0xff]
        %v791 = vld [vmem:[%s615 + $0xc8] sm:$0xff]
        %v792 = vld [vmem:[%s615 + $0xd0] sm:$0xff]
        %v793 = vld [vmem:[%s615 + $0xd8] sm:$0xff]
        %v794 = vld [vmem:[%s615 + $0xe0] sm:$0xff]
        %v795 = vld [vmem:[%s615 + $0xe8] sm:$0xff]
        %v796 = vld [vmem:[%s615 + $0xf0] sm:$0xff]
        %v797 = vld [vmem:[%s615 + $0xf8] sm:$0xff]
        %v798 = vld [vmem:[#allocation18] sm:$0x1]
        %s799 = scalar_lea.vmem [#allocation18], 1
        %v800 = vld [vmem:[%s799] sm:$0x1]
        %s801 = scalar_lea.vmem [#allocation18], 2
        %v802 = vld [vmem:[%s801] sm:$0x1]
        %s803 = scalar_lea.vmem [#allocation18], 3
        %v804 = vld [vmem:[%s803] sm:$0x1]
        %v805 = vmul.f32 %v763, %v763
        %v806 = vld [vmem:[#allocation12] sm:$0xf]
        %vm807 = vcmask 31744
        %v809 = vsel %vm807, %v805, 0
        %vm811 = vcmask 1043456
        %v813 = vsel %vm811, %v806, 0
        %815 = vmatprep.subr.mxu0 0.0
        %816 = vmatpush1.msra.mxu0 %v813
        %817 = vmatprep.subr.mxu0 0.0
        %818 = vmatpush1.msra.mxu0 0.0
        %819 = vmatprep.subr.mxu0 0.0
        %820 = vmatpush1.msra.mxu0 0.0
        %821 = vmatprep.subr.mxu0 0.0
        %822 = vmatpush1.msra.mxu0 0.0
        %823 = vmatprep.subr.mxu0 0.0
        %824 = vmatpush1.msra.mxu0 0.0
        %825 = vmatprep.subr.mxu0 0.0
        %826 = vmatpush1.msra.mxu0 0.0
        %827 = vmatprep.subr.mxu0 0.0
        %828 = vmatpush1.msra.mxu0 0.0
        %829 = vmatprep.subr.mxu0 0.0
        %830 = vmatpush1.msra.mxu0 0.0
        %831 = vmatprep.subr.mxu0 0.0
        %832 = vmatpush1.msra.mxu0 0.0
        %833 = vmatprep.subr.mxu0 0.0
        %834 = vmatpush1.msra.mxu0 0.0
        %835 = vmatprep.subr.mxu0 0.0
        %836 = vmatpush1.msra.mxu0 0.0
        %837 = vmatprep.subr.mxu0 0.0
        %838 = vmatpush1.msra.mxu0 0.0
        %839 = vmatprep.subr.mxu0 0.0
        %840 = vmatpush1.msra.mxu0 0.0
        %841 = vmatprep.subr.mxu0 0.0
        %842 = vmatpush1.msra.mxu0 0.0
        %843 = vmatprep.subr.mxu0 0.0
        %844 = vmatpush1.msra.mxu0 0.0
        %845 = vmatprep.subr.mxu0 0.0
        %846 = vmatpush1.msra.mxu0 0.0
        %847 = vmatprep.subr.mxu0 0.0
        %848 = vmatpush1.msra.mxu0 0.0
        %849 = vmatprep.subr.mxu0 0.0
        %850 = vmatpush1.msra.mxu0 0.0
        %851 = vmatprep.subr.mxu0 0.0
        %852 = vmatpush1.msra.mxu0 0.0
        %853 = vmatprep.subr.mxu0 0.0
        %854 = vmatpush1.msra.mxu0 0.0
        %855 = vmatprep.subr.mxu0 0.0
        %856 = vmatpush1.msra.mxu0 0.0
        %857 = vmatprep.subr.mxu0 0.0
        %858 = vmatpush1.msra.mxu0 0.0
        %859 = vmatprep.subr.mxu0 0.0
        %860 = vmatpush1.msra.mxu0 0.0
        %861 = vmatprep.subr.mxu0 0.0
        %862 = vmatpush1.msra.mxu0 0.0
        %863 = vmatprep.subr.mxu0 0.0
        %864 = vmatpush1.msra.mxu0 0.0
        %865 = vmatprep.subr.mxu0 0.0
        %866 = vmatpush1.msra.mxu0 0.0
        %867 = vmatprep.subr.mxu0 0.0
        %868 = vmatpush1.msra.mxu0 0.0
        %869 = vmatprep.subr.mxu0 0.0
        %870 = vmatpush1.msra.mxu0 0.0
        %871 = vmatprep.subr.mxu0 0.0
        %872 = vmatpush1.msra.mxu0 0.0
        %873 = vmatprep.subr.mxu0 0.0
        %874 = vmatpush1.msra.mxu0 0.0
        %875 = vmatprep.subr.mxu0 0.0
        %876 = vmatpush1.msra.mxu0 0.0
        %877 = vmatprep.subr.mxu0 0.0
        %878 = vmatpush1.msra.mxu0 0.0
        %879 = vmatprep.mubr.f32.mxu0 0.0
        %880 = vmatmul.mubr.f32.gmra.mrb[0].mxu0 %v809
        %v881 = vpop.f32.mrb[0].mxu0
        %v882 = vadd.f32 1e-08, %v881
        %v883 = vpop.f32.mrb[0].mxu0
        %884 = vdwg.mxu0
        %v885 = vrsqrt.pop %v882
        %v886 = vld [vmem:[%s582] sm:$0xff]
        %v887 = vld [vmem:[%s582 + $0x8] sm:$0xff]
        %v888 = vld [vmem:[%s582 + $0x10] sm:$0x3]
        %v889 = vld [vmem:[%s582 + $0x18] sm:$0xff]
        %v890 = vld [vmem:[%s582 + $0x20] sm:$0xff]
        %v891 = vld [vmem:[%s582 + $0x28] sm:$0x3]
        %v892 = vld [vmem:[%s582 + $0x30] sm:$0xff]
        %v893 = vld [vmem:[%s582 + $0x38] sm:$0xff]
        %v894 = vld [vmem:[%s582 + $0x40] sm:$0x3]
        %v895 = vld [vmem:[%s582 + $0x48] sm:$0xff]
        %v896 = vld [vmem:[%s582 + $0x50] sm:$0xff]
        %v897 = vld [vmem:[%s582 + $0x58] sm:$0x3]
        %v898 = vld [vmem:[%s582 + $0x60] sm:$0xff]
        %v899 = vld [vmem:[%s582 + $0x68] sm:$0xff]
        %v900 = vld [vmem:[%s582 + $0x70] sm:$0x3]
        %v901 = vld [vmem:[%s582 + $0x78] sm:$0xff]
        %v902 = vld [vmem:[%s582 + $0x80] sm:$0xff]
        %v903 = vld [vmem:[%s582 + $0x88] sm:$0x3]
        %v904 = vld [vmem:[%s582 + $0x90] sm:$0xff]
        %v905 = vld [vmem:[%s582 + $0x98] sm:$0xff]
        %v906 = vld [vmem:[%s582 + $0xa0] sm:$0x3]
        %v907 = vld [vmem:[%s582 + $0xa8] sm:$0xff]
        %v908 = vld [vmem:[%s582 + $0xb0] sm:$0xff]
        %v909 = vld [vmem:[%s582 + $0xb8] sm:$0x3]
        %v910 = vld [vmem:[%s582 + $0xc0] sm:$0xff]
        %v911 = vld [vmem:[%s582 + $0xc8] sm:$0xff]
        %v912 = vld [vmem:[%s582 + $0xd0] sm:$0x3]
        %v913 = vld [vmem:[%s582 + $0xd8] sm:$0xff]
        %v914 = vld [vmem:[%s582 + $0xe0] sm:$0xff]
        %v915 = vld [vmem:[%s582 + $0xe8] sm:$0x3]
        %v916 = vld [vmem:[%s582 + $0xf0] sm:$0xff]
        %v917 = vld [vmem:[%s582 + $0xf8] sm:$0xff]
        %v918 = vld [vmem:[%s582 + $0x100] sm:$0x3]
        %v919 = vld [vmem:[%s582 + $0x108] sm:$0xff]
        %v920 = vld [vmem:[%s582 + $0x110] sm:$0xff]
        %v921 = vld [vmem:[%s582 + $0x118] sm:$0x3]
        %v922 = vld [vmem:[%s582 + $0x120] sm:$0xff]
        %v923 = vld [vmem:[%s582 + $0x128] sm:$0xff]
        %v924 = vld [vmem:[%s582 + $0x130] sm:$0x3]
        %v925 = vld [vmem:[%s582 + $0x138] sm:$0xff]
        %v926 = vld [vmem:[%s582 + $0x140] sm:$0xff]
        %v927 = vld [vmem:[%s582 + $0x148] sm:$0x3]
        %v928 = vld [vmem:[%s582 + $0x150] sm:$0xff]
        %v929 = vld [vmem:[%s582 + $0x158] sm:$0xff]
        %v930 = vld [vmem:[%s582 + $0x160] sm:$0x3]
        %v931 = vld [vmem:[%s582 + $0x168] sm:$0xff]
        %v932 = vld [vmem:[%s582 + $0x170] sm:$0xff]
        %v933 = vld [vmem:[%s582 + $0x178] sm:$0x3]
        %v934 = vld [vmem:[%s582 + $0x180] sm:$0xff]
        %v935 = vld [vmem:[%s582 + $0x188] sm:$0xff]
        %v936 = vld [vmem:[%s582 + $0x190] sm:$0x3]
        %v937 = vld [vmem:[%s582 + $0x198] sm:$0xff]
        %v938 = vld [vmem:[%s582 + $0x1a0] sm:$0xff]
        %v939 = vld [vmem:[%s582 + $0x1a8] sm:$0x3]
        %v940 = vlaneseq
        %v941 = vshrl.u32 %v940, 7
        %v942 = vsub.s32 0, %v941
        %v943 = vrot.slane %v763, %v942
        %v944 = vmul.f32 %v886, %v943
        %v945 = vmul.f32 %v887, %v943
        %v946 = vmul.f32 %v888, %v943
        %v947 = vmul.f32 %v889, %v943
        %v948 = vmul.f32 %v890, %v943
        %v949 = vmul.f32 %v891, %v943
        %v950 = vmul.f32 %v892, %v943
        %v951 = vmul.f32 %v893, %v943
        %v952 = vmul.f32 %v894, %v943
        %v953 = vmul.f32 %v895, %v943
        %v954 = vmul.f32 %v896, %v943
        %v955 = vmul.f32 %v897, %v943
        %v956 = vmul.f32 %v898, %v943
        %v957 = vmul.f32 %v899, %v943
        %v958 = vmul.f32 %v900, %v943
        %v959 = vmul.f32 %v901, %v943
        %v960 = vmul.f32 %v902, %v943
        %v961 = vmul.f32 %v903, %v943
        %v962 = vmul.f32 %v904, %v943
        %v963 = vmul.f32 %v905, %v943
        %v964 = vmul.f32 %v906, %v943
        %v965 = vmul.f32 %v907, %v943
        %v966 = vmul.f32 %v908, %v943
        %v967 = vmul.f32 %v909, %v943
        %v968 = vmul.f32 %v910, %v943
        %v969 = vmul.f32 %v911, %v943
        %v970 = vmul.f32 %v912, %v943
        %v971 = vmul.f32 %v913, %v943
        %v972 = vmul.f32 %v914, %v943
        %v973 = vmul.f32 %v915, %v943
        %v974 = vmul.f32 %v916, %v943
        %v975 = vmul.f32 %v917, %v943
        %v976 = vmul.f32 %v918, %v943
        %v977 = vmul.f32 %v919, %v943
        %v978 = vmul.f32 %v920, %v943
        %v979 = vmul.f32 %v921, %v943
        %v980 = vmul.f32 %v922, %v943
        %v981 = vmul.f32 %v923, %v943
        %v982 = vmul.f32 %v924, %v943
        %v983 = vmul.f32 %v925, %v943
        %v984 = vmul.f32 %v926, %v943
        %v985 = vmul.f32 %v927, %v943
        %v986 = vmul.f32 %v928, %v943
        %v987 = vmul.f32 %v929, %v943
        %v988 = vmul.f32 %v930, %v943
        %v989 = vmul.f32 %v931, %v943
        %v990 = vmul.f32 %v932, %v943
        %v991 = vmul.f32 %v933, %v943
        %v992 = vmul.f32 %v934, %v943
        %v993 = vmul.f32 %v935, %v943
        %v994 = vmul.f32 %v936, %v943
        %v995 = vmul.f32 %v937, %v943
        %v996 = vmul.f32 %v938, %v943
        %v997 = vmul.f32 %v939, %v943
        %vm1046 = vcmask 1046528
        %v1047 = vrot.slane %v944, 1
        %v1048 = vrot.slane %v945, 1
        %v1049 = vsel %vm1046, %v1047, %v1048
        %v1050 = vrot.slane %v946, 1
        %v1051 = vsel %vm1046, %v1048, %v1050
        %v1052 = vrot.slane %v947, 1
        %v1053 = vrot.slane %v948, 1
        %v1054 = vsel %vm1046, %v1052, %v1053
        %v1055 = vrot.slane %v949, 1
        %v1056 = vsel %vm1046, %v1053, %v1055
        %v1057 = vrot.slane %v950, 1
        %v1058 = vrot.slane %v951, 1
        %v1059 = vsel %vm1046, %v1057, %v1058
        %v1060 = vrot.slane %v952, 1
        %v1061 = vsel %vm1046, %v1058, %v1060
        %v1062 = vrot.slane %v953, 1
        %v1063 = vrot.slane %v954, 1
        %v1064 = vsel %vm1046, %v1062, %v1063
        %v1065 = vrot.slane %v955, 1
        %v1066 = vsel %vm1046, %v1063, %v1065
        %v1067 = vrot.slane %v956, 1
        %v1068 = vrot.slane %v957, 1
        %v1069 = vsel %vm1046, %v1067, %v1068
        %v1070 = vrot.slane %v958, 1
        %v1071 = vsel %vm1046, %v1068, %v1070
        %v1072 = vrot.slane %v959, 1
        %v1073 = vrot.slane %v960, 1
        %v1074 = vsel %vm1046, %v1072, %v1073
        %v1075 = vrot.slane %v961, 1
        %v1076 = vsel %vm1046, %v1073, %v1075
        %v1077 = vrot.slane %v962, 1
        %v1078 = vrot.slane %v963, 1
        %v1079 = vsel %vm1046, %v1077, %v1078
        %v1080 = vrot.slane %v964, 1
        %v1081 = vsel %vm1046, %v1078, %v1080
        %v1082 = vrot.slane %v965, 1
        %v1083 = vrot.slane %v966, 1
        %v1084 = vsel %vm1046, %v1082, %v1083
        %v1085 = vrot.slane %v967, 1
        %v1086 = vsel %vm1046, %v1083, %v1085
        %v1087 = vrot.slane %v968, 1
        %v1088 = vrot.slane %v969, 1
        %v1089 = vsel %vm1046, %v1087, %v1088
        %v1090 = vrot.slane %v970, 1
        %v1091 = vsel %vm1046, %v1088, %v1090
        %v1092 = vrot.slane %v971, 1
        %v1093 = vrot.slane %v972, 1
        %v1094 = vsel %vm1046, %v1092, %v1093
        %v1095 = vrot.slane %v973, 1
        %v1096 = vsel %vm1046, %v1093, %v1095
        %v1097 = vrot.slane %v974, 1
        %v1098 = vrot.slane %v975, 1
        %v1099 = vsel %vm1046, %v1097, %v1098
        %v1100 = vrot.slane %v976, 1
        %v1101 = vsel %vm1046, %v1098, %v1100
        %v1102 = vrot.slane %v977, 1
        %v1103 = vrot.slane %v978, 1
        %v1104 = vsel %vm1046, %v1102, %v1103
        %v1105 = vrot.slane %v979, 1
        %v1106 = vsel %vm1046, %v1103, %v1105
        %v1107 = vrot.slane %v980, 1
        %v1108 = vrot.slane %v981, 1
        %v1109 = vsel %vm1046, %v1107, %v1108
        %v1110 = vrot.slane %v982, 1
        %v1111 = vsel %vm1046, %v1108, %v1110
        %v1112 = vrot.slane %v983, 1
        %v1113 = vrot.slane %v984, 1
        %v1114 = vsel %vm1046, %v1112, %v1113
        %v1115 = vrot.slane %v985, 1
        %v1116 = vsel %vm1046, %v1113, %v1115
        %v1117 = vrot.slane %v986, 1
        %v1118 = vrot.slane %v987, 1
        %v1119 = vsel %vm1046, %v1117, %v1118
        %v1120 = vrot.slane %v988, 1
        %v1121 = vsel %vm1046, %v1118, %v1120
        %v1122 = vrot.slane %v989, 1
        %v1123 = vrot.slane %v990, 1
        %v1124 = vsel %vm1046, %v1122, %v1123
        %v1125 = vrot.slane %v991, 1
        %v1126 = vsel %vm1046, %v1123, %v1125
        %vm1127 = vcmask 1045504
        %v1128 = vrot.slane %v944, 2
        %v1129 = vrot.slane %v945, 2
        %v1130 = vsel %vm1127, %v1128, %v1129
        %v1131 = vrot.slane %v946, 2
        %v1132 = vsel %vm1127, %v1129, %v1131
        %v1133 = vrot.slane %v947, 2
        %v1134 = vrot.slane %v948, 2
        %v1135 = vsel %vm1127, %v1133, %v1134
        %v1136 = vrot.slane %v949, 2
        %v1137 = vsel %vm1127, %v1134, %v1136
        %v1138 = vrot.slane %v950, 2
        %v1139 = vrot.slane %v951, 2
        %v1140 = vsel %vm1127, %v1138, %v1139
        %v1141 = vrot.slane %v952, 2
        %v1142 = vsel %vm1127, %v1139, %v1141
        %v1143 = vrot.slane %v953, 2
        %v1144 = vrot.slane %v954, 2
        %v1145 = vsel %vm1127, %v1143, %v1144
        %v1146 = vrot.slane %v955, 2
        %v1147 = vsel %vm1127, %v1144, %v1146
        %v1148 = vrot.slane %v956, 2
        %v1149 = vrot.slane %v957, 2
        %v1150 = vsel %vm1127, %v1148, %v1149
        %v1151 = vrot.slane %v958, 2
        %v1152 = vsel %vm1127, %v1149, %v1151
        %v1153 = vrot.slane %v959, 2
        %v1154 = vrot.slane %v960, 2
        %v1155 = vsel %vm1127, %v1153, %v1154
        %v1156 = vrot.slane %v961, 2
        %v1157 = vsel %vm1127, %v1154, %v1156
        %v1158 = vrot.slane %v962, 2
        %v1159 = vrot.slane %v963, 2
        %v1160 = vsel %vm1127, %v1158, %v1159
        %v1161 = vrot.slane %v964, 2
        %v1162 = vsel %vm1127, %v1159, %v1161
        %v1163 = vrot.slane %v965, 2
        %v1164 = vrot.slane %v966, 2
        %v1165 = vsel %vm1127, %v1163, %v1164
        %v1166 = vrot.slane %v967, 2
        %v1167 = vsel %vm1127, %v1164, %v1166
        %v1168 = vrot.slane %v968, 2
        %v1169 = vrot.slane %v969, 2
        %v1170 = vsel %vm1127, %v1168, %v1169
        %v1171 = vrot.slane %v970, 2
        %v1172 = vsel %vm1127, %v1169, %v1171
        %v1173 = vrot.slane %v971, 2
        %v1174 = vrot.slane %v972, 2
        %v1175 = vsel %vm1127, %v1173, %v1174
        %v1176 = vrot.slane %v973, 2
        %v1177 = vsel %vm1127, %v1174, %v1176
        %v1178 = vrot.slane %v974, 2
        %v1179 = vrot.slane %v975, 2
        %v1180 = vsel %vm1127, %v1178, %v1179
        %v1181 = vrot.slane %v976, 2
        %v1182 = vsel %vm1127, %v1179, %v1181
        %v1183 = vrot.slane %v977, 2
        %v1184 = vrot.slane %v978, 2
        %v1185 = vsel %vm1127, %v1183, %v1184
        %v1186 = vrot.slane %v979, 2
        %v1187 = vsel %vm1127, %v1184, %v1186
        %v1188 = vrot.slane %v980, 2
        %v1189 = vrot.slane %v981, 2
        %v1190 = vsel %vm1127, %v1188, %v1189
        %v1191 = vrot.slane %v982, 2
        %v1192 = vsel %vm1127, %v1189, %v1191
        %v1193 = vrot.slane %v983, 2
        %v1194 = vrot.slane %v984, 2
        %v1195 = vsel %vm1127, %v1193, %v1194
        %v1196 = vrot.slane %v985, 2
        %v1197 = vsel %vm1127, %v1194, %v1196
        %v1198 = vrot.slane %v986, 2
        %v1199 = vrot.slane %v987, 2
        %v1200 = vsel %vm1127, %v1198, %v1199
        %v1201 = vrot.slane %v988, 2
        %v1202 = vsel %vm1127, %v1199, %v1201
        %v1203 = vrot.slane %v989, 2
        %v1204 = vrot.slane %v990, 2
        %v1205 = vsel %vm1127, %v1203, %v1204
        %v1206 = vrot.slane %v991, 2
        %v1207 = vsel %vm1127, %v1204, %v1206
        %v1211 = vrot.slane %v992, 1
        %v1212 = vrot.slane %v993, 1
        %v1213 = vsel %vm1046, %v1211, %v1212
        %v1214 = vrot.slane %v994, 1
        %v1215 = vsel %vm1046, %v1212, %v1214
        %v1216 = vrot.slane %v992, 2
        %v1217 = vrot.slane %v993, 2
        %v1218 = vsel %vm1127, %v1216, %v1217
        %v1219 = vrot.slane %v994, 2
        %v1220 = vsel %vm1127, %v1217, %v1219
        %v1224 = vrot.slane %v995, 1
        %v1225 = vrot.slane %v996, 1
        %v1226 = vsel %vm1046, %v1224, %v1225
        %v1227 = vrot.slane %v997, 1
        %v1228 = vsel %vm1046, %v1225, %v1227
        %v1229 = vrot.slane %v995, 2
        %v1230 = vrot.slane %v996, 2
        %v1231 = vsel %vm1127, %v1229, %v1230
        %v1232 = vrot.slane %v997, 2
        %v1233 = vsel %vm1127, %v1230, %v1232
        %1234 = vrot.lane.b32.xlu0 %v1049, 4
        %v1235 = vpop.permute.xlu0 %1234
        %1236 = vrot.lane.b32.xlu0 %v1051, 4
        %v1237 = vpop.permute.xlu0 %1236
        %1238 = vrot.lane.b32.xlu0 %v1054, 4
        %v1239 = vpop.permute.xlu0 %1238
        %1240 = vrot.lane.b32.xlu0 %v1056, 4
        %v1241 = vpop.permute.xlu0 %1240
        %1242 = vrot.lane.b32.xlu0 %v1059, 4
        %v1243 = vpop.permute.xlu0 %1242
        %1244 = vrot.lane.b32.xlu0 %v1061, 4
        %v1245 = vpop.permute.xlu0 %1244
        %1246 = vrot.lane.b32.xlu0 %v1064, 4
        %v1247 = vpop.permute.xlu0 %1246
        %1248 = vrot.lane.b32.xlu0 %v1066, 4
        %v1249 = vpop.permute.xlu0 %1248
        %1250 = vrot.lane.b32.xlu0 %v1069, 4
        %v1251 = vpop.permute.xlu0 %1250
        %1252 = vrot.lane.b32.xlu0 %v1071, 4
        %v1253 = vpop.permute.xlu0 %1252
        %1254 = vrot.lane.b32.xlu0 %v1074, 4
        %v1255 = vpop.permute.xlu0 %1254
        %1256 = vrot.lane.b32.xlu0 %v1076, 4
        %v1257 = vpop.permute.xlu0 %1256
        %1258 = vrot.lane.b32.xlu0 %v1079, 4
        %v1259 = vpop.permute.xlu0 %1258
        %1260 = vrot.lane.b32.xlu0 %v1081, 4
        %v1261 = vpop.permute.xlu0 %1260
        %1262 = vrot.lane.b32.xlu0 %v1084, 4
        %v1263 = vpop.permute.xlu0 %1262
        %1264 = vrot.lane.b32.xlu0 %v1086, 4
        %v1265 = vpop.permute.xlu0 %1264
        %1266 = vrot.lane.b32.xlu0 %v1089, 4
        %v1267 = vpop.permute.xlu0 %1266
        %1268 = vrot.lane.b32.xlu0 %v1091, 4
        %v1269 = vpop.permute.xlu0 %1268
        %1270 = vrot.lane.b32.xlu0 %v1094, 4
        %v1271 = vpop.permute.xlu0 %1270
        %1272 = vrot.lane.b32.xlu0 %v1096, 4
        %v1273 = vpop.permute.xlu0 %1272
        %1274 = vrot.lane.b32.xlu0 %v1099, 4
        %v1275 = vpop.permute.xlu0 %1274
        %1276 = vrot.lane.b32.xlu0 %v1101, 4
        %v1277 = vpop.permute.xlu0 %1276
        %1278 = vrot.lane.b32.xlu0 %v1104, 4
        %v1279 = vpop.permute.xlu0 %1278
        %1280 = vrot.lane.b32.xlu0 %v1106, 4
        %v1281 = vpop.permute.xlu0 %1280
        %1282 = vrot.lane.b32.xlu0 %v1109, 4
        %v1283 = vpop.permute.xlu0 %1282
        %1284 = vrot.lane.b32.xlu0 %v1111, 4
        %v1285 = vpop.permute.xlu0 %1284
        %1286 = vrot.lane.b32.xlu0 %v1114, 4
        %v1287 = vpop.permute.xlu0 %1286
        %1288 = vrot.lane.b32.xlu0 %v1116, 4
        %v1289 = vpop.permute.xlu0 %1288
        %1290 = vrot.lane.b32.xlu0 %v1119, 4
        %v1291 = vpop.permute.xlu0 %1290
        %1292 = vrot.lane.b32.xlu0 %v1121, 4
        %v1293 = vpop.permute.xlu0 %1292
        %1294 = vrot.lane.b32.xlu0 %v1124, 4
        %v1295 = vpop.permute.xlu0 %1294
        %1296 = vrot.lane.b32.xlu0 %v1126, 4
        %v1297 = vpop.permute.xlu0 %1296
        %1330 = vrot.lane.b32.xlu0 %v1130, 8
        %v1331 = vpop.permute.xlu0 %1330
        %1332 = vrot.lane.b32.xlu0 %v1132, 8
        %v1333 = vpop.permute.xlu0 %1332
        %1334 = vrot.lane.b32.xlu0 %v1135, 8
        %v1335 = vpop.permute.xlu0 %1334
        %1336 = vrot.lane.b32.xlu0 %v1137, 8
        %v1337 = vpop.permute.xlu0 %1336
        %1338 = vrot.lane.b32.xlu0 %v1140, 8
        %v1339 = vpop.permute.xlu0 %1338
        %1340 = vrot.lane.b32.xlu0 %v1142, 8
        %v1341 = vpop.permute.xlu0 %1340
        %1342 = vrot.lane.b32.xlu0 %v1145, 8
        %v1343 = vpop.permute.xlu0 %1342
        %1344 = vrot.lane.b32.xlu0 %v1147, 8
        %v1345 = vpop.permute.xlu0 %1344
        %1346 = vrot.lane.b32.xlu0 %v1150, 8
        %v1347 = vpop.permute.xlu0 %1346
        %1348 = vrot.lane.b32.xlu0 %v1152, 8
        %v1349 = vpop.permute.xlu0 %1348
        %1350 = vrot.lane.b32.xlu0 %v1155, 8
        %v1351 = vpop.permute.xlu0 %1350
        %1352 = vrot.lane.b32.xlu0 %v1157, 8
        %v1353 = vpop.permute.xlu0 %1352
        %1354 = vrot.lane.b32.xlu0 %v1160, 8
        %v1355 = vpop.permute.xlu0 %1354
        %1356 = vrot.lane.b32.xlu0 %v1162, 8
        %v1357 = vpop.permute.xlu0 %1356
        %1358 = vrot.lane.b32.xlu0 %v1165, 8
        %v1359 = vpop.permute.xlu0 %1358
        %1360 = vrot.lane.b32.xlu0 %v1167, 8
        %v1361 = vpop.permute.xlu0 %1360
        %1362 = vrot.lane.b32.xlu0 %v1170, 8
        %v1363 = vpop.permute.xlu0 %1362
        %1364 = vrot.lane.b32.xlu0 %v1172, 8
        %v1365 = vpop.permute.xlu0 %1364
        %1366 = vrot.lane.b32.xlu0 %v1175, 8
        %v1367 = vpop.permute.xlu0 %1366
        %1368 = vrot.lane.b32.xlu0 %v1177, 8
        %v1369 = vpop.permute.xlu0 %1368
        %1370 = vrot.lane.b32.xlu0 %v1180, 8
        %v1371 = vpop.permute.xlu0 %1370
        %1372 = vrot.lane.b32.xlu0 %v1182, 8
        %v1373 = vpop.permute.xlu0 %1372
        %1374 = vrot.lane.b32.xlu0 %v1185, 8
        %v1375 = vpop.permute.xlu0 %1374
        %1376 = vrot.lane.b32.xlu0 %v1187, 8
        %v1377 = vpop.permute.xlu0 %1376
        %1378 = vrot.lane.b32.xlu0 %v1190, 8
        %v1379 = vpop.permute.xlu0 %1378
        %1380 = vrot.lane.b32.xlu0 %v1192, 8
        %v1381 = vpop.permute.xlu0 %1380
        %1382 = vrot.lane.b32.xlu0 %v1195, 8
        %v1383 = vpop.permute.xlu0 %1382
        %1384 = vrot.lane.b32.xlu0 %v1197, 8
        %v1385 = vpop.permute.xlu0 %1384
        %1386 = vrot.lane.b32.xlu0 %v1200, 8
        %v1387 = vpop.permute.xlu0 %1386
        %1388 = vrot.lane.b32.xlu0 %v1202, 8
        %v1389 = vpop.permute.xlu0 %1388
        %1390 = vrot.lane.b32.xlu0 %v1205, 8
        %v1391 = vpop.permute.xlu0 %1390
        %1392 = vrot.lane.b32.xlu0 %v1207, 8
        %v1393 = vpop.permute.xlu0 %1392
        %1426 = vrot.lane.b32.xlu0 %v947, 12
        %v1427 = vpop.permute.xlu0 %1426
        %1428 = vrot.lane.b32.xlu0 %v948, 12
        %v1429 = vpop.permute.xlu0 %1428
        %1430 = vrot.lane.b32.xlu0 %v950, 12
        %v1431 = vpop.permute.xlu0 %1430
        %1432 = vrot.lane.b32.xlu0 %v951, 12
        %v1433 = vpop.permute.xlu0 %1432
        %1434 = vrot.lane.b32.xlu0 %v953, 12
        %v1435 = vpop.permute.xlu0 %1434
        %1436 = vrot.lane.b32.xlu0 %v954, 12
        %v1437 = vpop.permute.xlu0 %1436
        %1438 = vrot.lane.b32.xlu0 %v956, 12
        %v1439 = vpop.permute.xlu0 %1438
        %1440 = vrot.lane.b32.xlu0 %v957, 12
        %v1441 = vpop.permute.xlu0 %1440
        %1442 = vrot.lane.b32.xlu0 %v959, 12
        %v1443 = vpop.permute.xlu0 %1442
        %1444 = vrot.lane.b32.xlu0 %v960, 12
        %v1445 = vpop.permute.xlu0 %1444
        %1446 = vrot.lane.b32.xlu0 %v962, 12
        %v1447 = vpop.permute.xlu0 %1446
        %1448 = vrot.lane.b32.xlu0 %v963, 12
        %v1449 = vpop.permute.xlu0 %1448
        %1450 = vrot.lane.b32.xlu0 %v965, 12
        %v1451 = vpop.permute.xlu0 %1450
        %1452 = vrot.lane.b32.xlu0 %v966, 12
        %v1453 = vpop.permute.xlu0 %1452
        %1454 = vrot.lane.b32.xlu0 %v968, 12
        %v1455 = vpop.permute.xlu0 %1454
        %1456 = vrot.lane.b32.xlu0 %v969, 12
        %v1457 = vpop.permute.xlu0 %1456
        %1458 = vrot.lane.b32.xlu0 %v971, 12
        %v1459 = vpop.permute.xlu0 %1458
        %1460 = vrot.lane.b32.xlu0 %v972, 12
        %v1461 = vpop.permute.xlu0 %1460
        %1462 = vrot.lane.b32.xlu0 %v974, 12
        %v1463 = vpop.permute.xlu0 %1462
        %1464 = vrot.lane.b32.xlu0 %v975, 12
        %v1465 = vpop.permute.xlu0 %1464
        %1466 = vrot.lane.b32.xlu0 %v977, 12
        %v1467 = vpop.permute.xlu0 %1466
        %1468 = vrot.lane.b32.xlu0 %v978, 12
        %v1469 = vpop.permute.xlu0 %1468
        %1470 = vrot.lane.b32.xlu0 %v980, 12
        %v1471 = vpop.permute.xlu0 %1470
        %1472 = vrot.lane.b32.xlu0 %v981, 12
        %v1473 = vpop.permute.xlu0 %1472
        %1474 = vrot.lane.b32.xlu0 %v983, 12
        %v1475 = vpop.permute.xlu0 %1474
        %1476 = vrot.lane.b32.xlu0 %v984, 12
        %v1477 = vpop.permute.xlu0 %1476
        %1478 = vrot.lane.b32.xlu0 %v986, 12
        %v1479 = vpop.permute.xlu0 %1478
        %1480 = vrot.lane.b32.xlu0 %v987, 12
        %v1481 = vpop.permute.xlu0 %1480
        %1482 = vrot.lane.b32.xlu0 %v989, 12
        %v1483 = vpop.permute.xlu0 %1482
        %1484 = vrot.lane.b32.xlu0 %v990, 12
        %v1485 = vpop.permute.xlu0 %1484
        %1486 = vrot.lane.b32.xlu0 %v992, 12
        %v1487 = vpop.permute.xlu0 %1486
        %1488 = vrot.lane.b32.xlu0 %v993, 12
        %v1489 = vpop.permute.xlu0 %1488
        %1522 = vrot.lane.b32.xlu0 %v1054, 16
        %v1523 = vpop.permute.xlu0 %1522
        %1524 = vrot.lane.b32.xlu0 %v1056, 16
        %v1525 = vpop.permute.xlu0 %1524
        %1526 = vrot.lane.b32.xlu0 %v1059, 16
        %v1527 = vpop.permute.xlu0 %1526
        %1528 = vrot.lane.b32.xlu0 %v1061, 16
        %v1529 = vpop.permute.xlu0 %1528
        %1530 = vrot.lane.b32.xlu0 %v1064, 16
        %v1531 = vpop.permute.xlu0 %1530
        %1532 = vrot.lane.b32.xlu0 %v1066, 16
        %v1533 = vpop.permute.xlu0 %1532
        %1534 = vrot.lane.b32.xlu0 %v1069, 16
        %v1535 = vpop.permute.xlu0 %1534
        %1536 = vrot.lane.b32.xlu0 %v1071, 16
        %v1537 = vpop.permute.xlu0 %1536
        %1538 = vrot.lane.b32.xlu0 %v1074, 16
        %v1539 = vpop.permute.xlu0 %1538
        %1540 = vrot.lane.b32.xlu0 %v1076, 16
        %v1541 = vpop.permute.xlu0 %1540
        %1542 = vrot.lane.b32.xlu0 %v1079, 16
        %v1543 = vpop.permute.xlu0 %1542
        %1544 = vrot.lane.b32.xlu0 %v1081, 16
        %v1545 = vpop.permute.xlu0 %1544
        %1546 = vrot.lane.b32.xlu0 %v1084, 16
        %v1547 = vpop.permute.xlu0 %1546
        %1548 = vrot.lane.b32.xlu0 %v1086, 16
        %v1549 = vpop.permute.xlu0 %1548
        %1550 = vrot.lane.b32.xlu0 %v1089, 16
        %v1551 = vpop.permute.xlu0 %1550
        %1552 = vrot.lane.b32.xlu0 %v1091, 16
        %v1553 = vpop.permute.xlu0 %1552
        %1554 = vrot.lane.b32.xlu0 %v1094, 16
        %v1555 = vpop.permute.xlu0 %1554
        %1556 = vrot.lane.b32.xlu0 %v1096, 16
        %v1557 = vpop.permute.xlu0 %1556
        %1558 = vrot.lane.b32.xlu0 %v1099, 16
        %v1559 = vpop.permute.xlu0 %1558
        %1560 = vrot.lane.b32.xlu0 %v1101, 16
        %v1561 = vpop.permute.xlu0 %1560
        %1562 = vrot.lane.b32.xlu0 %v1104, 16
        %v1563 = vpop.permute.xlu0 %1562
        %1564 = vrot.lane.b32.xlu0 %v1106, 16
        %v1565 = vpop.permute.xlu0 %1564
        %1566 = vrot.lane.b32.xlu0 %v1109, 16
        %v1567 = vpop.permute.xlu0 %1566
        %1568 = vrot.lane.b32.xlu0 %v1111, 16
        %v1569 = vpop.permute.xlu0 %1568
        %1570 = vrot.lane.b32.xlu0 %v1114, 16
        %v1571 = vpop.permute.xlu0 %1570
        %1572 = vrot.lane.b32.xlu0 %v1116, 16
        %v1573 = vpop.permute.xlu0 %1572
        %1574 = vrot.lane.b32.xlu0 %v1119, 16
        %v1575 = vpop.permute.xlu0 %1574
        %1576 = vrot.lane.b32.xlu0 %v1121, 16
        %v1577 = vpop.permute.xlu0 %1576
        %1578 = vrot.lane.b32.xlu0 %v1124, 16
        %v1579 = vpop.permute.xlu0 %1578
        %1580 = vrot.lane.b32.xlu0 %v1126, 16
        %v1581 = vpop.permute.xlu0 %1580
        %1582 = vrot.lane.b32.xlu0 %v1213, 16
        %v1583 = vpop.permute.xlu0 %1582
        %1584 = vrot.lane.b32.xlu0 %v1215, 16
        %v1585 = vpop.permute.xlu0 %1584
        %1618 = vrot.lane.b32.xlu0 %v1135, 20
        %v1619 = vpop.permute.xlu0 %1618
        %1620 = vrot.lane.b32.xlu0 %v1137, 20
        %v1621 = vpop.permute.xlu0 %1620
        %1622 = vrot.lane.b32.xlu0 %v1140, 20
        %v1623 = vpop.permute.xlu0 %1622
        %1624 = vrot.lane.b32.xlu0 %v1142, 20
        %v1625 = vpop.permute.xlu0 %1624
        %1626 = vrot.lane.b32.xlu0 %v1145, 20
        %v1627 = vpop.permute.xlu0 %1626
        %1628 = vrot.lane.b32.xlu0 %v1147, 20
        %v1629 = vpop.permute.xlu0 %1628
        %1630 = vrot.lane.b32.xlu0 %v1150, 20
        %v1631 = vpop.permute.xlu0 %1630
        %1632 = vrot.lane.b32.xlu0 %v1152, 20
        %v1633 = vpop.permute.xlu0 %1632
        %1634 = vrot.lane.b32.xlu0 %v1155, 20
        %v1635 = vpop.permute.xlu0 %1634
        %1636 = vrot.lane.b32.xlu0 %v1157, 20
        %v1637 = vpop.permute.xlu0 %1636
        %1638 = vrot.lane.b32.xlu0 %v1160, 20
        %v1639 = vpop.permute.xlu0 %1638
        %1640 = vrot.lane.b32.xlu0 %v1162, 20
        %v1641 = vpop.permute.xlu0 %1640
        %1642 = vrot.lane.b32.xlu0 %v1165, 20
        %v1643 = vpop.permute.xlu0 %1642
        %1644 = vrot.lane.b32.xlu0 %v1167, 20
        %v1645 = vpop.permute.xlu0 %1644
        %1646 = vrot.lane.b32.xlu0 %v1170, 20
        %v1647 = vpop.permute.xlu0 %1646
        %1648 = vrot.lane.b32.xlu0 %v1172, 20
        %v1649 = vpop.permute.xlu0 %1648
        %1650 = vrot.lane.b32.xlu0 %v1175, 20
        %v1651 = vpop.permute.xlu0 %1650
        %1652 = vrot.lane.b32.xlu0 %v1177, 20
        %v1653 = vpop.permute.xlu0 %1652
        %1654 = vrot.lane.b32.xlu0 %v1180, 20
        %v1655 = vpop.permute.xlu0 %1654
        %1656 = vrot.lane.b32.xlu0 %v1182, 20
        %v1657 = vpop.permute.xlu0 %1656
        %1658 = vrot.lane.b32.xlu0 %v1185, 20
        %v1659 = vpop.permute.xlu0 %1658
        %1660 = vrot.lane.b32.xlu0 %v1187, 20
        %v1661 = vpop.permute.xlu0 %1660
        %1662 = vrot.lane.b32.xlu0 %v1190, 20
        %v1663 = vpop.permute.xlu0 %1662
        %1664 = vrot.lane.b32.xlu0 %v1192, 20
        %v1665 = vpop.permute.xlu0 %1664
        %1666 = vrot.lane.b32.xlu0 %v1195, 20
        %v1667 = vpop.permute.xlu0 %1666
        %1668 = vrot.lane.b32.xlu0 %v1197, 20
        %v1669 = vpop.permute.xlu0 %1668
        %1670 = vrot.lane.b32.xlu0 %v1200, 20
        %v1671 = vpop.permute.xlu0 %1670
        %1672 = vrot.lane.b32.xlu0 %v1202, 20
        %v1673 = vpop.permute.xlu0 %1672
        %1674 = vrot.lane.b32.xlu0 %v1205, 20
        %v1675 = vpop.permute.xlu0 %1674
        %1676 = vrot.lane.b32.xlu0 %v1207, 20
        %v1677 = vpop.permute.xlu0 %1676
        %1678 = vrot.lane.b32.xlu0 %v1218, 20
        %v1679 = vpop.permute.xlu0 %1678
        %1680 = vrot.lane.b32.xlu0 %v1220, 20
        %v1681 = vpop.permute.xlu0 %1680
        %1714 = vrot.lane.b32.xlu0 %v950, 24
        %v1715 = vpop.permute.xlu0 %1714
        %1716 = vrot.lane.b32.xlu0 %v951, 24
        %v1717 = vpop.permute.xlu0 %1716
        %1718 = vrot.lane.b32.xlu0 %v953, 24
        %v1719 = vpop.permute.xlu0 %1718
        %1720 = vrot.lane.b32.xlu0 %v954, 24
        %v1721 = vpop.permute.xlu0 %1720
        %1722 = vrot.lane.b32.xlu0 %v956, 24
        %v1723 = vpop.permute.xlu0 %1722
        %1724 = vrot.lane.b32.xlu0 %v957, 24
        %v1725 = vpop.permute.xlu0 %1724
        %1726 = vrot.lane.b32.xlu0 %v959, 24
        %v1727 = vpop.permute.xlu0 %1726
        %1728 = vrot.lane.b32.xlu0 %v960, 24
        %v1729 = vpop.permute.xlu0 %1728
        %1730 = vrot.lane.b32.xlu0 %v962, 24
        %v1731 = vpop.permute.xlu0 %1730
        %1732 = vrot.lane.b32.xlu0 %v963, 24
        %v1733 = vpop.permute.xlu0 %1732
        %1734 = vrot.lane.b32.xlu0 %v965, 24
        %v1735 = vpop.permute.xlu0 %1734
        %1736 = vrot.lane.b32.xlu0 %v966, 24
        %v1737 = vpop.permute.xlu0 %1736
        %1738 = vrot.lane.b32.xlu0 %v968, 24
        %v1739 = vpop.permute.xlu0 %1738
        %1740 = vrot.lane.b32.xlu0 %v969, 24
        %v1741 = vpop.permute.xlu0 %1740
        %1742 = vrot.lane.b32.xlu0 %v971, 24
        %v1743 = vpop.permute.xlu0 %1742
        %1744 = vrot.lane.b32.xlu0 %v972, 24
        %v1745 = vpop.permute.xlu0 %1744
        %1746 = vrot.lane.b32.xlu0 %v974, 24
        %v1747 = vpop.permute.xlu0 %1746
        %1748 = vrot.lane.b32.xlu0 %v975, 24
        %v1749 = vpop.permute.xlu0 %1748
        %1750 = vrot.lane.b32.xlu0 %v977, 24
        %v1751 = vpop.permute.xlu0 %1750
        %1752 = vrot.lane.b32.xlu0 %v978, 24
        %v1753 = vpop.permute.xlu0 %1752
        %1754 = vrot.lane.b32.xlu0 %v980, 24
        %v1755 = vpop.permute.xlu0 %1754
        %1756 = vrot.lane.b32.xlu0 %v981, 24
        %v1757 = vpop.permute.xlu0 %1756
        %1758 = vrot.lane.b32.xlu0 %v983, 24
        %v1759 = vpop.permute.xlu0 %1758
        %1760 = vrot.lane.b32.xlu0 %v984, 24
        %v1761 = vpop.permute.xlu0 %1760
        %1762 = vrot.lane.b32.xlu0 %v986, 24
        %v1763 = vpop.permute.xlu0 %1762
        %1764 = vrot.lane.b32.xlu0 %v987, 24
        %v1765 = vpop.permute.xlu0 %1764
        %1766 = vrot.lane.b32.xlu0 %v989, 24
        %v1767 = vpop.permute.xlu0 %1766
        %1768 = vrot.lane.b32.xlu0 %v990, 24
        %v1769 = vpop.permute.xlu0 %1768
        %1770 = vrot.lane.b32.xlu0 %v992, 24
        %v1771 = vpop.permute.xlu0 %1770
        %1772 = vrot.lane.b32.xlu0 %v993, 24
        %v1773 = vpop.permute.xlu0 %1772
        %1774 = vrot.lane.b32.xlu0 %v995, 24
        %v1775 = vpop.permute.xlu0 %1774
        %1776 = vrot.lane.b32.xlu0 %v996, 24
        %v1777 = vpop.permute.xlu0 %1776
        %1810 = vrot.lane.b32.xlu0 %v1059, 28
        %v1811 = vpop.permute.xlu0 %1810
        %1812 = vrot.lane.b32.xlu0 %v1061, 28
        %v1813 = vpop.permute.xlu0 %1812
        %1814 = vrot.lane.b32.xlu0 %v1064, 28
        %v1815 = vpop.permute.xlu0 %1814
        %1816 = vrot.lane.b32.xlu0 %v1066, 28
        %v1817 = vpop.permute.xlu0 %1816
        %1818 = vrot.lane.b32.xlu0 %v1069, 28
        %v1819 = vpop.permute.xlu0 %1818
        %1820 = vrot.lane.b32.xlu0 %v1071, 28
        %v1821 = vpop.permute.xlu0 %1820
        %1822 = vrot.lane.b32.xlu0 %v1074, 28
        %v1823 = vpop.permute.xlu0 %1822
        %1824 = vrot.lane.b32.xlu0 %v1076, 28
        %v1825 = vpop.permute.xlu0 %1824
        %1826 = vrot.lane.b32.xlu0 %v1079, 28
        %v1827 = vpop.permute.xlu0 %1826
        %1828 = vrot.lane.b32.xlu0 %v1081, 28
        %v1829 = vpop.permute.xlu0 %1828
        %1830 = vrot.lane.b32.xlu0 %v1084, 28
        %v1831 = vpop.permute.xlu0 %1830
        %1832 = vrot.lane.b32.xlu0 %v1086, 28
        %v1833 = vpop.permute.xlu0 %1832
        %1834 = vrot.lane.b32.xlu0 %v1089, 28
        %v1835 = vpop.permute.xlu0 %1834
        %1836 = vrot.lane.b32.xlu0 %v1091, 28
        %v1837 = vpop.permute.xlu0 %1836
        %1838 = vrot.lane.b32.xlu0 %v1094, 28
        %v1839 = vpop.permute.xlu0 %1838
        %1840 = vrot.lane.b32.xlu0 %v1096, 28
        %v1841 = vpop.permute.xlu0 %1840
        %1842 = vrot.lane.b32.xlu0 %v1099, 28
        %v1843 = vpop.permute.xlu0 %1842
        %1844 = vrot.lane.b32.xlu0 %v1101, 28
        %v1845 = vpop.permute.xlu0 %1844
        %1846 = vrot.lane.b32.xlu0 %v1104, 28
        %v1847 = vpop.permute.xlu0 %1846
        %1848 = vrot.lane.b32.xlu0 %v1106, 28
        %v1849 = vpop.permute.xlu0 %1848
        %1850 = vrot.lane.b32.xlu0 %v1109, 28
        %v1851 = vpop.permute.xlu0 %1850
        %1852 = vrot.lane.b32.xlu0 %v1111, 28
        %v1853 = vpop.permute.xlu0 %1852
        %1854 = vrot.lane.b32.xlu0 %v1114, 28
        %v1855 = vpop.permute.xlu0 %1854
        %1856 = vrot.lane.b32.xlu0 %v1116, 28
        %v1857 = vpop.permute.xlu0 %1856
        %1858 = vrot.lane.b32.xlu0 %v1119, 28
        %v1859 = vpop.permute.xlu0 %1858
        %1860 = vrot.lane.b32.xlu0 %v1121, 28
        %v1861 = vpop.permute.xlu0 %1860
        %1862 = vrot.lane.b32.xlu0 %v1124, 28
        %v1863 = vpop.permute.xlu0 %1862
        %1864 = vrot.lane.b32.xlu0 %v1126, 28
        %v1865 = vpop.permute.xlu0 %1864
        %1866 = vrot.lane.b32.xlu0 %v1213, 28
        %v1867 = vpop.permute.xlu0 %1866
        %1868 = vrot.lane.b32.xlu0 %v1215, 28
        %v1869 = vpop.permute.xlu0 %1868
        %1870 = vrot.lane.b32.xlu0 %v1226, 28
        %v1871 = vpop.permute.xlu0 %1870
        %1872 = vrot.lane.b32.xlu0 %v1228, 28
        %v1873 = vpop.permute.xlu0 %1872
        %1906 = vrot.lane.b32.xlu0 %v1140, 32
        %v1907 = vpop.permute.xlu0 %1906
        %1908 = vrot.lane.b32.xlu0 %v1142, 32
        %v1909 = vpop.permute.xlu0 %1908
        %1910 = vrot.lane.b32.xlu0 %v1145, 32
        %v1911 = vpop.permute.xlu0 %1910
        %1912 = vrot.lane.b32.xlu0 %v1147, 32
        %v1913 = vpop.permute.xlu0 %1912
        %1914 = vrot.lane.b32.xlu0 %v1150, 32
        %v1915 = vpop.permute.xlu0 %1914
        %1916 = vrot.lane.b32.xlu0 %v1152, 32
        %v1917 = vpop.permute.xlu0 %1916
        %1918 = vrot.lane.b32.xlu0 %v1155, 32
        %v1919 = vpop.permute.xlu0 %1918
        %1920 = vrot.lane.b32.xlu0 %v1157, 32
        %v1921 = vpop.permute.xlu0 %1920
        %1922 = vrot.lane.b32.xlu0 %v1160, 32
        %v1923 = vpop.permute.xlu0 %1922
        %1924 = vrot.lane.b32.xlu0 %v1162, 32
        %v1925 = vpop.permute.xlu0 %1924
        %1926 = vrot.lane.b32.xlu0 %v1165, 32
        %v1927 = vpop.permute.xlu0 %1926
        %1928 = vrot.lane.b32.xlu0 %v1167, 32
        %v1929 = vpop.permute.xlu0 %1928
        %1930 = vrot.lane.b32.xlu0 %v1170, 32
        %v1931 = vpop.permute.xlu0 %1930
        %1932 = vrot.lane.b32.xlu0 %v1172, 32
        %v1933 = vpop.permute.xlu0 %1932
        %1934 = vrot.lane.b32.xlu0 %v1175, 32
        %v1935 = vpop.permute.xlu0 %1934
        %1936 = vrot.lane.b32.xlu0 %v1177, 32
        %v1937 = vpop.permute.xlu0 %1936
        %1938 = vrot.lane.b32.xlu0 %v1180, 32
        %v1939 = vpop.permute.xlu0 %1938
        %1940 = vrot.lane.b32.xlu0 %v1182, 32
        %v1941 = vpop.permute.xlu0 %1940
        %1942 = vrot.lane.b32.xlu0 %v1185, 32
        %v1943 = vpop.permute.xlu0 %1942
        %1944 = vrot.lane.b32.xlu0 %v1187, 32
        %v1945 = vpop.permute.xlu0 %1944
        %1946 = vrot.lane.b32.xlu0 %v1190, 32
        %v1947 = vpop.permute.xlu0 %1946
        %1948 = vrot.lane.b32.xlu0 %v1192, 32
        %v1949 = vpop.permute.xlu0 %1948
        %1950 = vrot.lane.b32.xlu0 %v1195, 32
        %v1951 = vpop.permute.xlu0 %1950
        %1952 = vrot.lane.b32.xlu0 %v1197, 32
        %v1953 = vpop.permute.xlu0 %1952
        %1954 = vrot.lane.b32.xlu0 %v1200, 32
        %v1955 = vpop.permute.xlu0 %1954
        %1956 = vrot.lane.b32.xlu0 %v1202, 32
        %v1957 = vpop.permute.xlu0 %1956
        %1958 = vrot.lane.b32.xlu0 %v1205, 32
        %v1959 = vpop.permute.xlu0 %1958
        %1960 = vrot.lane.b32.xlu0 %v1207, 32
        %v1961 = vpop.permute.xlu0 %1960
        %1962 = vrot.lane.b32.xlu0 %v1218, 32
        %v1963 = vpop.permute.xlu0 %1962
        %1964 = vrot.lane.b32.xlu0 %v1220, 32
        %v1965 = vpop.permute.xlu0 %1964
        %1966 = vrot.lane.b32.xlu0 %v1231, 32
        %v1967 = vpop.permute.xlu0 %1966
        %1968 = vrot.lane.b32.xlu0 %v1233, 32
        %v1969 = vpop.permute.xlu0 %1968
        %v2002 = vsel %vm807, %v944, %v1235
        %v2003 = vsel %vm807, %v945, %v1237
        %v2004 = vsel %vm807, %v947, %v1239
        %v2005 = vsel %vm807, %v948, %v1241
        %v2006 = vsel %vm807, %v950, %v1243
        %v2007 = vsel %vm807, %v951, %v1245
        %v2008 = vsel %vm807, %v953, %v1247
        %v2009 = vsel %vm807, %v954, %v1249
        %v2010 = vsel %vm807, %v956, %v1251
        %v2011 = vsel %vm807, %v957, %v1253
        %v2012 = vsel %vm807, %v959, %v1255
        %v2013 = vsel %vm807, %v960, %v1257
        %v2014 = vsel %vm807, %v962, %v1259
        %v2015 = vsel %vm807, %v963, %v1261
        %v2016 = vsel %vm807, %v965, %v1263
        %v2017 = vsel %vm807, %v966, %v1265
        %v2018 = vsel %vm807, %v968, %v1267
        %v2019 = vsel %vm807, %v969, %v1269
        %v2020 = vsel %vm807, %v971, %v1271
        %v2021 = vsel %vm807, %v972, %v1273
        %v2022 = vsel %vm807, %v974, %v1275
        %v2023 = vsel %vm807, %v975, %v1277
        %v2024 = vsel %vm807, %v977, %v1279
        %v2025 = vsel %vm807, %v978, %v1281
        %v2026 = vsel %vm807, %v980, %v1283
        %v2027 = vsel %vm807, %v981, %v1285
        %v2028 = vsel %vm807, %v983, %v1287
        %v2029 = vsel %vm807, %v984, %v1289
        %v2030 = vsel %vm807, %v986, %v1291
        %v2031 = vsel %vm807, %v987, %v1293
        %v2032 = vsel %vm807, %v989, %v1295
        %v2033 = vsel %vm807, %v990, %v1297
        %vm2034 = vcmask 64512
        %v2035 = vsel %vm2034, %v2002, %v1331
        %v2036 = vsel %vm2034, %v2003, %v1333
        %v2037 = vsel %vm2034, %v2004, %v1335
        %v2038 = vsel %vm2034, %v2005, %v1337
        %v2039 = vsel %vm2034, %v2006, %v1339
        %v2040 = vsel %vm2034, %v2007, %v1341
        %v2041 = vsel %vm2034, %v2008, %v1343
        %v2042 = vsel %vm2034, %v2009, %v1345
        %v2043 = vsel %vm2034, %v2010, %v1347
        %v2044 = vsel %vm2034, %v2011, %v1349
        %v2045 = vsel %vm2034, %v2012, %v1351
        %v2046 = vsel %vm2034, %v2013, %v1353
        %v2047 = vsel %vm2034, %v2014, %v1355
        %v2048 = vsel %vm2034, %v2015, %v1357
        %v2049 = vsel %vm2034, %v2016, %v1359
        %v2050 = vsel %vm2034, %v2017, %v1361
        %v2051 = vsel %vm2034, %v2018, %v1363
        %v2052 = vsel %vm2034, %v2019, %v1365
        %v2053 = vsel %vm2034, %v2020, %v1367
        %v2054 = vsel %vm2034, %v2021, %v1369
        %v2055 = vsel %vm2034, %v2022, %v1371
        %v2056 = vsel %vm2034, %v2023, %v1373
        %v2057 = vsel %vm2034, %v2024, %v1375
        %v2058 = vsel %vm2034, %v2025, %v1377
        %v2059 = vsel %vm2034, %v2026, %v1379
        %v2060 = vsel %vm2034, %v2027, %v1381
        %v2061 = vsel %vm2034, %v2028, %v1383
        %v2062 = vsel %vm2034, %v2029, %v1385
        %v2063 = vsel %vm2034, %v2030, %v1387
        %v2064 = vsel %vm2034, %v2031, %v1389
        %v2065 = vsel %vm2034, %v2032, %v1391
        %v2066 = vsel %vm2034, %v2033, %v1393
        %vm2067 = vcmask 97280
        %v2068 = vsel %vm2067, %v2035, %v1427
        %v2069 = vsel %vm2067, %v2036, %v1429
        %v2070 = vsel %vm2067, %v2037, %v1431
        %v2071 = vsel %vm2067, %v2038, %v1433
        %v2072 = vsel %vm2067, %v2039, %v1435
        %v2073 = vsel %vm2067, %v2040, %v1437
        %v2074 = vsel %vm2067, %v2041, %v1439
        %v2075 = vsel %vm2067, %v2042, %v1441
        %v2076 = vsel %vm2067, %v2043, %v1443
        %v2077 = vsel %vm2067, %v2044, %v1445
        %v2078 = vsel %vm2067, %v2045, %v1447
        %v2079 = vsel %vm2067, %v2046, %v1449
        %v2080 = vsel %vm2067, %v2047, %v1451
        %v2081 = vsel %vm2067, %v2048, %v1453
        %v2082 = vsel %vm2067, %v2049, %v1455
        %v2083 = vsel %vm2067, %v2050, %v1457
        %v2084 = vsel %vm2067, %v2051, %v1459
        %v2085 = vsel %vm2067, %v2052, %v1461
        %v2086 = vsel %vm2067, %v2053, %v1463
        %v2087 = vsel %vm2067, %v2054, %v1465
        %v2088 = vsel %vm2067, %v2055, %v1467
        %v2089 = vsel %vm2067, %v2056, %v1469
        %v2090 = vsel %vm2067, %v2057, %v1471
        %v2091 = vsel %vm2067, %v2058, %v1473
        %v2092 = vsel %vm2067, %v2059, %v1475
        %v2093 = vsel %vm2067, %v2060, %v1477
        %v2094 = vsel %vm2067, %v2061, %v1479
        %v2095 = vsel %vm2067, %v2062, %v1481
        %v2096 = vsel %vm2067, %v2063, %v1483
        %v2097 = vsel %vm2067, %v2064, %v1485
        %v2098 = vsel %vm2067, %v2065, %v1487
        %v2099 = vsel %vm2067, %v2066, %v1489
        %vm2100 = vcmask 130048
        %v2101 = vsel %vm2100, %v2068, %v1523
        %v2102 = vsel %vm2100, %v2069, %v1525
        %v2103 = vsel %vm2100, %v2070, %v1527
        %v2104 = vsel %vm2100, %v2071, %v1529
        %v2105 = vsel %vm2100, %v2072, %v1531
        %v2106 = vsel %vm2100, %v2073, %v1533
        %v2107 = vsel %vm2100, %v2074, %v1535
        %v2108 = vsel %vm2100, %v2075, %v1537
        %v2109 = vsel %vm2100, %v2076, %v1539
        %v2110 = vsel %vm2100, %v2077, %v1541
        %v2111 = vsel %vm2100, %v2078, %v1543
        %v2112 = vsel %vm2100, %v2079, %v1545
        %v2113 = vsel %vm2100, %v2080, %v1547
        %v2114 = vsel %vm2100, %v2081, %v1549
        %v2115 = vsel %vm2100, %v2082, %v1551
        %v2116 = vsel %vm2100, %v2083, %v1553
        %v2117 = vsel %vm2100, %v2084, %v1555
        %v2118 = vsel %vm2100, %v2085, %v1557
        %v2119 = vsel %vm2100, %v2086, %v1559
        %v2120 = vsel %vm2100, %v2087, %v1561
        %v2121 = vsel %vm2100, %v2088, %v1563
        %v2122 = vsel %vm2100, %v2089, %v1565
        %v2123 = vsel %vm2100, %v2090, %v1567
        %v2124 = vsel %vm2100, %v2091, %v1569
        %v2125 = vsel %vm2100, %v2092, %v1571
        %v2126 = vsel %vm2100, %v2093, %v1573
        %v2127 = vsel %vm2100, %v2094, %v1575
        %v2128 = vsel %vm2100, %v2095, %v1577
        %v2129 = vsel %vm2100, %v2096, %v1579
        %v2130 = vsel %vm2100, %v2097, %v1581
        %v2131 = vsel %vm2100, %v2098, %v1583
        %v2132 = vsel %vm2100, %v2099, %v1585
        %vm2133 = vcmask 162816
        %v2134 = vsel %vm2133, %v2101, %v1619
        %v2135 = vsel %vm2133, %v2102, %v1621
        %v2136 = vsel %vm2133, %v2103, %v1623
        %v2137 = vsel %vm2133, %v2104, %v1625
        %v2138 = vsel %vm2133, %v2105, %v1627
        %v2139 = vsel %vm2133, %v2106, %v1629
        %v2140 = vsel %vm2133, %v2107, %v1631
        %v2141 = vsel %vm2133, %v2108, %v1633
        %v2142 = vsel %vm2133, %v2109, %v1635
        %v2143 = vsel %vm2133, %v2110, %v1637
        %v2144 = vsel %vm2133, %v2111, %v1639
        %v2145 = vsel %vm2133, %v2112, %v1641
        %v2146 = vsel %vm2133, %v2113, %v1643
        %v2147 = vsel %vm2133, %v2114, %v1645
        %v2148 = vsel %vm2133, %v2115, %v1647
        %v2149 = vsel %vm2133, %v2116, %v1649
        %v2150 = vsel %vm2133, %v2117, %v1651
        %v2151 = vsel %vm2133, %v2118, %v1653
        %v2152 = vsel %vm2133, %v2119, %v1655
        %v2153 = vsel %vm2133, %v2120, %v1657
        %v2154 = vsel %vm2133, %v2121, %v1659
        %v2155 = vsel %vm2133, %v2122, %v1661
        %v2156 = vsel %vm2133, %v2123, %v1663
        %v2157 = vsel %vm2133, %v2124, %v1665
        %v2158 = vsel %vm2133, %v2125, %v1667
        %v2159 = vsel %vm2133, %v2126, %v1669
        %v2160 = vsel %vm2133, %v2127, %v1671
        %v2161 = vsel %vm2133, %v2128, %v1673
        %v2162 = vsel %vm2133, %v2129, %v1675
        %v2163 = vsel %vm2133, %v2130, %v1677
        %v2164 = vsel %vm2133, %v2131, %v1679
        %v2165 = vsel %vm2133, %v2132, %v1681
        %vm2166 = vcmask 195584
        %v2167 = vsel %vm2166, %v2134, %v1715
        %v2168 = vsel %vm2166, %v2135, %v1717
        %v2169 = vsel %vm2166, %v2136, %v1719
        %v2170 = vsel %vm2166, %v2137, %v1721
        %v2171 = vsel %vm2166, %v2138, %v1723
        %v2172 = vsel %vm2166, %v2139, %v1725
        %v2173 = vsel %vm2166, %v2140, %v1727
        %v2174 = vsel %vm2166, %v2141, %v1729
        %v2175 = vsel %vm2166, %v2142, %v1731
        %v2176 = vsel %vm2166, %v2143, %v1733
        %v2177 = vsel %vm2166, %v2144, %v1735
        %v2178 = vsel %vm2166, %v2145, %v1737
        %v2179 = vsel %vm2166, %v2146, %v1739
        %v2180 = vsel %vm2166, %v2147, %v1741
        %v2181 = vsel %vm2166, %v2148, %v1743
        %v2182 = vsel %vm2166, %v2149, %v1745
        %v2183 = vsel %vm2166, %v2150, %v1747
        %v2184 = vsel %vm2166, %v2151, %v1749
        %v2185 = vsel %vm2166, %v2152, %v1751
        %v2186 = vsel %vm2166, %v2153, %v1753
        %v2187 = vsel %vm2166, %v2154, %v1755
        %v2188 = vsel %vm2166, %v2155, %v1757
        %v2189 = vsel %vm2166, %v2156, %v1759
        %v2190 = vsel %vm2166, %v2157, %v1761
        %v2191 = vsel %vm2166, %v2158, %v1763
        %v2192 = vsel %vm2166, %v2159, %v1765
        %v2193 = vsel %vm2166, %v2160, %v1767
        %v2194 = vsel %vm2166, %v2161, %v1769
        %v2195 = vsel %vm2166, %v2162, %v1771
        %v2196 = vsel %vm2166, %v2163, %v1773
        %v2197 = vsel %vm2166, %v2164, %v1775
        %v2198 = vsel %vm2166, %v2165, %v1777
        %vm2199 = vcmask 228352
        %v2200 = vsel %vm2199, %v2167, %v1811
        %v2201 = vsel %vm2199, %v2168, %v1813
        %v2202 = vsel %vm2199, %v2169, %v1815
        %v2203 = vsel %vm2199, %v2170, %v1817
        %v2204 = vsel %vm2199, %v2171, %v1819
        %v2205 = vsel %vm2199, %v2172, %v1821
        %v2206 = vsel %vm2199, %v2173, %v1823
        %v2207 = vsel %vm2199, %v2174, %v1825
        %v2208 = vsel %vm2199, %v2175, %v1827
        %v2209 = vsel %vm2199, %v2176, %v1829
        %v2210 = vsel %vm2199, %v2177, %v1831
        %v2211 = vsel %vm2199, %v2178, %v1833
        %v2212 = vsel %vm2199, %v2179, %v1835
        %v2213 = vsel %vm2199, %v2180, %v1837
        %v2214 = vsel %vm2199, %v2181, %v1839
        %v2215 = vsel %vm2199, %v2182, %v1841
        %v2216 = vsel %vm2199, %v2183, %v1843
        %v2217 = vsel %vm2199, %v2184, %v1845
        %v2218 = vsel %vm2199, %v2185, %v1847
        %v2219 = vsel %vm2199, %v2186, %v1849
        %v2220 = vsel %vm2199, %v2187, %v1851
        %v2221 = vsel %vm2199, %v2188, %v1853
        %v2222 = vsel %vm2199, %v2189, %v1855
        %v2223 = vsel %vm2199, %v2190, %v1857
        %v2224 = vsel %vm2199, %v2191, %v1859
        %v2225 = vsel %vm2199, %v2192, %v1861
        %v2226 = vsel %vm2199, %v2193, %v1863
        %v2227 = vsel %vm2199, %v2194, %v1865
        %v2228 = vsel %vm2199, %v2195, %v1867
        %v2229 = vsel %vm2199, %v2196, %v1869
        %v2230 = vsel %vm2199, %v2197, %v1871
        %v2231 = vsel %vm2199, %v2198, %v1873
        %v2232 = vsel %vm692, %v2200, %v1907
        %v2233 = vsel %vm692, %v2201, %v1909
        %v2234 = vsel %vm692, %v2202, %v1911
        %v2235 = vsel %vm692, %v2203, %v1913
        %v2236 = vsel %vm692, %v2204, %v1915
        %v2237 = vsel %vm692, %v2205, %v1917
        %v2238 = vsel %vm692, %v2206, %v1919
        %v2239 = vsel %vm692, %v2207, %v1921
        %v2240 = vsel %vm692, %v2208, %v1923
        %v2241 = vsel %vm692, %v2209, %v1925
        %v2242 = vsel %vm692, %v2210, %v1927
        %v2243 = vsel %vm692, %v2211, %v1929
        %v2244 = vsel %vm692, %v2212, %v1931
        %v2245 = vsel %vm692, %v2213, %v1933
        %v2246 = vsel %vm692, %v2214, %v1935
        %v2247 = vsel %vm692, %v2215, %v1937
        %v2248 = vsel %vm692, %v2216, %v1939
        %v2249 = vsel %vm692, %v2217, %v1941
        %v2250 = vsel %vm692, %v2218, %v1943
        %v2251 = vsel %vm692, %v2219, %v1945
        %v2252 = vsel %vm692, %v2220, %v1947
        %v2253 = vsel %vm692, %v2221, %v1949
        %v2254 = vsel %vm692, %v2222, %v1951
        %v2255 = vsel %vm692, %v2223, %v1953
        %v2256 = vsel %vm692, %v2224, %v1955
        %v2257 = vsel %vm692, %v2225, %v1957
        %v2258 = vsel %vm692, %v2226, %v1959
        %v2259 = vsel %vm692, %v2227, %v1961
        %v2260 = vsel %vm692, %v2228, %v1963
        %v2261 = vsel %vm692, %v2229, %v1965
        %v2262 = vsel %vm692, %v2230, %v1967
        %v2263 = vsel %vm692, %v2231, %v1969
        %v2264 = vld [vmem:[#allocation11] sm:$0xff]
        %v2265 = vld [vmem:[#allocation11 + $0x8] sm:$0xff]
        %v2266 = vld [vmem:[#allocation11 + $0x10] sm:$0xff]
        %v2267 = vld [vmem:[#allocation11 + $0x18] sm:$0xff]
        %v2268 = vld [vmem:[#allocation11 + $0x20] sm:$0xf]
        %v2269 = vlaneseq
        %v2270 = vshrl.u32 %v2269, 7
        %v2271 = vsub.s32 0, %v2270
        %v2272 = vrot.slane %v885, %v2271
        %v2273 = vmul.f32 %v2264, %v2272
        %v2274 = vmul.f32 %v2265, %v2272
        %v2275 = vmul.f32 %v2266, %v2272
        %v2276 = vmul.f32 %v2267, %v2272
        %v2277 = vmul.f32 %v2268, %v2272
        %2279 = vset.pattern.permute.xlu0 0
        %2280 = vperm.xlu0 %2279, %v766
        %v2281 = vpop.permute.xlu0 %2280
        %2284 = vset.pattern.permute.xlu0 0
        %2285 = vperm.xlu0 %2284, %v767
        %v2286 = vpop.permute.xlu0 %2285
        %2289 = vset.pattern.permute.xlu0 0
        %2290 = vperm.xlu0 %2289, %v768
        %v2291 = vpop.permute.xlu0 %2290
        %2294 = vset.pattern.permute.xlu0 0
        %2295 = vperm.xlu0 %2294, %v769
        %v2296 = vpop.permute.xlu0 %2295
        %2299 = vset.pattern.permute.xlu0 0
        %2300 = vperm.xlu0 %2299, %v770
        %v2301 = vpop.permute.xlu0 %2300
        %2304 = vset.pattern.permute.xlu0 0
        %2305 = vperm.xlu0 %2304, %v771
        %v2306 = vpop.permute.xlu0 %2305
        %2309 = vset.pattern.permute.xlu0 0
        %2310 = vperm.xlu0 %2309, %v772
        %v2311 = vpop.permute.xlu0 %2310
        %2314 = vset.pattern.permute.xlu0 0
        %2315 = vperm.xlu0 %2314, %v773
        %v2316 = vpop.permute.xlu0 %2315
        %2319 = vset.pattern.permute.xlu0 0
        %2320 = vperm.xlu0 %2319, %v774
        %v2321 = vpop.permute.xlu0 %2320
        %2324 = vset.pattern.permute.xlu0 0
        %2325 = vperm.xlu0 %2324, %v775
        %v2326 = vpop.permute.xlu0 %2325
        %2329 = vset.pattern.permute.xlu0 0
        %2330 = vperm.xlu0 %2329, %v776
        %v2331 = vpop.permute.xlu0 %2330
        %2334 = vset.pattern.permute.xlu0 0
        %2335 = vperm.xlu0 %2334, %v777
        %v2336 = vpop.permute.xlu0 %2335
        %2339 = vset.pattern.permute.xlu0 0
        %2340 = vperm.xlu0 %2339, %v778
        %v2341 = vpop.permute.xlu0 %2340
        %2344 = vset.pattern.permute.xlu0 0
        %2345 = vperm.xlu0 %2344, %v779
        %v2346 = vpop.permute.xlu0 %2345
        %2349 = vset.pattern.permute.xlu0 0
        %2350 = vperm.xlu0 %2349, %v780
        %v2351 = vpop.permute.xlu0 %2350
        %2354 = vset.pattern.permute.xlu0 0
        %2355 = vperm.xlu0 %2354, %v781
        %v2356 = vpop.permute.xlu0 %2355
        %2359 = vset.pattern.permute.xlu0 0
        %2360 = vperm.xlu0 %2359, %v782
        %v2361 = vpop.permute.xlu0 %2360
        %2364 = vset.pattern.permute.xlu0 0
        %2365 = vperm.xlu0 %2364, %v783
        %v2366 = vpop.permute.xlu0 %2365
        %2369 = vset.pattern.permute.xlu0 0
        %2370 = vperm.xlu0 %2369, %v784
        %v2371 = vpop.permute.xlu0 %2370
        %2374 = vset.pattern.permute.xlu0 0
        %2375 = vperm.xlu0 %2374, %v785
        %v2376 = vpop.permute.xlu0 %2375
        %2379 = vset.pattern.permute.xlu0 0
        %2380 = vperm.xlu0 %2379, %v786
        %v2381 = vpop.permute.xlu0 %2380
        %2384 = vset.pattern.permute.xlu0 0
        %2385 = vperm.xlu0 %2384, %v787
        %v2386 = vpop.permute.xlu0 %2385
        %2389 = vset.pattern.permute.xlu0 0
        %2390 = vperm.xlu0 %2389, %v788
        %v2391 = vpop.permute.xlu0 %2390
        %2394 = vset.pattern.permute.xlu0 0
        %2395 = vperm.xlu0 %2394, %v789
        %v2396 = vpop.permute.xlu0 %2395
        %2399 = vset.pattern.permute.xlu0 0
        %2400 = vperm.xlu0 %2399, %v790
        %v2401 = vpop.permute.xlu0 %2400
        %2404 = vset.pattern.permute.xlu0 0
        %2405 = vperm.xlu0 %2404, %v791
        %v2406 = vpop.permute.xlu0 %2405
        %2409 = vset.pattern.permute.xlu0 0
        %2410 = vperm.xlu0 %2409, %v792
        %v2411 = vpop.permute.xlu0 %2410
        %2414 = vset.pattern.permute.xlu0 0
        %2415 = vperm.xlu0 %2414, %v793
        %v2416 = vpop.permute.xlu0 %2415
        %2419 = vset.pattern.permute.xlu0 0
        %2420 = vperm.xlu0 %2419, %v794
        %v2421 = vpop.permute.xlu0 %2420
        %2424 = vset.pattern.permute.xlu0 0
        %2425 = vperm.xlu0 %2424, %v795
        %v2426 = vpop.permute.xlu0 %2425
        %2429 = vset.pattern.permute.xlu0 0
        %2430 = vperm.xlu0 %2429, %v796
        %v2431 = vpop.permute.xlu0 %2430
        %2434 = vset.pattern.permute.xlu0 0
        %2435 = vperm.xlu0 %2434, %v797
        %v2436 = vpop.permute.xlu0 %2435
        %v2439 = vlaneseq
        %v2440 = vshrl.u32 %v2439, 7
        %v2441 = vsub.s32 0, %v2440
        %v2442 = vrot.slane %v798, %v2441
        %v2444 = vmul.f32 %v2281, %v2442
        %v2445 = vmul.f32 %v2286, %v2442
        %v2446 = vmul.f32 %v2291, %v2442
        %v2447 = vmul.f32 %v2296, %v2442
        %v2448 = vmul.f32 %v2301, %v2442
        %v2449 = vmul.f32 %v2306, %v2442
        %v2450 = vmul.f32 %v2311, %v2442
        %v2451 = vmul.f32 %v2316, %v2442
        %v2452 = vmul.f32 %v2321, %v2442
        %v2453 = vmul.f32 %v2326, %v2442
        %v2454 = vmul.f32 %v2331, %v2442
        %v2455 = vmul.f32 %v2336, %v2442
        %v2456 = vmul.f32 %v2341, %v2442
        %v2457 = vmul.f32 %v2346, %v2442
        %v2458 = vmul.f32 %v2351, %v2442
        %v2459 = vmul.f32 %v2356, %v2442
        %v2460 = vmul.f32 %v2361, %v2442
        %v2461 = vmul.f32 %v2366, %v2442
        %v2462 = vmul.f32 %v2371, %v2442
        %v2463 = vmul.f32 %v2376, %v2442
        %v2464 = vmul.f32 %v2381, %v2442
        %v2465 = vmul.f32 %v2386, %v2442
        %v2466 = vmul.f32 %v2391, %v2442
        %v2467 = vmul.f32 %v2396, %v2442
        %v2468 = vmul.f32 %v2401, %v2442
        %v2469 = vmul.f32 %v2406, %v2442
        %v2470 = vmul.f32 %v2411, %v2442
        %v2471 = vmul.f32 %v2416, %v2442
        %v2472 = vmul.f32 %v2421, %v2442
        %v2473 = vmul.f32 %v2426, %v2442
        %v2474 = vmul.f32 %v2431, %v2442
        %v2475 = vmul.f32 %v2436, %v2442
        %vm2476 = vcmask 293888
        %v2478 = vsel %vm2476, %v2232, 0
        %v2481 = vsel %vm2476, %v2233, 0
        %v2484 = vsel %vm2476, %v2234, 0
        %v2487 = vsel %vm2476, %v2235, 0
        %v2490 = vsel %vm2476, %v2236, 0
        %v2493 = vsel %vm2476, %v2237, 0
        %v2496 = vsel %vm2476, %v2238, 0
        %v2499 = vsel %vm2476, %v2239, 0
        %v2502 = vsel %vm2476, %v2240, 0
        %v2505 = vsel %vm2476, %v2241, 0
        %v2508 = vsel %vm2476, %v2242, 0
        %v2511 = vsel %vm2476, %v2243, 0
        %v2514 = vsel %vm2476, %v2244, 0
        %v2517 = vsel %vm2476, %v2245, 0
        %v2520 = vsel %vm2476, %v2246, 0
        %v2523 = vsel %vm2476, %v2247, 0
        %v2526 = vsel %vm2476, %v2248, 0
        %v2529 = vsel %vm2476, %v2249, 0
        %v2532 = vsel %vm2476, %v2250, 0
        %v2535 = vsel %vm2476, %v2251, 0
        %v2538 = vsel %vm2476, %v2252, 0
        %v2541 = vsel %vm2476, %v2253, 0
        %v2544 = vsel %vm2476, %v2254, 0
        %v2547 = vsel %vm2476, %v2255, 0
        %v2550 = vsel %vm2476, %v2256, 0
        %v2553 = vsel %vm2476, %v2257, 0
        %v2556 = vsel %vm2476, %v2258, 0
        %v2559 = vsel %vm2476, %v2259, 0
        %v2562 = vsel %vm2476, %v2260, 0
        %v2565 = vsel %vm2476, %v2261, 0
        %v2568 = vsel %vm2476, %v2262, 0
        %v2571 = vsel %vm2476, %v2263, 0
        %v2574 = vsel %vm811, %v2277, 0
        %2576 = vmatprep.subr.mxu0 0.0
        %2577 = vmatpush1.msra.mxu0 %v2273
        %2578 = vmatprep.subr.mxu0 0.0
        %2579 = vmatpush1.msra.mxu0 %v2274
        %2580 = vmatprep.subr.mxu0 0.0
        %2581 = vmatpush1.msra.mxu0 %v2275
        %2582 = vmatprep.subr.mxu0 0.0
        %2583 = vmatpush1.msra.mxu0 %v2276
        %2584 = vmatprep.subr.mxu0 0.0
        %2585 = vmatpush1.msra.mxu0 %v2574
        %2586 = vmatprep.subr.mxu0 0.0
        %2587 = vmatpush1.msra.mxu0 0.0
        %2588 = vmatprep.subr.mxu0 0.0
        %2589 = vmatpush1.msra.mxu0 0.0
        %2590 = vmatprep.subr.mxu0 0.0
        %2591 = vmatpush1.msra.mxu0 0.0
        %2592 = vmatprep.subr.mxu0 0.0
        %2593 = vmatpush1.msra.mxu0 0.0
        %2594 = vmatprep.subr.mxu0 0.0
        %2595 = vmatpush1.msra.mxu0 0.0
        %2596 = vmatprep.subr.mxu0 0.0
        %2597 = vmatpush1.msra.mxu0 0.0
        %2598 = vmatprep.subr.mxu0 0.0
        %2599 = vmatpush1.msra.mxu0 0.0
        %2600 = vmatprep.subr.mxu0 0.0
        %2601 = vmatpush1.msra.mxu0 0.0
        %2602 = vmatprep.subr.mxu0 0.0
        %2603 = vmatpush1.msra.mxu0 0.0
        %2604 = vmatprep.subr.mxu0 0.0
        %2605 = vmatpush1.msra.mxu0 0.0
        %2606 = vmatprep.subr.mxu0 0.0
        %2607 = vmatpush1.msra.mxu0 0.0
        %2608 = vmatprep.subr.mxu0 0.0
        %2609 = vmatpush1.msra.mxu0 0.0
        %2610 = vmatprep.subr.mxu0 0.0
        %2611 = vmatpush1.msra.mxu0 0.0
        %2612 = vmatprep.subr.mxu0 0.0
        %2613 = vmatpush1.msra.mxu0 0.0
        %2614 = vmatprep.subr.mxu0 0.0
        %2615 = vmatpush1.msra.mxu0 0.0
        %2616 = vmatprep.subr.mxu0 0.0
        %2617 = vmatpush1.msra.mxu0 0.0
        %2618 = vmatprep.subr.mxu0 0.0
        %2619 = vmatpush1.msra.mxu0 0.0
        %2620 = vmatprep.subr.mxu0 0.0
        %2621 = vmatpush1.msra.mxu0 0.0
        %2622 = vmatprep.subr.mxu0 0.0
        %2623 = vmatpush1.msra.mxu0 0.0
        %2624 = vmatprep.subr.mxu0 0.0
        %2625 = vmatpush1.msra.mxu0 0.0
        %2626 = vmatprep.subr.mxu0 0.0
        %2627 = vmatpush1.msra.mxu0 0.0
        %2628 = vmatprep.subr.mxu0 0.0
        %2629 = vmatpush1.msra.mxu0 0.0
        %2630 = vmatprep.subr.mxu0 0.0
        %2631 = vmatpush1.msra.mxu0 0.0
        %2632 = vmatprep.subr.mxu0 0.0
        %2633 = vmatpush1.msra.mxu0 0.0
        %2634 = vmatprep.subr.mxu0 0.0
        %2635 = vmatpush1.msra.mxu0 0.0
        %2636 = vmatprep.subr.mxu0 0.0
        %2637 = vmatpush1.msra.mxu0 0.0
        %2638 = vmatprep.subr.mxu0 0.0
        %2639 = vmatpush1.msra.mxu0 0.0
        %2640 = vmatprep.mubr.f32.mxu0 0.0
        %2641 = vmatmul.mubr.f32.gmra.mrb[0].mxu0 %v2478
        %v2642 = vpop.f32.mrb[0].mxu0
        %v2643 = vadd.f32 %v2444, %v2642
        %v2644 = vpop.f32.mrb[0].mxu0
        %2645 = vmatprep.mubr.f32.mxu0 0.0
        %2646 = vmatmul.mubr.f32.gmra.mrb[0].mxu0 %v2481
        %v2647 = vpop.f32.mrb[0].mxu0
        %v2648 = vadd.f32 %v2445, %v2647
        %v2649 = vpop.f32.mrb[0].mxu0
        %2650 = vmatprep.mubr.f32.mxu0 0.0
        %2651 = vmatmul.mubr.f32.gmra.mrb[0].mxu0 %v2484
        %v2652 = vpop.f32.mrb[0].mxu0
        %v2653 = vadd.f32 %v2446, %v2652
        %v2654 = vpop.f32.mrb[0].mxu0
        %2655 = vmatprep.mubr.f32.mxu0 0.0
        %2656 = vmatmul.mubr.f32.gmra.mrb[0].mxu0 %v2487
        %v2657 = vpop.f32.mrb[0].mxu0
        %v2658 = vadd.f32 %v2447, %v2657
        %v2659 = vpop.f32.mrb[0].mxu0
        %2660 = vmatprep.mubr.f32.mxu0 0.0
        %2661 = vmatmul.mubr.f32.gmra.mrb[0].mxu0 %v2490
        %v2662 = vpop.f32.mrb[0].mxu0
        %v2663 = vadd.f32 %v2448, %v2662
        %v2664 = vpop.f32.mrb[0].mxu0
        %2665 = vmatprep.mubr.f32.mxu0 0.0
        %2666 = vmatmul.mubr.f32.gmra.mrb[0].mxu0 %v2493
        %v2667 = vpop.f32.mrb[0].mxu0
        %v2668 = vadd.f32 %v2449, %v2667
        %v2669 = vpop.f32.mrb[0].mxu0
        %2670 = vmatprep.mubr.f32.mxu0 0.0
        %2671 = vmatmul.mubr.f32.gmra.mrb[0].mxu0 %v2496
        %v2672 = vpop.f32.mrb[0].mxu0
        %v2673 = vadd.f32 %v2450, %v2672
        %v2674 = vpop.f32.mrb[0].mxu0
        %2675 = vmatprep.mubr.f32.mxu0 0.0
        %2676 = vmatmul.mubr.f32.gmra.mrb[0].mxu0 %v2499
        %v2677 = vpop.f32.mrb[0].mxu0
        %v2678 = vadd.f32 %v2451, %v2677
        %v2679 = vpop.f32.mrb[0].mxu0
        %2680 = vmatprep.mubr.f32.mxu0 0.0
        %2681 = vmatmul.mubr.f32.gmra.mrb[0].mxu0 %v2502
        %v2682 = vpop.f32.mrb[0].mxu0
        %v2683 = vadd.f32 %v2452, %v2682
        %v2684 = vpop.f32.mrb[0].mxu0
        %2685 = vmatprep.mubr.f32.mxu0 0.0
        %2686 = vmatmul.mubr.f32.gmra.mrb[0].mxu0 %v2505
        %v2687 = vpop.f32.mrb[0].mxu0
        %v2688 = vadd.f32 %v2453, %v2687
        %v2689 = vpop.f32.mrb[0].mxu0
        %2690 = vmatprep.mubr.f32.mxu0 0.0
        %2691 = vmatmul.mubr.f32.gmra.mrb[0].mxu0 %v2508
        %v2692 = vpop.f32.mrb[0].mxu0
        %v2693 = vadd.f32 %v2454, %v2692
        %v2694 = vpop.f32.mrb[0].mxu0
        %2695 = vmatprep.mubr.f32.mxu0 0.0
        %2696 = vmatmul.mubr.f32.gmra.mrb[0].mxu0 %v2511
        %v2697 = vpop.f32.mrb[0].mxu0
        %v2698 = vadd.f32 %v2455, %v2697
        %v2699 = vpop.f32.mrb[0].mxu0
        %2700 = vmatprep.mubr.f32.mxu0 0.0
        %2701 = vmatmul.mubr.f32.gmra.mrb[0].mxu0 %v2514
        %v2702 = vpop.f32.mrb[0].mxu0
        %v2703 = vadd.f32 %v2456, %v2702
        %v2704 = vpop.f32.mrb[0].mxu0
        %2705 = vmatprep.mubr.f32.mxu0 0.0
        %2706 = vmatmul.mubr.f32.gmra.mrb[0].mxu0 %v2517
        %v2707 = vpop.f32.mrb[0].mxu0
        %v2708 = vadd.f32 %v2457, %v2707
        %v2709 = vpop.f32.mrb[0].mxu0
        %2710 = vmatprep.mubr.f32.mxu0 0.0
        %2711 = vmatmul.mubr.f32.gmra.mrb[0].mxu0 %v2520
        %v2712 = vpop.f32.mrb[0].mxu0
        %v2713 = vadd.f32 %v2458, %v2712
        %v2714 = vpop.f32.mrb[0].mxu0
        %2715 = vmatprep.mubr.f32.mxu0 0.0
        %2716 = vmatmul.mubr.f32.gmra.mrb[0].mxu0 %v2523
        %v2717 = vpop.f32.mrb[0].mxu0
        %v2718 = vadd.f32 %v2459, %v2717
        %v2719 = vpop.f32.mrb[0].mxu0
        %2720 = vmatprep.mubr.f32.mxu0 0.0
        %2721 = vmatmul.mubr.f32.gmra.mrb[0].mxu0 %v2526
        %v2722 = vpop.f32.mrb[0].mxu0
        %v2723 = vadd.f32 %v2460, %v2722
        %v2724 = vpop.f32.mrb[0].mxu0
        %2725 = vmatprep.mubr.f32.mxu0 0.0
        %2726 = vmatmul.mubr.f32.gmra.mrb[0].mxu0 %v2529
        %v2727 = vpop.f32.mrb[0].mxu0
        %v2728 = vadd.f32 %v2461, %v2727
        %v2729 = vpop.f32.mrb[0].mxu0
        %2730 = vmatprep.mubr.f32.mxu0 0.0
        %2731 = vmatmul.mubr.f32.gmra.mrb[0].mxu0 %v2532
        %v2732 = vpop.f32.mrb[0].mxu0
        %v2733 = vadd.f32 %v2462, %v2732
        %v2734 = vpop.f32.mrb[0].mxu0
        %2735 = vmatprep.mubr.f32.mxu0 0.0
        %2736 = vmatmul.mubr.f32.gmra.mrb[0].mxu0 %v2535
        %v2737 = vpop.f32.mrb[0].mxu0
        %v2738 = vadd.f32 %v2463, %v2737
        %v2739 = vpop.f32.mrb[0].mxu0
        %2740 = vmatprep.mubr.f32.mxu0 0.0
        %2741 = vmatmul.mubr.f32.gmra.mrb[0].mxu0 %v2538
        %v2742 = vpop.f32.mrb[0].mxu0
        %v2743 = vadd.f32 %v2464, %v2742
        %v2744 = vpop.f32.mrb[0].mxu0
        %2745 = vmatprep.mubr.f32.mxu0 0.0
        %2746 = vmatmul.mubr.f32.gmra.mrb[0].mxu0 %v2541
        %v2747 = vpop.f32.mrb[0].mxu0
        %v2748 = vadd.f32 %v2465, %v2747
        %v2749 = vpop.f32.mrb[0].mxu0
        %2750 = vmatprep.mubr.f32.mxu0 0.0
        %2751 = vmatmul.mubr.f32.gmra.mrb[0].mxu0 %v2544
        %v2752 = vpop.f32.mrb[0].mxu0
        %v2753 = vadd.f32 %v2466, %v2752
        %v2754 = vpop.f32.mrb[0].mxu0
        %2755 = vmatprep.mubr.f32.mxu0 0.0
        %2756 = vmatmul.mubr.f32.gmra.mrb[0].mxu0 %v2547
        %v2757 = vpop.f32.mrb[0].mxu0
        %v2758 = vadd.f32 %v2467, %v2757
        %v2759 = vpop.f32.mrb[0].mxu0
        %2760 = vmatprep.mubr.f32.mxu0 0.0
        %2761 = vmatmul.mubr.f32.gmra.mrb[0].mxu0 %v2550
        %v2762 = vpop.f32.mrb[0].mxu0
        %v2763 = vadd.f32 %v2468, %v2762
        %v2764 = vpop.f32.mrb[0].mxu0
        %2765 = vmatprep.mubr.f32.mxu0 0.0
        %2766 = vmatmul.mubr.f32.gmra.mrb[0].mxu0 %v2553
        %v2767 = vpop.f32.mrb[0].mxu0
        %v2768 = vadd.f32 %v2469, %v2767
        %v2769 = vpop.f32.mrb[0].mxu0
        %2770 = vmatprep.mubr.f32.mxu0 0.0
        %2771 = vmatmul.mubr.f32.gmra.mrb[0].mxu0 %v2556
        %v2772 = vpop.f32.mrb[0].mxu0
        %v2773 = vadd.f32 %v2470, %v2772
        %v2774 = vpop.f32.mrb[0].mxu0
        %2775 = vmatprep.mubr.f32.mxu0 0.0
        %2776 = vmatmul.mubr.f32.gmra.mrb[0].mxu0 %v2559
        %v2777 = vpop.f32.mrb[0].mxu0
        %v2778 = vadd.f32 %v2471, %v2777
        %v2779 = vpop.f32.mrb[0].mxu0
        %2780 = vmatprep.mubr.f32.mxu0 0.0
        %2781 = vmatmul.mubr.f32.gmra.mrb[0].mxu0 %v2562
        %v2782 = vpop.f32.mrb[0].mxu0
        %v2783 = vadd.f32 %v2472, %v2782
        %v2784 = vpop.f32.mrb[0].mxu0
        %2785 = vmatprep.mubr.f32.mxu0 0.0
        %2786 = vmatmul.mubr.f32.gmra.mrb[0].mxu0 %v2565
        %v2787 = vpop.f32.mrb[0].mxu0
        %v2788 = vadd.f32 %v2473, %v2787
        %v2789 = vpop.f32.mrb[0].mxu0
        %2790 = vmatprep.mubr.f32.mxu0 0.0
        %2791 = vmatmul.mubr.f32.gmra.mrb[0].mxu0 %v2568
        %v2792 = vpop.f32.mrb[0].mxu0
        %v2793 = vadd.f32 %v2474, %v2792
        %v2794 = vpop.f32.mrb[0].mxu0
        %2795 = vmatprep.mubr.f32.mxu0 0.0
        %2796 = vmatmul.mubr.f32.gmra.mrb[0].mxu0 %v2571
        %v2797 = vpop.f32.mrb[0].mxu0
        %v2798 = vadd.f32 %v2475, %v2797
        %v2799 = vpop.f32.mrb[0].mxu0
        %2800 = vdwg.mxu0
        %v2802 = vlaneseq
        %v2803 = vshrl.u32 %v2802, 7
        %v2804 = vsub.s32 0, %v2803
        %v2805 = vrot.slane %v800, %v2804
        %v2807 = vadd.f32 %v2643, %v2805
        %v2808 = vadd.f32 %v2648, %v2805
        %v2809 = vadd.f32 %v2653, %v2805
        %v2810 = vadd.f32 %v2658, %v2805
        %v2811 = vadd.f32 %v2663, %v2805
        %v2812 = vadd.f32 %v2668, %v2805
        %v2813 = vadd.f32 %v2673, %v2805
        %v2814 = vadd.f32 %v2678, %v2805
        %v2815 = vadd.f32 %v2683, %v2805
        %v2816 = vadd.f32 %v2688, %v2805
        %v2817 = vadd.f32 %v2693, %v2805
        %v2818 = vadd.f32 %v2698, %v2805
        %v2819 = vadd.f32 %v2703, %v2805
        %v2820 = vadd.f32 %v2708, %v2805
        %v2821 = vadd.f32 %v2713, %v2805
        %v2822 = vadd.f32 %v2718, %v2805
        %v2823 = vadd.f32 %v2723, %v2805
        %v2824 = vadd.f32 %v2728, %v2805
        %v2825 = vadd.f32 %v2733, %v2805
        %v2826 = vadd.f32 %v2738, %v2805
        %v2827 = vadd.f32 %v2743, %v2805
        %v2828 = vadd.f32 %v2748, %v2805
        %v2829 = vadd.f32 %v2753, %v2805
        %v2830 = vadd.f32 %v2758, %v2805
        %v2831 = vadd.f32 %v2763, %v2805
        %v2832 = vadd.f32 %v2768, %v2805
        %v2833 = vadd.f32 %v2773, %v2805
        %v2834 = vadd.f32 %v2778, %v2805
        %v2835 = vadd.f32 %v2783, %v2805
        %v2836 = vadd.f32 %v2788, %v2805
        %v2837 = vadd.f32 %v2793, %v2805
        %v2838 = vadd.f32 %v2798, %v2805
        %vm2839 = vcmp.ge.f32.partialorder %v2807, 0.0
        %vm2840 = vcmp.ge.f32.partialorder %v2808, 0.0
        %vm2841 = vcmp.ge.f32.partialorder %v2809, 0.0
        %vm2842 = vcmp.ge.f32.partialorder %v2810, 0.0
        %vm2843 = vcmp.ge.f32.partialorder %v2811, 0.0
        %vm2844 = vcmp.ge.f32.partialorder %v2812, 0.0
        %vm2845 = vcmp.ge.f32.partialorder %v2813, 0.0
        %vm2846 = vcmp.ge.f32.partialorder %v2814, 0.0
        %vm2847 = vcmp.ge.f32.partialorder %v2815, 0.0
        %vm2848 = vcmp.ge.f32.partialorder %v2816, 0.0
        %vm2849 = vcmp.ge.f32.partialorder %v2817, 0.0
        %vm2850 = vcmp.ge.f32.partialorder %v2818, 0.0
        %vm2851 = vcmp.ge.f32.partialorder %v2819, 0.0
        %vm2852 = vcmp.ge.f32.partialorder %v2820, 0.0
        %vm2853 = vcmp.ge.f32.partialorder %v2821, 0.0
        %vm2854 = vcmp.ge.f32.partialorder %v2822, 0.0
        %vm2855 = vcmp.ge.f32.partialorder %v2823, 0.0
        %vm2856 = vcmp.ge.f32.partialorder %v2824, 0.0
        %vm2857 = vcmp.ge.f32.partialorder %v2825, 0.0
        %vm2858 = vcmp.ge.f32.partialorder %v2826, 0.0
        %vm2859 = vcmp.ge.f32.partialorder %v2827, 0.0
        %vm2860 = vcmp.ge.f32.partialorder %v2828, 0.0
        %vm2861 = vcmp.ge.f32.partialorder %v2829, 0.0
        %vm2862 = vcmp.ge.f32.partialorder %v2830, 0.0
        %vm2863 = vcmp.ge.f32.partialorder %v2831, 0.0
        %vm2864 = vcmp.ge.f32.partialorder %v2832, 0.0
        %vm2865 = vcmp.ge.f32.partialorder %v2833, 0.0
        %vm2866 = vcmp.ge.f32.partialorder %v2834, 0.0
        %vm2867 = vcmp.ge.f32.partialorder %v2835, 0.0
        %vm2868 = vcmp.ge.f32.partialorder %v2836, 0.0
        %vm2869 = vcmp.ge.f32.partialorder %v2837, 0.0
        %vm2870 = vcmp.ge.f32.partialorder %v2838, 0.0
        %v2871 = vmul.f32 %v2807, 0.2
        %v2872 = vmul.f32 %v2808, 0.2
        %v2873 = vmul.f32 %v2809, 0.2
        %v2874 = vmul.f32 %v2810, 0.2
        %v2875 = vmul.f32 %v2811, 0.2
        %v2876 = vmul.f32 %v2812, 0.2
        %v2877 = vmul.f32 %v2813, 0.2
        %v2878 = vmul.f32 %v2814, 0.2
        %v2879 = vmul.f32 %v2815, 0.2
        %v2880 = vmul.f32 %v2816, 0.2
        %v2881 = vmul.f32 %v2817, 0.2
        %v2882 = vmul.f32 %v2818, 0.2
        %v2883 = vmul.f32 %v2819, 0.2
        %v2884 = vmul.f32 %v2820, 0.2
        %v2885 = vmul.f32 %v2821, 0.2
        %v2886 = vmul.f32 %v2822, 0.2
        %v2887 = vmul.f32 %v2823, 0.2
        %v2888 = vmul.f32 %v2824, 0.2
        %v2889 = vmul.f32 %v2825, 0.2
        %v2890 = vmul.f32 %v2826, 0.2
        %v2891 = vmul.f32 %v2827, 0.2
        %v2892 = vmul.f32 %v2828, 0.2
        %v2893 = vmul.f32 %v2829, 0.2
        %v2894 = vmul.f32 %v2830, 0.2
        %v2895 = vmul.f32 %v2831, 0.2
        %v2896 = vmul.f32 %v2832, 0.2
        %v2897 = vmul.f32 %v2833, 0.2
        %v2898 = vmul.f32 %v2834, 0.2
        %v2899 = vmul.f32 %v2835, 0.2
        %v2900 = vmul.f32 %v2836, 0.2
        %v2901 = vmul.f32 %v2837, 0.2
        %v2902 = vmul.f32 %v2838, 0.2
        %v2903 = vsel %vm2839, %v2807, %v2871
        %v2904 = vsel %vm2840, %v2808, %v2872
        %v2905 = vsel %vm2841, %v2809, %v2873
        %v2906 = vsel %vm2842, %v2810, %v2874
        %v2907 = vsel %vm2843, %v2811, %v2875
        %v2908 = vsel %vm2844, %v2812, %v2876
        %v2909 = vsel %vm2845, %v2813, %v2877
        %v2910 = vsel %vm2846, %v2814, %v2878
        %v2911 = vsel %vm2847, %v2815, %v2879
        %v2912 = vsel %vm2848, %v2816, %v2880
        %v2913 = vsel %vm2849, %v2817, %v2881
        %v2914 = vsel %vm2850, %v2818, %v2882
        %v2915 = vsel %vm2851, %v2819, %v2883
        %v2916 = vsel %vm2852, %v2820, %v2884
        %v2917 = vsel %vm2853, %v2821, %v2885
        %v2918 = vsel %vm2854, %v2822, %v2886
        %v2919 = vsel %vm2855, %v2823, %v2887
        %v2920 = vsel %vm2856, %v2824, %v2888
        %v2921 = vsel %vm2857, %v2825, %v2889
        %v2922 = vsel %vm2858, %v2826, %v2890
        %v2923 = vsel %vm2859, %v2827, %v2891
        %v2924 = vsel %vm2860, %v2828, %v2892
        %v2925 = vsel %vm2861, %v2829, %v2893
        %v2926 = vsel %vm2862, %v2830, %v2894
        %v2927 = vsel %vm2863, %v2831, %v2895
        %v2928 = vsel %vm2864, %v2832, %v2896
        %v2929 = vsel %vm2865, %v2833, %v2897
        %v2930 = vsel %vm2866, %v2834, %v2898
        %v2931 = vsel %vm2867, %v2835, %v2899
        %v2932 = vsel %vm2868, %v2836, %v2900
        %v2933 = vsel %vm2869, %v2837, %v2901
        %v2934 = vsel %vm2870, %v2838, %v2902
        %v2935 = vld [vmem:[#allocation15] sm:$0xff]
        %2936 = vrot.lane.b32.xlu0 %v805, 124
        %v2937 = vpop.permute.xlu0 %2936
        %v2938 = vsel %vm2034, %v2937, 0
        %2940 = vmatprep.subr.mxu0 0.0
        %2941 = vmatpush1.msra.mxu0 %v2935
        %2942 = vmatprep.subr.mxu0 0.0
        %2943 = vmatpush1.msra.mxu0 0.0
        %2944 = vmatprep.subr.mxu0 0.0
        %2945 = vmatpush1.msra.mxu0 0.0
        %2946 = vmatprep.subr.mxu0 0.0
        %2947 = vmatpush1.msra.mxu0 0.0
        %2948 = vmatprep.subr.mxu0 0.0
        %2949 = vmatpush1.msra.mxu0 0.0
        %2950 = vmatprep.subr.mxu0 0.0
        %2951 = vmatpush1.msra.mxu0 0.0
        %2952 = vmatprep.subr.mxu0 0.0
        %2953 = vmatpush1.msra.mxu0 0.0
        %2954 = vmatprep.subr.mxu0 0.0
        %2955 = vmatpush1.msra.mxu0 0.0
        %2956 = vmatprep.subr.mxu0 0.0
        %2957 = vmatpush1.msra.mxu0 0.0
        %2958 = vmatprep.subr.mxu0 0.0
        %2959 = vmatpush1.msra.mxu0 0.0
        %2960 = vmatprep.subr.mxu0 0.0
        %2961 = vmatpush1.msra.mxu0 0.0
        %2962 = vmatprep.subr.mxu0 0.0
        %2963 = vmatpush1.msra.mxu0 0.0
        %2964 = vmatprep.subr.mxu0 0.0
        %2965 = vmatpush1.msra.mxu0 0.0
        %2966 = vmatprep.subr.mxu0 0.0
        %2967 = vmatpush1.msra.mxu0 0.0
        %2968 = vmatprep.subr.mxu0 0.0
        %2969 = vmatpush1.msra.mxu0 0.0
        %2970 = vmatprep.subr.mxu0 0.0
        %2971 = vmatpush1.msra.mxu0 0.0
        %2972 = vmatprep.subr.mxu0 0.0
        %2973 = vmatpush1.msra.mxu0 0.0
        %2974 = vmatprep.subr.mxu0 0.0
        %2975 = vmatpush1.msra.mxu0 0.0
        %2976 = vmatprep.subr.mxu0 0.0
        %2977 = vmatpush1.msra.mxu0 0.0
        %2978 = vmatprep.subr.mxu0 0.0
        %2979 = vmatpush1.msra.mxu0 0.0
        %2980 = vmatprep.subr.mxu0 0.0
        %2981 = vmatpush1.msra.mxu0 0.0
        %2982 = vmatprep.subr.mxu0 0.0
        %2983 = vmatpush1.msra.mxu0 0.0
        %2984 = vmatprep.subr.mxu0 0.0
        %2985 = vmatpush1.msra.mxu0 0.0
        %2986 = vmatprep.subr.mxu0 0.0
        %2987 = vmatpush1.msra.mxu0 0.0
        %2988 = vmatprep.subr.mxu0 0.0
        %2989 = vmatpush1.msra.mxu0 0.0
        %2990 = vmatprep.subr.mxu0 0.0
        %2991 = vmatpush1.msra.mxu0 0.0
        %2992 = vmatprep.subr.mxu0 0.0
        %2993 = vmatpush1.msra.mxu0 0.0
        %2994 = vmatprep.subr.mxu0 0.0
        %2995 = vmatpush1.msra.mxu0 0.0
        %2996 = vmatprep.subr.mxu0 0.0
        %2997 = vmatpush1.msra.mxu0 0.0
        %2998 = vmatprep.subr.mxu0 0.0
        %2999 = vmatpush1.msra.mxu0 0.0
        %3000 = vmatprep.subr.mxu0 0.0
        %3001 = vmatpush1.msra.mxu0 0.0
        %3002 = vmatprep.subr.mxu0 0.0
        %3003 = vmatpush1.msra.mxu0 0.0
        %3004 = vmatprep.mubr.f32.mxu0 0.0
        %3005 = vmatmul.mubr.f32.gmra.mrb[0].mxu0 %v2938
        %v3006 = vpop.f32.mrb[0].mxu0
        %v3007 = vadd.f32 1e-08, %v3006
        %v3008 = vpop.f32.mrb[0].mxu0
        %3009 = vdwg.mxu0
        %v3010 = vrsqrt.pop %v3007
        %3011 = vst.msk [vmem:[#allocation2] sm:$0xff] %vm2034, 0.0
        %3012 = vst.msk [vmem:[#allocation2 + $0x8] sm:$0xff] %vm2034, 0.0
        %vm3013 = vcmask 58368
        %3014 = vst.msk [vmem:[#allocation2 + $0x10] sm:$0x3] %vm3013, 0.0
        %3015 = vst.msk [vmem:[#allocation2 + $0x18] sm:$0xff] %vm2034, 0.0
        %3016 = vst.msk [vmem:[#allocation2 + $0x20] sm:$0xff] %vm2034, 0.0
        %3017 = vst.msk [vmem:[#allocation2 + $0x28] sm:$0x3] %vm3013, 0.0
        %3018 = vst.msk [vmem:[#allocation2 + $0x30] sm:$0xff] %vm2034, 0.0
        %3019 = vst.msk [vmem:[#allocation2 + $0x38] sm:$0xff] %vm2034, 0.0
        %3020 = vst.msk [vmem:[#allocation2 + $0x40] sm:$0x3] %vm3013, 0.0
        %3021 = vst.msk [vmem:[#allocation2 + $0x48] sm:$0xff] %vm2034, 0.0
        %3022 = vst.msk [vmem:[#allocation2 + $0x50] sm:$0xff] %vm2034, 0.0
        %3023 = vst.msk [vmem:[#allocation2 + $0x58] sm:$0x3] %vm3013, 0.0
        %3024 = vst.msk [vmem:[#allocation2 + $0x60] sm:$0xff] %vm2034, 0.0
        %3025 = vst.msk [vmem:[#allocation2 + $0x68] sm:$0xff] %vm2034, 0.0
        %3026 = vst.msk [vmem:[#allocation2 + $0x70] sm:$0x3] %vm3013, 0.0
        %3027 = vst.msk [vmem:[#allocation2 + $0x78] sm:$0xff] %vm2034, 0.0
        %3028 = vst.msk [vmem:[#allocation2 + $0x80] sm:$0xff] %vm2034, 0.0
        %3029 = vst.msk [vmem:[#allocation2 + $0x88] sm:$0x3] %vm3013, 0.0
        %3030 = vst.msk [vmem:[#allocation2 + $0x90] sm:$0xff] %vm2034, 0.0
        %3031 = vst.msk [vmem:[#allocation2 + $0x98] sm:$0xff] %vm2034, 0.0
        %3032 = vst.msk [vmem:[#allocation2 + $0xa0] sm:$0x3] %vm3013, 0.0
        %3033 = vst.msk [vmem:[#allocation2 + $0xa8] sm:$0xff] %vm2034, 0.0
        %3034 = vst.msk [vmem:[#allocation2 + $0xb0] sm:$0xff] %vm2034, 0.0
        %3035 = vst.msk [vmem:[#allocation2 + $0xb8] sm:$0x3] %vm3013, 0.0
        %3036 = vst.msk [vmem:[#allocation2 + $0xc0] sm:$0xff] %vm2034, 0.0
        %3037 = vst.msk [vmem:[#allocation2 + $0xc8] sm:$0xff] %vm2034, 0.0
        %3038 = vst.msk [vmem:[#allocation2 + $0xd0] sm:$0x3] %vm3013, 0.0
        %3039 = vst.msk [vmem:[#allocation2 + $0xd8] sm:$0xff] %vm2034, 0.0
        %3040 = vst.msk [vmem:[#allocation2 + $0xe0] sm:$0xff] %vm2034, 0.0
        %3041 = vst.msk [vmem:[#allocation2 + $0xe8] sm:$0x3] %vm3013, 0.0
        %3042 = vst.msk [vmem:[#allocation2 + $0xf0] sm:$0xff] %vm2034, 0.0
        %3043 = vst.msk [vmem:[#allocation2 + $0xf8] sm:$0xff] %vm2034, 0.0
        %3044 = vst.msk [vmem:[#allocation2 + $0x100] sm:$0x3] %vm3013, 0.0
        %3045 = vst.msk [vmem:[#allocation2 + $0x108] sm:$0xff] %vm2034, 0.0
        %3046 = vst.msk [vmem:[#allocation2 + $0x110] sm:$0xff] %vm2034, 0.0
        %3047 = vst.msk [vmem:[#allocation2 + $0x118] sm:$0x3] %vm3013, 0.0
        %3048 = vst.msk [vmem:[#allocation2 + $0x120] sm:$0xff] %vm2034, 0.0
        %3049 = vst.msk [vmem:[#allocation2 + $0x128] sm:$0xff] %vm2034, 0.0
        %3050 = vst.msk [vmem:[#allocation2 + $0x130] sm:$0x3] %vm3013, 0.0
        %3051 = vst.msk [vmem:[#allocation2 + $0x138] sm:$0xff] %vm2034, 0.0
        %3052 = vst.msk [vmem:[#allocation2 + $0x140] sm:$0xff] %vm2034, 0.0
        %3053 = vst.msk [vmem:[#allocation2 + $0x148] sm:$0x3] %vm3013, 0.0
        %3054 = vst.msk [vmem:[#allocation2 + $0x150] sm:$0xff] %vm2034, 0.0
        %3055 = vst.msk [vmem:[#allocation2 + $0x158] sm:$0xff] %vm2034, 0.0
        %3056 = vst.msk [vmem:[#allocation2 + $0x160] sm:$0x3] %vm3013, 0.0
        %3057 = vst.msk [vmem:[#allocation2 + $0x168] sm:$0xff] %vm2034, 0.0
        %3058 = vst.msk [vmem:[#allocation2 + $0x170] sm:$0xff] %vm2034, 0.0
        %3059 = vst.msk [vmem:[#allocation2 + $0x178] sm:$0x3] %vm3013, 0.0
        %3060 = vst.msk [vmem:[#allocation2 + $0x180] sm:$0xff] %vm2034, 0.0
        %3061 = vst.msk [vmem:[#allocation2 + $0x188] sm:$0xff] %vm2034, 0.0
        %3062 = vst.msk [vmem:[#allocation2 + $0x190] sm:$0x3] %vm3013, 0.0
        %3063 = vst.msk [vmem:[#allocation2 + $0x198] sm:$0xff] %vm2034, 0.0
        %3064 = vst.msk [vmem:[#allocation2 + $0x1a0] sm:$0xff] %vm2034, 0.0
        %3065 = vst.msk [vmem:[#allocation2 + $0x1a8] sm:$0x3] %vm3013, 0.0
        %3067 = vrot.lane.b32.xlu0 %v943, 124
        %v3068 = vpop.permute.xlu0 %3067
        %v3070 = vmul.f32 %v2903, %v3068
        %v3071 = vmul.f32 %v2904, %v3068
        %v3072 = vmul.f32 %v2905, %v3068
        %v3073 = vmul.f32 %v2906, %v3068
        %v3074 = vmul.f32 %v2907, %v3068
        %v3075 = vmul.f32 %v2908, %v3068
        %v3076 = vmul.f32 %v2909, %v3068
        %v3077 = vmul.f32 %v2910, %v3068
        %v3078 = vmul.f32 %v2911, %v3068
        %v3079 = vmul.f32 %v2912, %v3068
        %v3080 = vmul.f32 %v2913, %v3068
        %v3081 = vmul.f32 %v2914, %v3068
        %v3082 = vmul.f32 %v2915, %v3068
        %v3083 = vmul.f32 %v2916, %v3068
        %v3084 = vmul.f32 %v2917, %v3068
        %v3085 = vmul.f32 %v2918, %v3068
        %v3086 = vmul.f32 %v2919, %v3068
        %v3087 = vmul.f32 %v2920, %v3068
        %v3088 = vmul.f32 %v2921, %v3068
        %v3089 = vmul.f32 %v2922, %v3068
        %v3090 = vmul.f32 %v2923, %v3068
        %v3091 = vmul.f32 %v2924, %v3068
        %v3092 = vmul.f32 %v2925, %v3068
        %v3093 = vmul.f32 %v2926, %v3068
        %v3094 = vmul.f32 %v2927, %v3068
        %v3095 = vmul.f32 %v2928, %v3068
        %v3096 = vmul.f32 %v2929, %v3068
        %v3097 = vmul.f32 %v2930, %v3068
        %v3098 = vmul.f32 %v2931, %v3068
        %v3099 = vmul.f32 %v2932, %v3068
        %v3100 = vmul.f32 %v2933, %v3068
        %v3101 = vmul.f32 %v2934, %v3068
        %s3102 = scalar_lea.vmem [#allocation2], 24
        %3103 = vst.msk [vmem:[%s3102 + $0x1] sm:$0xff] %vm2034, %v3070
        %3104 = vst.msk [vmem:[%s3102 + $0x9] sm:$0xff] %vm2034, %v3071
        %3105 = vst.msk [vmem:[%s3102 + $0x19] sm:$0xff] %vm2034, %v3072
        %3106 = vst.msk [vmem:[%s3102 + $0x21] sm:$0xff] %vm2034, %v3073
        %3107 = vst.msk [vmem:[%s3102 + $0x31] sm:$0xff] %vm2034, %v3074
        %3108 = vst.msk [vmem:[%s3102 + $0x39] sm:$0xff] %vm2034, %v3075
        %3109 = vst.msk [vmem:[%s3102 + $0x49] sm:$0xff] %vm2034, %v3076
        %3110 = vst.msk [vmem:[%s3102 + $0x51] sm:$0xff] %vm2034, %v3077
        %3111 = vst.msk [vmem:[%s3102 + $0x61] sm:$0xff] %vm2034, %v3078
        %3112 = vst.msk [vmem:[%s3102 + $0x69] sm:$0xff] %vm2034, %v3079
        %3113 = vst.msk [vmem:[%s3102 + $0x79] sm:$0xff] %vm2034, %v3080
        %3114 = vst.msk [vmem:[%s3102 + $0x81] sm:$0xff] %vm2034, %v3081
        %3115 = vst.msk [vmem:[%s3102 + $0x91] sm:$0xff] %vm2034, %v3082
        %3116 = vst.msk [vmem:[%s3102 + $0x99] sm:$0xff] %vm2034, %v3083
        %3117 = vst.msk [vmem:[%s3102 + $0xa9] sm:$0xff] %vm2034, %v3084
        %3118 = vst.msk [vmem:[%s3102 + $0xb1] sm:$0xff] %vm2034, %v3085
        %3119 = vst.msk [vmem:[%s3102 + $0xc1] sm:$0xff] %vm2034, %v3086
        %3120 = vst.msk [vmem:[%s3102 + $0xc9] sm:$0xff] %vm2034, %v3087
        %3121 = vst.msk [vmem:[%s3102 + $0xd9] sm:$0xff] %vm2034, %v3088
        %3122 = vst.msk [vmem:[%s3102 + $0xe1] sm:$0xff] %vm2034, %v3089
        %3123 = vst.msk [vmem:[%s3102 + $0xf1] sm:$0xff] %vm2034, %v3090
        %3124 = vst.msk [vmem:[%s3102 + $0xf9] sm:$0xff] %vm2034, %v3091
        %3125 = vst.msk [vmem:[%s3102 + $0x109] sm:$0xff] %vm2034, %v3092
        %3126 = vst.msk [vmem:[%s3102 + $0x111] sm:$0xff] %vm2034, %v3093
        %3127 = vst.msk [vmem:[%s3102 + $0x121] sm:$0xff] %vm2034, %v3094
        %3128 = vst.msk [vmem:[%s3102 + $0x129] sm:$0xff] %vm2034, %v3095
        %3129 = vst.msk [vmem:[%s3102 + $0x139] sm:$0xff] %vm2034, %v3096
        %3130 = vst.msk [vmem:[%s3102 + $0x141] sm:$0xff] %vm2034, %v3097
        %3131 = vst.msk [vmem:[%s3102 + $0x151] sm:$0xff] %vm2034, %v3098
        %3132 = vst.msk [vmem:[%s3102 + $0x159] sm:$0xff] %vm2034, %v3099
        %3133 = vst.msk [vmem:[%s3102 + $0x169] sm:$0xff] %vm2034, %v3100
        %3134 = vst.msk [vmem:[%s3102 + $0x171] sm:$0xff] %vm2034, %v3101
        %v3135 = vld [vmem:[#allocation2] sm:$0xff]
        %v3136 = vld [vmem:[#allocation2 + $0x8] sm:$0xff]
        %v3137 = vld [vmem:[#allocation2 + $0x10] sm:$0x3]
        %v3138 = vld [vmem:[#allocation2 + $0x18] sm:$0xff]
        %v3139 = vld [vmem:[#allocation2 + $0x20] sm:$0xff]
        %v3140 = vld [vmem:[#allocation2 + $0x28] sm:$0x3]
        %v3141 = vld [vmem:[#allocation2 + $0x30] sm:$0xff]
        %v3142 = vld [vmem:[#allocation2 + $0x38] sm:$0xff]
        %v3143 = vld [vmem:[#allocation2 + $0x40] sm:$0x3]
        %v3144 = vld [vmem:[#allocation2 + $0x48] sm:$0xff]
        %v3145 = vld [vmem:[#allocation2 + $0x50] sm:$0xff]
        %v3146 = vld [vmem:[#allocation2 + $0x58] sm:$0x3]
        %v3147 = vld [vmem:[#allocation2 + $0x60] sm:$0xff]
        %v3148 = vld [vmem:[#allocation2 + $0x68] sm:$0xff]
        %v3149 = vld [vmem:[#allocation2 + $0x70] sm:$0x3]
        %v3150 = vld [vmem:[#allocation2 + $0x78] sm:$0xff]
        %v3151 = vld [vmem:[#allocation2 + $0x80] sm:$0xff]
        %v3152 = vld [vmem:[#allocation2 + $0x88] sm:$0x3]
        %v3153 = vld [vmem:[#allocation2 + $0x90] sm:$0xff]
        %v3154 = vld [vmem:[#allocation2 + $0x98] sm:$0xff]
        %v3155 = vld [vmem:[#allocation2 + $0xa0] sm:$0x3]
        %v3156 = vld [vmem:[#allocation2 + $0xa8] sm:$0xff]
        %v3157 = vld [vmem:[#allocation2 + $0xb0] sm:$0xff]
        %v3158 = vld [vmem:[#allocation2 + $0xb8] sm:$0x3]
        %v3159 = vld [vmem:[#allocation2 + $0xc0] sm:$0xff]
        %v3160 = vld [vmem:[#allocation2 + $0xc8] sm:$0xff]
        %v3161 = vld [vmem:[#allocation2 + $0xd0] sm:$0x3]
        %v3162 = vld [vmem:[#allocation2 + $0xd8] sm:$0xff]
        %v3163 = vld [vmem:[#allocation2 + $0xe0] sm:$0xff]
        %v3164 = vld [vmem:[#allocation2 + $0xe8] sm:$0x3]
        %v3165 = vld [vmem:[#allocation2 + $0xf0] sm:$0xff]
        %v3166 = vld [vmem:[#allocation2 + $0xf8] sm:$0xff]
        %v3167 = vld [vmem:[#allocation2 + $0x100] sm:$0x3]
        %v3168 = vld [vmem:[#allocation2 + $0x108] sm:$0xff]
        %v3169 = vld [vmem:[#allocation2 + $0x110] sm:$0xff]
        %v3170 = vld [vmem:[#allocation2 + $0x118] sm:$0x3]
        %v3171 = vld [vmem:[#allocation2 + $0x120] sm:$0xff]
        %v3172 = vld [vmem:[#allocation2 + $0x128] sm:$0xff]
        %v3173 = vld [vmem:[#allocation2 + $0x130] sm:$0x3]
        %v3174 = vld [vmem:[#allocation2 + $0x138] sm:$0xff]
        %v3175 = vld [vmem:[#allocation2 + $0x140] sm:$0xff]
        %v3176 = vld [vmem:[#allocation2 + $0x148] sm:$0x3]
        %v3177 = vld [vmem:[#allocation2 + $0x150] sm:$0xff]
        %v3178 = vld [vmem:[#allocation2 + $0x158] sm:$0xff]
        %v3179 = vld [vmem:[#allocation2 + $0x160] sm:$0x3]
        %v3180 = vld [vmem:[#allocation2 + $0x168] sm:$0xff]
        %v3181 = vld [vmem:[#allocation2 + $0x170] sm:$0xff]
        %v3182 = vld [vmem:[#allocation2 + $0x178] sm:$0x3]
        %v3183 = vld [vmem:[#allocation2 + $0x180] sm:$0xff]
        %v3184 = vld [vmem:[#allocation2 + $0x188] sm:$0xff]
        %v3185 = vld [vmem:[#allocation2 + $0x190] sm:$0x3]
        %v3186 = vld [vmem:[#allocation2 + $0x198] sm:$0xff]
        %v3187 = vld [vmem:[#allocation2 + $0x1a0] sm:$0xff]
        %v3188 = vld [vmem:[#allocation2 + $0x1a8] sm:$0x3]
        %v3237 = vrot.slane %v3135, 1
        %v3238 = vrot.slane %v3136, 1
        %v3239 = vsel %vm1046, %v3237, %v3238
        %v3240 = vrot.slane %v3137, 1
        %v3241 = vsel %vm1046, %v3238, %v3240
        %v3242 = vrot.slane %v3138, 1
        %v3243 = vrot.slane %v3139, 1
        %v3244 = vsel %vm1046, %v3242, %v3243
        %v3245 = vrot.slane %v3140, 1
        %v3246 = vsel %vm1046, %v3243, %v3245
        %v3247 = vrot.slane %v3141, 1
        %v3248 = vrot.slane %v3142, 1
        %v3249 = vsel %vm1046, %v3247, %v3248
        %v3250 = vrot.slane %v3143, 1
        %v3251 = vsel %vm1046, %v3248, %v3250
        %v3252 = vrot.slane %v3144, 1
        %v3253 = vrot.slane %v3145, 1
        %v3254 = vsel %vm1046, %v3252, %v3253
        %v3255 = vrot.slane %v3146, 1
        %v3256 = vsel %vm1046, %v3253, %v3255
        %v3257 = vrot.slane %v3147, 1
        %v3258 = vrot.slane %v3148, 1
        %v3259 = vsel %vm1046, %v3257, %v3258
        %v3260 = vrot.slane %v3149, 1
        %v3261 = vsel %vm1046, %v3258, %v3260
        %v3262 = vrot.slane %v3150, 1
        %v3263 = vrot.slane %v3151, 1
        %v3264 = vsel %vm1046, %v3262, %v3263
        %v3265 = vrot.slane %v3152, 1
        %v3266 = vsel %vm1046, %v3263, %v3265
        %v3267 = vrot.slane %v3153, 1
        %v3268 = vrot.slane %v3154, 1
        %v3269 = vsel %vm1046, %v3267, %v3268
        %v3270 = vrot.slane %v3155, 1
        %v3271 = vsel %vm1046, %v3268, %v3270
        %v3272 = vrot.slane %v3156, 1
        %v3273 = vrot.slane %v3157, 1
        %v3274 = vsel %vm1046, %v3272, %v3273
        %v3275 = vrot.slane %v3158, 1
        %v3276 = vsel %vm1046, %v3273, %v3275
        %v3277 = vrot.slane %v3159, 1
        %v3278 = vrot.slane %v3160, 1
        %v3279 = vsel %vm1046, %v3277, %v3278
        %v3280 = vrot.slane %v3161, 1
        %v3281 = vsel %vm1046, %v3278, %v3280
        %v3282 = vrot.slane %v3162, 1
        %v3283 = vrot.slane %v3163, 1
        %v3284 = vsel %vm1046, %v3282, %v3283
        %v3285 = vrot.slane %v3164, 1
        %v3286 = vsel %vm1046, %v3283, %v3285
        %v3287 = vrot.slane %v3165, 1
        %v3288 = vrot.slane %v3166, 1
        %v3289 = vsel %vm1046, %v3287, %v3288
        %v3290 = vrot.slane %v3167, 1
        %v3291 = vsel %vm1046, %v3288, %v3290
        %v3292 = vrot.slane %v3168, 1
        %v3293 = vrot.slane %v3169, 1
        %v3294 = vsel %vm1046, %v3292, %v3293
        %v3295 = vrot.slane %v3170, 1
        %v3296 = vsel %vm1046, %v3293, %v3295
        %v3297 = vrot.slane %v3171, 1
        %v3298 = vrot.slane %v3172, 1
        %v3299 = vsel %vm1046, %v3297, %v3298
        %v3300 = vrot.slane %v3173, 1
        %v3301 = vsel %vm1046, %v3298, %v3300
        %v3302 = vrot.slane %v3174, 1
        %v3303 = vrot.slane %v3175, 1
        %v3304 = vsel %vm1046, %v3302, %v3303
        %v3305 = vrot.slane %v3176, 1
        %v3306 = vsel %vm1046, %v3303, %v3305
        %v3307 = vrot.slane %v3177, 1
        %v3308 = vrot.slane %v3178, 1
        %v3309 = vsel %vm1046, %v3307, %v3308
        %v3310 = vrot.slane %v3179, 1
        %v3311 = vsel %vm1046, %v3308, %v3310
        %v3312 = vrot.slane %v3180, 1
        %v3313 = vrot.slane %v3181, 1
        %v3314 = vsel %vm1046, %v3312, %v3313
        %v3315 = vrot.slane %v3182, 1
        %v3316 = vsel %vm1046, %v3313, %v3315
        %v3317 = vrot.slane %v3135, 2
        %v3318 = vrot.slane %v3136, 2
        %v3319 = vsel %vm1127, %v3317, %v3318
        %v3320 = vrot.slane %v3137, 2
        %v3321 = vsel %vm1127, %v3318, %v3320
        %v3322 = vrot.slane %v3138, 2
        %v3323 = vrot.slane %v3139, 2
        %v3324 = vsel %vm1127, %v3322, %v3323
        %v3325 = vrot.slane %v3140, 2
        %v3326 = vsel %vm1127, %v3323, %v3325
        %v3327 = vrot.slane %v3141, 2
        %v3328 = vrot.slane %v3142, 2
        %v3329 = vsel %vm1127, %v3327, %v3328
        %v3330 = vrot.slane %v3143, 2
        %v3331 = vsel %vm1127, %v3328, %v3330
        %v3332 = vrot.slane %v3144, 2
        %v3333 = vrot.slane %v3145, 2
        %v3334 = vsel %vm1127, %v3332, %v3333
        %v3335 = vrot.slane %v3146, 2
        %v3336 = vsel %vm1127, %v3333, %v3335
        %v3337 = vrot.slane %v3147, 2
        %v3338 = vrot.slane %v3148, 2
        %v3339 = vsel %vm1127, %v3337, %v3338
        %v3340 = vrot.slane %v3149, 2
        %v3341 = vsel %vm1127, %v3338, %v3340
        %v3342 = vrot.slane %v3150, 2
        %v3343 = vrot.slane %v3151, 2
        %v3344 = vsel %vm1127, %v3342, %v3343
        %v3345 = vrot.slane %v3152, 2
        %v3346 = vsel %vm1127, %v3343, %v3345
        %v3347 = vrot.slane %v3153, 2
        %v3348 = vrot.slane %v3154, 2
        %v3349 = vsel %vm1127, %v3347, %v3348
        %v3350 = vrot.slane %v3155, 2
        %v3351 = vsel %vm1127, %v3348, %v3350
        %v3352 = vrot.slane %v3156, 2
        %v3353 = vrot.slane %v3157, 2
        %v3354 = vsel %vm1127, %v3352, %v3353
        %v3355 = vrot.slane %v3158, 2
        %v3356 = vsel %vm1127, %v3353, %v3355
        %v3357 = vrot.slane %v3159, 2
        %v3358 = vrot.slane %v3160, 2
        %v3359 = vsel %vm1127, %v3357, %v3358
        %v3360 = vrot.slane %v3161, 2
        %v3361 = vsel %vm1127, %v3358, %v3360
        %v3362 = vrot.slane %v3162, 2
        %v3363 = vrot.slane %v3163, 2
        %v3364 = vsel %vm1127, %v3362, %v3363
        %v3365 = vrot.slane %v3164, 2
        %v3366 = vsel %vm1127, %v3363, %v3365
        %v3367 = vrot.slane %v3165, 2
        %v3368 = vrot.slane %v3166, 2
        %v3369 = vsel %vm1127, %v3367, %v3368
        %v3370 = vrot.slane %v3167, 2
        %v3371 = vsel %vm1127, %v3368, %v3370
        %v3372 = vrot.slane %v3168, 2
        %v3373 = vrot.slane %v3169, 2
        %v3374 = vsel %vm1127, %v3372, %v3373
        %v3375 = vrot.slane %v3170, 2
        %v3376 = vsel %vm1127, %v3373, %v3375
        %v3377 = vrot.slane %v3171, 2
        %v3378 = vrot.slane %v3172, 2
        %v3379 = vsel %vm1127, %v3377, %v3378
        %v3380 = vrot.slane %v3173, 2
        %v3381 = vsel %vm1127, %v3378, %v3380
        %v3382 = vrot.slane %v3174, 2
        %v3383 = vrot.slane %v3175, 2
        %v3384 = vsel %vm1127, %v3382, %v3383
        %v3385 = vrot.slane %v3176, 2
        %v3386 = vsel %vm1127, %v3383, %v3385
        %v3387 = vrot.slane %v3177, 2
        %v3388 = vrot.slane %v3178, 2
        %v3389 = vsel %vm1127, %v3387, %v3388
        %v3390 = vrot.slane %v3179, 2
        %v3391 = vsel %vm1127, %v3388, %v3390
        %v3392 = vrot.slane %v3180, 2
        %v3393 = vrot.slane %v3181, 2
        %v3394 = vsel %vm1127, %v3392, %v3393
        %v3395 = vrot.slane %v3182, 2
        %v3396 = vsel %vm1127, %v3393, %v3395
        %v3400 = vrot.slane %v3183, 1
        %v3401 = vrot.slane %v3184, 1
        %v3402 = vsel %vm1046, %v3400, %v3401
        %v3403 = vrot.slane %v3185, 1
        %v3404 = vsel %vm1046, %v3401, %v3403
        %v3405 = vrot.slane %v3183, 2
        %v3406 = vrot.slane %v3184, 2
        %v3407 = vsel %vm1127, %v3405, %v3406
        %v3408 = vrot.slane %v3185, 2
        %v3409 = vsel %vm1127, %v3406, %v3408
        %v3413 = vrot.slane %v3186, 1
        %v3414 = vrot.slane %v3187, 1
        %v3415 = vsel %vm1046, %v3413, %v3414
        %v3416 = vrot.slane %v3188, 1
        %v3417 = vsel %vm1046, %v3414, %v3416
        %v3418 = vrot.slane %v3186, 2
        %v3419 = vrot.slane %v3187, 2
        %v3420 = vsel %vm1127, %v3418, %v3419
        %v3421 = vrot.slane %v3188, 2
        %v3422 = vsel %vm1127, %v3419, %v3421
        %3423 = vrot.lane.b32.xlu0 %v3239, 8
        %v3424 = vpop.permute.xlu0 %3423
        %3425 = vrot.lane.b32.xlu0 %v3241, 8
        %v3426 = vpop.permute.xlu0 %3425
        %3427 = vrot.lane.b32.xlu0 %v3244, 8
        %v3428 = vpop.permute.xlu0 %3427
        %3429 = vrot.lane.b32.xlu0 %v3246, 8
        %v3430 = vpop.permute.xlu0 %3429
        %3431 = vrot.lane.b32.xlu0 %v3249, 8
        %v3432 = vpop.permute.xlu0 %3431
        %3433 = vrot.lane.b32.xlu0 %v3251, 8
        %v3434 = vpop.permute.xlu0 %3433
        %3435 = vrot.lane.b32.xlu0 %v3254, 8
        %v3436 = vpop.permute.xlu0 %3435
        %3437 = vrot.lane.b32.xlu0 %v3256, 8
        %v3438 = vpop.permute.xlu0 %3437
        %3439 = vrot.lane.b32.xlu0 %v3259, 8
        %v3440 = vpop.permute.xlu0 %3439
        %3441 = vrot.lane.b32.xlu0 %v3261, 8
        %v3442 = vpop.permute.xlu0 %3441
        %3443 = vrot.lane.b32.xlu0 %v3264, 8
        %v3444 = vpop.permute.xlu0 %3443
        %3445 = vrot.lane.b32.xlu0 %v3266, 8
        %v3446 = vpop.permute.xlu0 %3445
        %3447 = vrot.lane.b32.xlu0 %v3269, 8
        %v3448 = vpop.permute.xlu0 %3447
        %3449 = vrot.lane.b32.xlu0 %v3271, 8
        %v3450 = vpop.permute.xlu0 %3449
        %3451 = vrot.lane.b32.xlu0 %v3274, 8
        %v3452 = vpop.permute.xlu0 %3451
        %3453 = vrot.lane.b32.xlu0 %v3276, 8
        %v3454 = vpop.permute.xlu0 %3453
        %3455 = vrot.lane.b32.xlu0 %v3279, 8
        %v3456 = vpop.permute.xlu0 %3455
        %3457 = vrot.lane.b32.xlu0 %v3281, 8
        %v3458 = vpop.permute.xlu0 %3457
        %3459 = vrot.lane.b32.xlu0 %v3284, 8
        %v3460 = vpop.permute.xlu0 %3459
        %3461 = vrot.lane.b32.xlu0 %v3286, 8
        %v3462 = vpop.permute.xlu0 %3461
        %3463 = vrot.lane.b32.xlu0 %v3289, 8
        %v3464 = vpop.permute.xlu0 %3463
        %3465 = vrot.lane.b32.xlu0 %v3291, 8
        %v3466 = vpop.permute.xlu0 %3465
        %3467 = vrot.lane.b32.xlu0 %v3294, 8
        %v3468 = vpop.permute.xlu0 %3467
        %3469 = vrot.lane.b32.xlu0 %v3296, 8
        %v3470 = vpop.permute.xlu0 %3469
        %3471 = vrot.lane.b32.xlu0 %v3299, 8
        %v3472 = vpop.permute.xlu0 %3471
        %3473 = vrot.lane.b32.xlu0 %v3301, 8
        %v3474 = vpop.permute.xlu0 %3473
        %3475 = vrot.lane.b32.xlu0 %v3304, 8
        %v3476 = vpop.permute.xlu0 %3475
        %3477 = vrot.lane.b32.xlu0 %v3306, 8
        %v3478 = vpop.permute.xlu0 %3477
        %3479 = vrot.lane.b32.xlu0 %v3309, 8
        %v3480 = vpop.permute.xlu0 %3479
        %3481 = vrot.lane.b32.xlu0 %v3311, 8
        %v3482 = vpop.permute.xlu0 %3481
        %3483 = vrot.lane.b32.xlu0 %v3314, 8
        %v3484 = vpop.permute.xlu0 %3483
        %3485 = vrot.lane.b32.xlu0 %v3316, 8
        %v3486 = vpop.permute.xlu0 %3485
        %3519 = vrot.lane.b32.xlu0 %v3319, 16
        %v3520 = vpop.permute.xlu0 %3519
        %3521 = vrot.lane.b32.xlu0 %v3321, 16
        %v3522 = vpop.permute.xlu0 %3521
        %3523 = vrot.lane.b32.xlu0 %v3324, 16
        %v3524 = vpop.permute.xlu0 %3523
        %3525 = vrot.lane.b32.xlu0 %v3326, 16
        %v3526 = vpop.permute.xlu0 %3525
        %3527 = vrot.lane.b32.xlu0 %v3329, 16
        %v3528 = vpop.permute.xlu0 %3527
        %3529 = vrot.lane.b32.xlu0 %v3331, 16
        %v3530 = vpop.permute.xlu0 %3529
        %3531 = vrot.lane.b32.xlu0 %v3334, 16
        %v3532 = vpop.permute.xlu0 %3531
        %3533 = vrot.lane.b32.xlu0 %v3336, 16
        %v3534 = vpop.permute.xlu0 %3533
        %3535 = vrot.lane.b32.xlu0 %v3339, 16
        %v3536 = vpop.permute.xlu0 %3535
        %3537 = vrot.lane.b32.xlu0 %v3341, 16
        %v3538 = vpop.permute.xlu0 %3537
        %3539 = vrot.lane.b32.xlu0 %v3344, 16
        %v3540 = vpop.permute.xlu0 %3539
        %3541 = vrot.lane.b32.xlu0 %v3346, 16
        %v3542 = vpop.permute.xlu0 %3541
        %3543 = vrot.lane.b32.xlu0 %v3349, 16
        %v3544 = vpop.permute.xlu0 %3543
        %3545 = vrot.lane.b32.xlu0 %v3351, 16
        %v3546 = vpop.permute.xlu0 %3545
        %3547 = vrot.lane.b32.xlu0 %v3354, 16
        %v3548 = vpop.permute.xlu0 %3547
        %3549 = vrot.lane.b32.xlu0 %v3356, 16
        %v3550 = vpop.permute.xlu0 %3549
        %3551 = vrot.lane.b32.xlu0 %v3359, 16
        %v3552 = vpop.permute.xlu0 %3551
        %3553 = vrot.lane.b32.xlu0 %v3361, 16
        %v3554 = vpop.permute.xlu0 %3553
        %3555 = vrot.lane.b32.xlu0 %v3364, 16
        %v3556 = vpop.permute.xlu0 %3555
        %3557 = vrot.lane.b32.xlu0 %v3366, 16
        %v3558 = vpop.permute.xlu0 %3557
        %3559 = vrot.lane.b32.xlu0 %v3369, 16
        %v3560 = vpop.permute.xlu0 %3559
        %3561 = vrot.lane.b32.xlu0 %v3371, 16
        %v3562 = vpop.permute.xlu0 %3561
        %3563 = vrot.lane.b32.xlu0 %v3374, 16
        %v3564 = vpop.permute.xlu0 %3563
        %3565 = vrot.lane.b32.xlu0 %v3376, 16
        %v3566 = vpop.permute.xlu0 %3565
        %3567 = vrot.lane.b32.xlu0 %v3379, 16
        %v3568 = vpop.permute.xlu0 %3567
        %3569 = vrot.lane.b32.xlu0 %v3381, 16
        %v3570 = vpop.permute.xlu0 %3569
        %3571 = vrot.lane.b32.xlu0 %v3384, 16
        %v3572 = vpop.permute.xlu0 %3571
        %3573 = vrot.lane.b32.xlu0 %v3386, 16
        %v3574 = vpop.permute.xlu0 %3573
        %3575 = vrot.lane.b32.xlu0 %v3389, 16
        %v3576 = vpop.permute.xlu0 %3575
        %3577 = vrot.lane.b32.xlu0 %v3391, 16
        %v3578 = vpop.permute.xlu0 %3577
        %3579 = vrot.lane.b32.xlu0 %v3394, 16
        %v3580 = vpop.permute.xlu0 %3579
        %3581 = vrot.lane.b32.xlu0 %v3396, 16
        %v3582 = vpop.permute.xlu0 %3581
        %3615 = vrot.lane.b32.xlu0 %v3138, 24
        %v3616 = vpop.permute.xlu0 %3615
        %3617 = vrot.lane.b32.xlu0 %v3139, 24
        %v3618 = vpop.permute.xlu0 %3617
        %3619 = vrot.lane.b32.xlu0 %v3141, 24
        %v3620 = vpop.permute.xlu0 %3619
        %3621 = vrot.lane.b32.xlu0 %v3142, 24
        %v3622 = vpop.permute.xlu0 %3621
        %3623 = vrot.lane.b32.xlu0 %v3144, 24
        %v3624 = vpop.permute.xlu0 %3623
        %3625 = vrot.lane.b32.xlu0 %v3145, 24
        %v3626 = vpop.permute.xlu0 %3625
        %3627 = vrot.lane.b32.xlu0 %v3147, 24
        %v3628 = vpop.permute.xlu0 %3627
        %3629 = vrot.lane.b32.xlu0 %v3148, 24
        %v3630 = vpop.permute.xlu0 %3629
        %3631 = vrot.lane.b32.xlu0 %v3150, 24
        %v3632 = vpop.permute.xlu0 %3631
        %3633 = vrot.lane.b32.xlu0 %v3151, 24
        %v3634 = vpop.permute.xlu0 %3633
        %3635 = vrot.lane.b32.xlu0 %v3153, 24
        %v3636 = vpop.permute.xlu0 %3635
        %3637 = vrot.lane.b32.xlu0 %v3154, 24
        %v3638 = vpop.permute.xlu0 %3637
        %3639 = vrot.lane.b32.xlu0 %v3156, 24
        %v3640 = vpop.permute.xlu0 %3639
        %3641 = vrot.lane.b32.xlu0 %v3157, 24
        %v3642 = vpop.permute.xlu0 %3641
        %3643 = vrot.lane.b32.xlu0 %v3159, 24
        %v3644 = vpop.permute.xlu0 %3643
        %3645 = vrot.lane.b32.xlu0 %v3160, 24
        %v3646 = vpop.permute.xlu0 %3645
        %3647 = vrot.lane.b32.xlu0 %v3162, 24
        %v3648 = vpop.permute.xlu0 %3647
        %3649 = vrot.lane.b32.xlu0 %v3163, 24
        %v3650 = vpop.permute.xlu0 %3649
        %3651 = vrot.lane.b32.xlu0 %v3165, 24
        %v3652 = vpop.permute.xlu0 %3651
        %3653 = vrot.lane.b32.xlu0 %v3166, 24
        %v3654 = vpop.permute.xlu0 %3653
        %3655 = vrot.lane.b32.xlu0 %v3168, 24
        %v3656 = vpop.permute.xlu0 %3655
        %3657 = vrot.lane.b32.xlu0 %v3169, 24
        %v3658 = vpop.permute.xlu0 %3657
        %3659 = vrot.lane.b32.xlu0 %v3171, 24
        %v3660 = vpop.permute.xlu0 %3659
        %3661 = vrot.lane.b32.xlu0 %v3172, 24
        %v3662 = vpop.permute.xlu0 %3661
        %3663 = vrot.lane.b32.xlu0 %v3174, 24
        %v3664 = vpop.permute.xlu0 %3663
        %3665 = vrot.lane.b32.xlu0 %v3175, 24
        %v3666 = vpop.permute.xlu0 %3665
        %3667 = vrot.lane.b32.xlu0 %v3177, 24
        %v3668 = vpop.permute.xlu0 %3667
        %3669 = vrot.lane.b32.xlu0 %v3178, 24
        %v3670 = vpop.permute.xlu0 %3669
        %3671 = vrot.lane.b32.xlu0 %v3180, 24
        %v3672 = vpop.permute.xlu0 %3671
        %3673 = vrot.lane.b32.xlu0 %v3181, 24
        %v3674 = vpop.permute.xlu0 %3673
        %3675 = vrot.lane.b32.xlu0 %v3183, 24
        %v3676 = vpop.permute.xlu0 %3675
        %3677 = vrot.lane.b32.xlu0 %v3184, 24
        %v3678 = vpop.permute.xlu0 %3677
        %3711 = vrot.lane.b32.xlu0 %v3244, 32
        %v3712 = vpop.permute.xlu0 %3711
        %3713 = vrot.lane.b32.xlu0 %v3246, 32
        %v3714 = vpop.permute.xlu0 %3713
        %3715 = vrot.lane.b32.xlu0 %v3249, 32
        %v3716 = vpop.permute.xlu0 %3715
        %3717 = vrot.lane.b32.xlu0 %v3251, 32
        %v3718 = vpop.permute.xlu0 %3717
        %3719 = vrot.lane.b32.xlu0 %v3254, 32
        %v3720 = vpop.permute.xlu0 %3719
        %3721 = vrot.lane.b32.xlu0 %v3256, 32
        %v3722 = vpop.permute.xlu0 %3721
        %3723 = vrot.lane.b32.xlu0 %v3259, 32
        %v3724 = vpop.permute.xlu0 %3723
        %3725 = vrot.lane.b32.xlu0 %v3261, 32
        %v3726 = vpop.permute.xlu0 %3725
        %3727 = vrot.lane.b32.xlu0 %v3264, 32
        %v3728 = vpop.permute.xlu0 %3727
        %3729 = vrot.lane.b32.xlu0 %v3266, 32
        %v3730 = vpop.permute.xlu0 %3729
        %3731 = vrot.lane.b32.xlu0 %v3269, 32
        %v3732 = vpop.permute.xlu0 %3731
        %3733 = vrot.lane.b32.xlu0 %v3271, 32
        %v3734 = vpop.permute.xlu0 %3733
        %3735 = vrot.lane.b32.xlu0 %v3274, 32
        %v3736 = vpop.permute.xlu0 %3735
        %3737 = vrot.lane.b32.xlu0 %v3276, 32
        %v3738 = vpop.permute.xlu0 %3737
        %3739 = vrot.lane.b32.xlu0 %v3279, 32
        %v3740 = vpop.permute.xlu0 %3739
        %3741 = vrot.lane.b32.xlu0 %v3281, 32
        %v3742 = vpop.permute.xlu0 %3741
        %3743 = vrot.lane.b32.xlu0 %v3284, 32
        %v3744 = vpop.permute.xlu0 %3743
        %3745 = vrot.lane.b32.xlu0 %v3286, 32
        %v3746 = vpop.permute.xlu0 %3745
        %3747 = vrot.lane.b32.xlu0 %v3289, 32
        %v3748 = vpop.permute.xlu0 %3747
        %3749 = vrot.lane.b32.xlu0 %v3291, 32
        %v3750 = vpop.permute.xlu0 %3749
        %3751 = vrot.lane.b32.xlu0 %v3294, 32
        %v3752 = vpop.permute.xlu0 %3751
        %3753 = vrot.lane.b32.xlu0 %v3296, 32
        %v3754 = vpop.permute.xlu0 %3753
        %3755 = vrot.lane.b32.xlu0 %v3299, 32
        %v3756 = vpop.permute.xlu0 %3755
        %3757 = vrot.lane.b32.xlu0 %v3301, 32
        %v3758 = vpop.permute.xlu0 %3757
        %3759 = vrot.lane.b32.xlu0 %v3304, 32
        %v3760 = vpop.permute.xlu0 %3759
        %3761 = vrot.lane.b32.xlu0 %v3306, 32
        %v3762 = vpop.permute.xlu0 %3761
        %3763 = vrot.lane.b32.xlu0 %v3309, 32
        %v3764 = vpop.permute.xlu0 %3763
        %3765 = vrot.lane.b32.xlu0 %v3311, 32
        %v3766 = vpop.permute.xlu0 %3765
        %3767 = vrot.lane.b32.xlu0 %v3314, 32
        %v3768 = vpop.permute.xlu0 %3767
        %3769 = vrot.lane.b32.xlu0 %v3316, 32
        %v3770 = vpop.permute.xlu0 %3769
        %3771 = vrot.lane.b32.xlu0 %v3402, 32
        %v3772 = vpop.permute.xlu0 %3771
        %3773 = vrot.lane.b32.xlu0 %v3404, 32
        %v3774 = vpop.permute.xlu0 %3773
        %3807 = vrot.lane.b32.xlu0 %v3324, 40
        %v3808 = vpop.permute.xlu0 %3807
        %3809 = vrot.lane.b32.xlu0 %v3326, 40
        %v3810 = vpop.permute.xlu0 %3809
        %3811 = vrot.lane.b32.xlu0 %v3329, 40
        %v3812 = vpop.permute.xlu0 %3811
        %3813 = vrot.lane.b32.xlu0 %v3331, 40
        %v3814 = vpop.permute.xlu0 %3813
        %3815 = vrot.lane.b32.xlu0 %v3334, 40
        %v3816 = vpop.permute.xlu0 %3815
        %3817 = vrot.lane.b32.xlu0 %v3336, 40
        %v3818 = vpop.permute.xlu0 %3817
        %3819 = vrot.lane.b32.xlu0 %v3339, 40
        %v3820 = vpop.permute.xlu0 %3819
        %3821 = vrot.lane.b32.xlu0 %v3341, 40
        %v3822 = vpop.permute.xlu0 %3821
        %3823 = vrot.lane.b32.xlu0 %v3344, 40
        %v3824 = vpop.permute.xlu0 %3823
        %3825 = vrot.lane.b32.xlu0 %v3346, 40
        %v3826 = vpop.permute.xlu0 %3825
        %3827 = vrot.lane.b32.xlu0 %v3349, 40
        %v3828 = vpop.permute.xlu0 %3827
        %3829 = vrot.lane.b32.xlu0 %v3351, 40
        %v3830 = vpop.permute.xlu0 %3829
        %3831 = vrot.lane.b32.xlu0 %v3354, 40
        %v3832 = vpop.permute.xlu0 %3831
        %3833 = vrot.lane.b32.xlu0 %v3356, 40
        %v3834 = vpop.permute.xlu0 %3833
        %3835 = vrot.lane.b32.xlu0 %v3359, 40
        %v3836 = vpop.permute.xlu0 %3835
        %3837 = vrot.lane.b32.xlu0 %v3361, 40
        %v3838 = vpop.permute.xlu0 %3837
        %3839 = vrot.lane.b32.xlu0 %v3364, 40
        %v3840 = vpop.permute.xlu0 %3839
        %3841 = vrot.lane.b32.xlu0 %v3366, 40
        %v3842 = vpop.permute.xlu0 %3841
        %3843 = vrot.lane.b32.xlu0 %v3369, 40
        %v3844 = vpop.permute.xlu0 %3843
        %3845 = vrot.lane.b32.xlu0 %v3371, 40
        %v3846 = vpop.permute.xlu0 %3845
        %3847 = vrot.lane.b32.xlu0 %v3374, 40
        %v3848 = vpop.permute.xlu0 %3847
        %3849 = vrot.lane.b32.xlu0 %v3376, 40
        %v3850 = vpop.permute.xlu0 %3849
        %3851 = vrot.lane.b32.xlu0 %v3379, 40
        %v3852 = vpop.permute.xlu0 %3851
        %3853 = vrot.lane.b32.xlu0 %v3381, 40
        %v3854 = vpop.permute.xlu0 %3853
        %3855 = vrot.lane.b32.xlu0 %v3384, 40
        %v3856 = vpop.permute.xlu0 %3855
        %3857 = vrot.lane.b32.xlu0 %v3386, 40
        %v3858 = vpop.permute.xlu0 %3857
        %3859 = vrot.lane.b32.xlu0 %v3389, 40
        %v3860 = vpop.permute.xlu0 %3859
        %3861 = vrot.lane.b32.xlu0 %v3391, 40
        %v3862 = vpop.permute.xlu0 %3861
        %3863 = vrot.lane.b32.xlu0 %v3394, 40
        %v3864 = vpop.permute.xlu0 %3863
        %3865 = vrot.lane.b32.xlu0 %v3396, 40
        %v3866 = vpop.permute.xlu0 %3865
        %3867 = vrot.lane.b32.xlu0 %v3407, 40
        %v3868 = vpop.permute.xlu0 %3867
        %3869 = vrot.lane.b32.xlu0 %v3409, 40
        %v3870 = vpop.permute.xlu0 %3869
        %3903 = vrot.lane.b32.xlu0 %v3141, 48
        %v3904 = vpop.permute.xlu0 %3903
        %3905 = vrot.lane.b32.xlu0 %v3142, 48
        %v3906 = vpop.permute.xlu0 %3905
        %3907 = vrot.lane.b32.xlu0 %v3144, 48
        %v3908 = vpop.permute.xlu0 %3907
        %3909 = vrot.lane.b32.xlu0 %v3145, 48
        %v3910 = vpop.permute.xlu0 %3909
        %3911 = vrot.lane.b32.xlu0 %v3147, 48
        %v3912 = vpop.permute.xlu0 %3911
        %3913 = vrot.lane.b32.xlu0 %v3148, 48
        %v3914 = vpop.permute.xlu0 %3913
        %3915 = vrot.lane.b32.xlu0 %v3150, 48
        %v3916 = vpop.permute.xlu0 %3915
        %3917 = vrot.lane.b32.xlu0 %v3151, 48
        %v3918 = vpop.permute.xlu0 %3917
        %3919 = vrot.lane.b32.xlu0 %v3153, 48
        %v3920 = vpop.permute.xlu0 %3919
        %3921 = vrot.lane.b32.xlu0 %v3154, 48
        %v3922 = vpop.permute.xlu0 %3921
        %3923 = vrot.lane.b32.xlu0 %v3156, 48
        %v3924 = vpop.permute.xlu0 %3923
        %3925 = vrot.lane.b32.xlu0 %v3157, 48
        %v3926 = vpop.permute.xlu0 %3925
        %3927 = vrot.lane.b32.xlu0 %v3159, 48
        %v3928 = vpop.permute.xlu0 %3927
        %3929 = vrot.lane.b32.xlu0 %v3160, 48
        %v3930 = vpop.permute.xlu0 %3929
        %3931 = vrot.lane.b32.xlu0 %v3162, 48
        %v3932 = vpop.permute.xlu0 %3931
        %3933 = vrot.lane.b32.xlu0 %v3163, 48
        %v3934 = vpop.permute.xlu0 %3933
        %3935 = vrot.lane.b32.xlu0 %v3165, 48
        %v3936 = vpop.permute.xlu0 %3935
        %3937 = vrot.lane.b32.xlu0 %v3166, 48
        %v3938 = vpop.permute.xlu0 %3937
        %3939 = vrot.lane.b32.xlu0 %v3168, 48
        %v3940 = vpop.permute.xlu0 %3939
        %3941 = vrot.lane.b32.xlu0 %v3169, 48
        %v3942 = vpop.permute.xlu0 %3941
        %3943 = vrot.lane.b32.xlu0 %v3171, 48
        %v3944 = vpop.permute.xlu0 %3943
        %3945 = vrot.lane.b32.xlu0 %v3172, 48
        %v3946 = vpop.permute.xlu0 %3945
        %3947 = vrot.lane.b32.xlu0 %v3174, 48
        %v3948 = vpop.permute.xlu0 %3947
        %3949 = vrot.lane.b32.xlu0 %v3175, 48
        %v3950 = vpop.permute.xlu0 %3949
        %3951 = vrot.lane.b32.xlu0 %v3177, 48
        %v3952 = vpop.permute.xlu0 %3951
        %3953 = vrot.lane.b32.xlu0 %v3178, 48
        %v3954 = vpop.permute.xlu0 %3953
        %3955 = vrot.lane.b32.xlu0 %v3180, 48
        %v3956 = vpop.permute.xlu0 %3955
        %3957 = vrot.lane.b32.xlu0 %v3181, 48
        %v3958 = vpop.permute.xlu0 %3957
        %3959 = vrot.lane.b32.xlu0 %v3183, 48
        %v3960 = vpop.permute.xlu0 %3959
        %3961 = vrot.lane.b32.xlu0 %v3184, 48
        %v3962 = vpop.permute.xlu0 %3961
        %3963 = vrot.lane.b32.xlu0 %v3186, 48
        %v3964 = vpop.permute.xlu0 %3963
        %3965 = vrot.lane.b32.xlu0 %v3187, 48
        %v3966 = vpop.permute.xlu0 %3965
        %3999 = vrot.lane.b32.xlu0 %v3249, 56
        %v4000 = vpop.permute.xlu0 %3999
        %4001 = vrot.lane.b32.xlu0 %v3251, 56
        %v4002 = vpop.permute.xlu0 %4001
        %4003 = vrot.lane.b32.xlu0 %v3254, 56
        %v4004 = vpop.permute.xlu0 %4003
        %4005 = vrot.lane.b32.xlu0 %v3256, 56
        %v4006 = vpop.permute.xlu0 %4005
        %4007 = vrot.lane.b32.xlu0 %v3259, 56
        %v4008 = vpop.permute.xlu0 %4007
        %4009 = vrot.lane.b32.xlu0 %v3261, 56
        %v4010 = vpop.permute.xlu0 %4009
        %4011 = vrot.lane.b32.xlu0 %v3264, 56
        %v4012 = vpop.permute.xlu0 %4011
        %4013 = vrot.lane.b32.xlu0 %v3266, 56
        %v4014 = vpop.permute.xlu0 %4013
        %4015 = vrot.lane.b32.xlu0 %v3269, 56
        %v4016 = vpop.permute.xlu0 %4015
        %4017 = vrot.lane.b32.xlu0 %v3271, 56
        %v4018 = vpop.permute.xlu0 %4017
        %4019 = vrot.lane.b32.xlu0 %v3274, 56
        %v4020 = vpop.permute.xlu0 %4019
        %4021 = vrot.lane.b32.xlu0 %v3276, 56
        %v4022 = vpop.permute.xlu0 %4021
        %4023 = vrot.lane.b32.xlu0 %v3279, 56
        %v4024 = vpop.permute.xlu0 %4023
        %4025 = vrot.lane.b32.xlu0 %v3281, 56
        %v4026 = vpop.permute.xlu0 %4025
        %4027 = vrot.lane.b32.xlu0 %v3284, 56
        %v4028 = vpop.permute.xlu0 %4027
        %4029 = vrot.lane.b32.xlu0 %v3286, 56
        %v4030 = vpop.permute.xlu0 %4029
        %4031 = vrot.lane.b32.xlu0 %v3289, 56
        %v4032 = vpop.permute.xlu0 %4031
        %4033 = vrot.lane.b32.xlu0 %v3291, 56
        %v4034 = vpop.permute.xlu0 %4033
        %4035 = vrot.lane.b32.xlu0 %v3294, 56
        %v4036 = vpop.permute.xlu0 %4035
        %4037 = vrot.lane.b32.xlu0 %v3296, 56
        %v4038 = vpop.permute.xlu0 %4037
        %4039 = vrot.lane.b32.xlu0 %v3299, 56
        %v4040 = vpop.permute.xlu0 %4039
        %4041 = vrot.lane.b32.xlu0 %v3301, 56
        %v4042 = vpop.permute.xlu0 %4041
        %4043 = vrot.lane.b32.xlu0 %v3304, 56
        %v4044 = vpop.permute.xlu0 %4043
        %4045 = vrot.lane.b32.xlu0 %v3306, 56
        %v4046 = vpop.permute.xlu0 %4045
        %4047 = vrot.lane.b32.xlu0 %v3309, 56
        %v4048 = vpop.permute.xlu0 %4047
        %4049 = vrot.lane.b32.xlu0 %v3311, 56
        %v4050 = vpop.permute.xlu0 %4049
        %4051 = vrot.lane.b32.xlu0 %v3314, 56
        %v4052 = vpop.permute.xlu0 %4051
        %4053 = vrot.lane.b32.xlu0 %v3316, 56
        %v4054 = vpop.permute.xlu0 %4053
        %4055 = vrot.lane.b32.xlu0 %v3402, 56
        %v4056 = vpop.permute.xlu0 %4055
        %4057 = vrot.lane.b32.xlu0 %v3404, 56
        %v4058 = vpop.permute.xlu0 %4057
        %4059 = vrot.lane.b32.xlu0 %v3415, 56
        %v4060 = vpop.permute.xlu0 %4059
        %4061 = vrot.lane.b32.xlu0 %v3417, 56
        %v4062 = vpop.permute.xlu0 %4061
        %4095 = vrot.lane.b32.xlu0 %v3329, 64
        %v4096 = vpop.permute.xlu0 %4095
        %4097 = vrot.lane.b32.xlu0 %v3331, 64
        %v4098 = vpop.permute.xlu0 %4097
        %4099 = vrot.lane.b32.xlu0 %v3334, 64
        %v4100 = vpop.permute.xlu0 %4099
        %4101 = vrot.lane.b32.xlu0 %v3336, 64
        %v4102 = vpop.permute.xlu0 %4101
        %4103 = vrot.lane.b32.xlu0 %v3339, 64
        %v4104 = vpop.permute.xlu0 %4103
        %4105 = vrot.lane.b32.xlu0 %v3341, 64
        %v4106 = vpop.permute.xlu0 %4105
        %4107 = vrot.lane.b32.xlu0 %v3344, 64
        %v4108 = vpop.permute.xlu0 %4107
        %4109 = vrot.lane.b32.xlu0 %v3346, 64
        %v4110 = vpop.permute.xlu0 %4109
        %4111 = vrot.lane.b32.xlu0 %v3349, 64
        %v4112 = vpop.permute.xlu0 %4111
        %4113 = vrot.lane.b32.xlu0 %v3351, 64
        %v4114 = vpop.permute.xlu0 %4113
        %4115 = vrot.lane.b32.xlu0 %v3354, 64
        %v4116 = vpop.permute.xlu0 %4115
        %4117 = vrot.lane.b32.xlu0 %v3356, 64
        %v4118 = vpop.permute.xlu0 %4117
        %4119 = vrot.lane.b32.xlu0 %v3359, 64
        %v4120 = vpop.permute.xlu0 %4119
        %4121 = vrot.lane.b32.xlu0 %v3361, 64
        %v4122 = vpop.permute.xlu0 %4121
        %4123 = vrot.lane.b32.xlu0 %v3364, 64
        %v4124 = vpop.permute.xlu0 %4123
        %4125 = vrot.lane.b32.xlu0 %v3366, 64
        %v4126 = vpop.permute.xlu0 %4125
        %4127 = vrot.lane.b32.xlu0 %v3369, 64
        %v4128 = vpop.permute.xlu0 %4127
        %4129 = vrot.lane.b32.xlu0 %v3371, 64
        %v4130 = vpop.permute.xlu0 %4129
        %4131 = vrot.lane.b32.xlu0 %v3374, 64
        %v4132 = vpop.permute.xlu0 %4131
        %4133 = vrot.lane.b32.xlu0 %v3376, 64
        %v4134 = vpop.permute.xlu0 %4133
        %4135 = vrot.lane.b32.xlu0 %v3379, 64
        %v4136 = vpop.permute.xlu0 %4135
        %4137 = vrot.lane.b32.xlu0 %v3381, 64
        %v4138 = vpop.permute.xlu0 %4137
        %4139 = vrot.lane.b32.xlu0 %v3384, 64
        %v4140 = vpop.permute.xlu0 %4139
        %4141 = vrot.lane.b32.xlu0 %v3386, 64
        %v4142 = vpop.permute.xlu0 %4141
        %4143 = vrot.lane.b32.xlu0 %v3389, 64
        %v4144 = vpop.permute.xlu0 %4143
        %4145 = vrot.lane.b32.xlu0 %v3391, 64
        %v4146 = vpop.permute.xlu0 %4145
        %4147 = vrot.lane.b32.xlu0 %v3394, 64
        %v4148 = vpop.permute.xlu0 %4147
        %4149 = vrot.lane.b32.xlu0 %v3396, 64
        %v4150 = vpop.permute.xlu0 %4149
        %4151 = vrot.lane.b32.xlu0 %v3407, 64
        %v4152 = vpop.permute.xlu0 %4151
        %4153 = vrot.lane.b32.xlu0 %v3409, 64
        %v4154 = vpop.permute.xlu0 %4153
        %4155 = vrot.lane.b32.xlu0 %v3420, 64
        %v4156 = vpop.permute.xlu0 %4155
        %4157 = vrot.lane.b32.xlu0 %v3422, 64
        %v4158 = vpop.permute.xlu0 %4157
        %v4191 = vsel %vm2034, %v3135, %v3424
        %v4192 = vsel %vm2034, %v3136, %v3426
        %v4193 = vsel %vm2034, %v3138, %v3428
        %v4194 = vsel %vm2034, %v3139, %v3430
        %v4195 = vsel %vm2034, %v3141, %v3432
        %v4196 = vsel %vm2034, %v3142, %v3434
        %v4197 = vsel %vm2034, %v3144, %v3436
        %v4198 = vsel %vm2034, %v3145, %v3438
        %v4199 = vsel %vm2034, %v3147, %v3440
        %v4200 = vsel %vm2034, %v3148, %v3442
        %v4201 = vsel %vm2034, %v3150, %v3444
        %v4202 = vsel %vm2034, %v3151, %v3446
        %v4203 = vsel %vm2034, %v3153, %v3448
        %v4204 = vsel %vm2034, %v3154, %v3450
        %v4205 = vsel %vm2034, %v3156, %v3452
        %v4206 = vsel %vm2034, %v3157, %v3454
        %v4207 = vsel %vm2034, %v3159, %v3456
        %v4208 = vsel %vm2034, %v3160, %v3458
        %v4209 = vsel %vm2034, %v3162, %v3460
        %v4210 = vsel %vm2034, %v3163, %v3462
        %v4211 = vsel %vm2034, %v3165, %v3464
        %v4212 = vsel %vm2034, %v3166, %v3466
        %v4213 = vsel %vm2034, %v3168, %v3468
        %v4214 = vsel %vm2034, %v3169, %v3470
        %v4215 = vsel %vm2034, %v3171, %v3472
        %v4216 = vsel %vm2034, %v3172, %v3474
        %v4217 = vsel %vm2034, %v3174, %v3476
        %v4218 = vsel %vm2034, %v3175, %v3478
        %v4219 = vsel %vm2034, %v3177, %v3480
        %v4220 = vsel %vm2034, %v3178, %v3482
        %v4221 = vsel %vm2034, %v3180, %v3484
        %v4222 = vsel %vm2034, %v3181, %v3486
        %v4223 = vsel %vm2100, %v4191, %v3520
        %v4224 = vsel %vm2100, %v4192, %v3522
        %v4225 = vsel %vm2100, %v4193, %v3524
        %v4226 = vsel %vm2100, %v4194, %v3526
        %v4227 = vsel %vm2100, %v4195, %v3528
        %v4228 = vsel %vm2100, %v4196, %v3530
        %v4229 = vsel %vm2100, %v4197, %v3532
        %v4230 = vsel %vm2100, %v4198, %v3534
        %v4231 = vsel %vm2100, %v4199, %v3536
        %v4232 = vsel %vm2100, %v4200, %v3538
        %v4233 = vsel %vm2100, %v4201, %v3540
        %v4234 = vsel %vm2100, %v4202, %v3542
        %v4235 = vsel %vm2100, %v4203, %v3544
        %v4236 = vsel %vm2100, %v4204, %v3546
        %v4237 = vsel %vm2100, %v4205, %v3548
        %v4238 = vsel %vm2100, %v4206, %v3550
        %v4239 = vsel %vm2100, %v4207, %v3552
        %v4240 = vsel %vm2100, %v4208, %v3554
        %v4241 = vsel %vm2100, %v4209, %v3556
        %v4242 = vsel %vm2100, %v4210, %v3558
        %v4243 = vsel %vm2100, %v4211, %v3560
        %v4244 = vsel %vm2100, %v4212, %v3562
        %v4245 = vsel %vm2100, %v4213, %v3564
        %v4246 = vsel %vm2100, %v4214, %v3566
        %v4247 = vsel %vm2100, %v4215, %v3568
        %v4248 = vsel %vm2100, %v4216, %v3570
        %v4249 = vsel %vm2100, %v4217, %v3572
        %v4250 = vsel %vm2100, %v4218, %v3574
        %v4251 = vsel %vm2100, %v4219, %v3576
        %v4252 = vsel %vm2100, %v4220, %v3578
        %v4253 = vsel %vm2100, %v4221, %v3580
        %v4254 = vsel %vm2100, %v4222, %v3582
        %v4255 = vsel %vm2166, %v4223, %v3616
        %v4256 = vsel %vm2166, %v4224, %v3618
        %v4257 = vsel %vm2166, %v4225, %v3620
        %v4258 = vsel %vm2166, %v4226, %v3622
        %v4259 = vsel %vm2166, %v4227, %v3624
        %v4260 = vsel %vm2166, %v4228, %v3626
        %v4261 = vsel %vm2166, %v4229, %v3628
        %v4262 = vsel %vm2166, %v4230, %v3630
        %v4263 = vsel %vm2166, %v4231, %v3632
        %v4264 = vsel %vm2166, %v4232, %v3634
        %v4265 = vsel %vm2166, %v4233, %v3636
        %v4266 = vsel %vm2166, %v4234, %v3638
        %v4267 = vsel %vm2166, %v4235, %v3640
        %v4268 = vsel %vm2166, %v4236, %v3642
        %v4269 = vsel %vm2166, %v4237, %v3644
        %v4270 = vsel %vm2166, %v4238, %v3646
        %v4271 = vsel %vm2166, %v4239, %v3648
        %v4272 = vsel %vm2166, %v4240, %v3650
        %v4273 = vsel %vm2166, %v4241, %v3652
        %v4274 = vsel %vm2166, %v4242, %v3654
        %v4275 = vsel %vm2166, %v4243, %v3656
        %v4276 = vsel %vm2166, %v4244, %v3658
        %v4277 = vsel %vm2166, %v4245, %v3660
        %v4278 = vsel %vm2166, %v4246, %v3662
        %v4279 = vsel %vm2166, %v4247, %v3664
        %v4280 = vsel %vm2166, %v4248, %v3666
        %v4281 = vsel %vm2166, %v4249, %v3668
        %v4282 = vsel %vm2166, %v4250, %v3670
        %v4283 = vsel %vm2166, %v4251, %v3672
        %v4284 = vsel %vm2166, %v4252, %v3674
        %v4285 = vsel %vm2166, %v4253, %v3676
        %v4286 = vsel %vm2166, %v4254, %v3678
        %v4287 = vsel %vm692, %v4255, %v3712
        %v4288 = vsel %vm692, %v4256, %v3714
        %v4289 = vsel %vm692, %v4257, %v3716
        %v4290 = vsel %vm692, %v4258, %v3718
        %v4291 = vsel %vm692, %v4259, %v3720
        %v4292 = vsel %vm692, %v4260, %v3722
        %v4293 = vsel %vm692, %v4261, %v3724
        %v4294 = vsel %vm692, %v4262, %v3726
        %v4295 = vsel %vm692, %v4263, %v3728
        %v4296 = vsel %vm692, %v4264, %v3730
        %v4297 = vsel %vm692, %v4265, %v3732
        %v4298 = vsel %vm692, %v4266, %v3734
        %v4299 = vsel %vm692, %v4267, %v3736
        %v4300 = vsel %vm692, %v4268, %v3738
        %v4301 = vsel %vm692, %v4269, %v3740
        %v4302 = vsel %vm692, %v4270, %v3742
        %v4303 = vsel %vm692, %v4271, %v3744
        %v4304 = vsel %vm692, %v4272, %v3746
        %v4305 = vsel %vm692, %v4273, %v3748
        %v4306 = vsel %vm692, %v4274, %v3750
        %v4307 = vsel %vm692, %v4275, %v3752
        %v4308 = vsel %vm692, %v4276, %v3754
        %v4309 = vsel %vm692, %v4277, %v3756
        %v4310 = vsel %vm692, %v4278, %v3758
        %v4311 = vsel %vm692, %v4279, %v3760
        %v4312 = vsel %vm692, %v4280, %v3762
        %v4313 = vsel %vm692, %v4281, %v3764
        %v4314 = vsel %vm692, %v4282, %v3766
        %v4315 = vsel %vm692, %v4283, %v3768
        %v4316 = vsel %vm692, %v4284, %v3770
        %v4317 = vsel %vm692, %v4285, %v3772
        %v4318 = vsel %vm692, %v4286, %v3774
        %vm4319 = vcmask 326656
        %v4320 = vsel %vm4319, %v4287, %v3808
        %v4321 = vsel %vm4319, %v4288, %v3810
        %v4322 = vsel %vm4319, %v4289, %v3812
        %v4323 = vsel %vm4319, %v4290, %v3814
        %v4324 = vsel %vm4319, %v4291, %v3816
        %v4325 = vsel %vm4319, %v4292, %v3818
        %v4326 = vsel %vm4319, %v4293, %v3820
        %v4327 = vsel %vm4319, %v4294, %v3822
        %v4328 = vsel %vm4319, %v4295, %v3824
        %v4329 = vsel %vm4319, %v4296, %v3826
        %v4330 = vsel %vm4319, %v4297, %v3828
        %v4331 = vsel %vm4319, %v4298, %v3830
        %v4332 = vsel %vm4319, %v4299, %v3832
        %v4333 = vsel %vm4319, %v4300, %v3834
        %v4334 = vsel %vm4319, %v4301, %v3836
        %v4335 = vsel %vm4319, %v4302, %v3838
        %v4336 = vsel %vm4319, %v4303, %v3840
        %v4337 = vsel %vm4319, %v4304, %v3842
        %v4338 = vsel %vm4319, %v4305, %v3844
        %v4339 = vsel %vm4319, %v4306, %v3846
        %v4340 = vsel %vm4319, %v4307, %v3848
        %v4341 = vsel %vm4319, %v4308, %v3850
        %v4342 = vsel %vm4319, %v4309, %v3852
        %v4343 = vsel %vm4319, %v4310, %v3854
        %v4344 = vsel %vm4319, %v4311, %v3856
        %v4345 = vsel %vm4319, %v4312, %v3858
        %v4346 = vsel %vm4319, %v4313, %v3860
        %v4347 = vsel %vm4319, %v4314, %v3862
        %v4348 = vsel %vm4319, %v4315, %v3864
        %v4349 = vsel %vm4319, %v4316, %v3866
        %v4350 = vsel %vm4319, %v4317, %v3868
        %v4351 = vsel %vm4319, %v4318, %v3870
        %vm4352 = vcmask 392192
        %v4353 = vsel %vm4352, %v4320, %v3904
        %v4354 = vsel %vm4352, %v4321, %v3906
        %v4355 = vsel %vm4352, %v4322, %v3908
        %v4356 = vsel %vm4352, %v4323, %v3910
        %v4357 = vsel %vm4352, %v4324, %v3912
        %v4358 = vsel %vm4352, %v4325, %v3914
        %v4359 = vsel %vm4352, %v4326, %v3916
        %v4360 = vsel %vm4352, %v4327, %v3918
        %v4361 = vsel %vm4352, %v4328, %v3920
        %v4362 = vsel %vm4352, %v4329, %v3922
        %v4363 = vsel %vm4352, %v4330, %v3924
        %v4364 = vsel %vm4352, %v4331, %v3926
        %v4365 = vsel %vm4352, %v4332, %v3928
        %v4366 = vsel %vm4352, %v4333, %v3930
        %v4367 = vsel %vm4352, %v4334, %v3932
        %v4368 = vsel %vm4352, %v4335, %v3934
        %v4369 = vsel %vm4352, %v4336, %v3936
        %v4370 = vsel %vm4352, %v4337, %v3938
        %v4371 = vsel %vm4352, %v4338, %v3940
        %v4372 = vsel %vm4352, %v4339, %v3942
        %v4373 = vsel %vm4352, %v4340, %v3944
        %v4374 = vsel %vm4352, %v4341, %v3946
        %v4375 = vsel %vm4352, %v4342, %v3948
        %v4376 = vsel %vm4352, %v4343, %v3950
        %v4377 = vsel %vm4352, %v4344, %v3952
        %v4378 = vsel %vm4352, %v4345, %v3954
        %v4379 = vsel %vm4352, %v4346, %v3956
        %v4380 = vsel %vm4352, %v4347, %v3958
        %v4381 = vsel %vm4352, %v4348, %v3960
        %v4382 = vsel %vm4352, %v4349, %v3962
        %v4383 = vsel %vm4352, %v4350, %v3964
        %v4384 = vsel %vm4352, %v4351, %v3966
        %vm4385 = vcmask 457728
        %v4386 = vsel %vm4385, %v4353, %v4000
        %v4387 = vsel %vm4385, %v4354, %v4002
        %v4388 = vsel %vm4385, %v4355, %v4004
        %v4389 = vsel %vm4385, %v4356, %v4006
        %v4390 = vsel %vm4385, %v4357, %v4008
        %v4391 = vsel %vm4385, %v4358, %v4010
        %v4392 = vsel %vm4385, %v4359, %v4012
        %v4393 = vsel %vm4385, %v4360, %v4014
        %v4394 = vsel %vm4385, %v4361, %v4016
        %v4395 = vsel %vm4385, %v4362, %v4018
        %v4396 = vsel %vm4385, %v4363, %v4020
        %v4397 = vsel %vm4385, %v4364, %v4022
        %v4398 = vsel %vm4385, %v4365, %v4024
        %v4399 = vsel %vm4385, %v4366, %v4026
        %v4400 = vsel %vm4385, %v4367, %v4028
        %v4401 = vsel %vm4385, %v4368, %v4030
        %v4402 = vsel %vm4385, %v4369, %v4032
        %v4403 = vsel %vm4385, %v4370, %v4034
        %v4404 = vsel %vm4385, %v4371, %v4036
        %v4405 = vsel %vm4385, %v4372, %v4038
        %v4406 = vsel %vm4385, %v4373, %v4040
        %v4407 = vsel %vm4385, %v4374, %v4042
        %v4408 = vsel %vm4385, %v4375, %v4044
        %v4409 = vsel %vm4385, %v4376, %v4046
        %v4410 = vsel %vm4385, %v4377, %v4048
        %v4411 = vsel %vm4385, %v4378, %v4050
        %v4412 = vsel %vm4385, %v4379, %v4052
        %v4413 = vsel %vm4385, %v4380, %v4054
        %v4414 = vsel %vm4385, %v4381, %v4056
        %v4415 = vsel %vm4385, %v4382, %v4058
        %v4416 = vsel %vm4385, %v4383, %v4060
        %v4417 = vsel %vm4385, %v4384, %v4062
        %vm4418 = vcmask 523264
        %v4419 = vsel %vm4418, %v4386, %v4096
        %v4420 = vsel %vm4418, %v4387, %v4098
        %v4421 = vsel %vm4418, %v4388, %v4100
        %v4422 = vsel %vm4418, %v4389, %v4102
        %v4423 = vsel %vm4418, %v4390, %v4104
        %v4424 = vsel %vm4418, %v4391, %v4106
        %v4425 = vsel %vm4418, %v4392, %v4108
        %v4426 = vsel %vm4418, %v4393, %v4110
        %v4427 = vsel %vm4418, %v4394, %v4112
        %v4428 = vsel %vm4418, %v4395, %v4114
        %v4429 = vsel %vm4418, %v4396, %v4116
        %v4430 = vsel %vm4418, %v4397, %v4118
        %v4431 = vsel %vm4418, %v4398, %v4120
        %v4432 = vsel %vm4418, %v4399, %v4122
        %v4433 = vsel %vm4418, %v4400, %v4124
        %v4434 = vsel %vm4418, %v4401, %v4126
        %v4435 = vsel %vm4418, %v4402, %v4128
        %v4436 = vsel %vm4418, %v4403, %v4130
        %v4437 = vsel %vm4418, %v4404, %v4132
        %v4438 = vsel %vm4418, %v4405, %v4134
        %v4439 = vsel %vm4418, %v4406, %v4136
        %v4440 = vsel %vm4418, %v4407, %v4138
        %v4441 = vsel %vm4418, %v4408, %v4140
        %v4442 = vsel %vm4418, %v4409, %v4142
        %v4443 = vsel %vm4418, %v4410, %v4144
        %v4444 = vsel %vm4418, %v4411, %v4146
        %v4445 = vsel %vm4418, %v4412, %v4148
        %v4446 = vsel %vm4418, %v4413, %v4150
        %v4447 = vsel %vm4418, %v4414, %v4152
        %v4448 = vsel %vm4418, %v4415, %v4154
        %v4449 = vsel %vm4418, %v4416, %v4156
        %v4450 = vsel %vm4418, %v4417, %v4158
        %v4451 = vld [vmem:[#allocation14] sm:$0xff]
        %v4452 = vld [vmem:[#allocation14 + $0x8] sm:$0xff]
        %v4453 = vld [vmem:[#allocation14 + $0x10] sm:$0xff]
        %v4454 = vld [vmem:[#allocation14 + $0x18] sm:$0xff]
        %v4455 = vld [vmem:[#allocation14 + $0x20] sm:$0xff]
        %v4456 = vld [vmem:[#allocation14 + $0x28] sm:$0xff]
        %v4457 = vld [vmem:[#allocation14 + $0x30] sm:$0xff]
        %v4458 = vld [vmem:[#allocation14 + $0x38] sm:$0xff]
        %v4459 = vld [vmem:[#allocation14 + $0x40] sm:$0xff]
        %v4460 = vlaneseq
        %v4461 = vshrl.u32 %v4460, 7
        %v4462 = vsub.s32 0, %v4461
        %v4463 = vrot.slane %v3010, %v4462
        %v4464 = vmul.f32 %v4451, %v4463
        %v4465 = vmul.f32 %v4452, %v4463
        %v4466 = vmul.f32 %v4453, %v4463
        %v4467 = vmul.f32 %v4454, %v4463
        %v4468 = vmul.f32 %v4455, %v4463
        %v4469 = vmul.f32 %v4456, %v4463
        %v4470 = vmul.f32 %v4457, %v4463
        %v4471 = vmul.f32 %v4458, %v4463
        %v4472 = vmul.f32 %v4459, %v4463
        %v4474 = vlaneseq
        %v4475 = vshrl.u32 %v4474, 7
        %v4476 = vsub.s32 0, %v4475
        %v4477 = vrot.slane %v802, %v4476
        %v4479 = vmul.f32 %v2281, %v4477
        %v4480 = vmul.f32 %v2286, %v4477
        %v4481 = vmul.f32 %v2291, %v4477
        %v4482 = vmul.f32 %v2296, %v4477
        %v4483 = vmul.f32 %v2301, %v4477
        %v4484 = vmul.f32 %v2306, %v4477
        %v4485 = vmul.f32 %v2311, %v4477
        %v4486 = vmul.f32 %v2316, %v4477
        %v4487 = vmul.f32 %v2321, %v4477
        %v4488 = vmul.f32 %v2326, %v4477
        %v4489 = vmul.f32 %v2331, %v4477
        %v4490 = vmul.f32 %v2336, %v4477
        %v4491 = vmul.f32 %v2341, %v4477
        %v4492 = vmul.f32 %v2346, %v4477
        %v4493 = vmul.f32 %v2351, %v4477
        %v4494 = vmul.f32 %v2356, %v4477
        %v4495 = vmul.f32 %v2361, %v4477
        %v4496 = vmul.f32 %v2366, %v4477
        %v4497 = vmul.f32 %v2371, %v4477
        %v4498 = vmul.f32 %v2376, %v4477
        %v4499 = vmul.f32 %v2381, %v4477
        %v4500 = vmul.f32 %v2386, %v4477
        %v4501 = vmul.f32 %v2391, %v4477
        %v4502 = vmul.f32 %v2396, %v4477
        %v4503 = vmul.f32 %v2401, %v4477
        %v4504 = vmul.f32 %v2406, %v4477
        %v4505 = vmul.f32 %v2411, %v4477
        %v4506 = vmul.f32 %v2416, %v4477
        %v4507 = vmul.f32 %v2421, %v4477
        %v4508 = vmul.f32 %v2426, %v4477
        %v4509 = vmul.f32 %v2431, %v4477
        %v4510 = vmul.f32 %v2436, %v4477
        %vm4511 = vcmask 588800
        %v4513 = vsel %vm4511, %v4419, 0
        %v4516 = vsel %vm4511, %v4420, 0
        %v4519 = vsel %vm4511, %v4421, 0
        %v4522 = vsel %vm4511, %v4422, 0
        %v4525 = vsel %vm4511, %v4423, 0
        %v4528 = vsel %vm4511, %v4424, 0
        %v4531 = vsel %vm4511, %v4425, 0
        %v4534 = vsel %vm4511, %v4426, 0
        %v4537 = vsel %vm4511, %v4427, 0
        %v4540 = vsel %vm4511, %v4428, 0
        %v4543 = vsel %vm4511, %v4429, 0
        %v4546 = vsel %vm4511, %v4430, 0
        %v4549 = vsel %vm4511, %v4431, 0
        %v4552 = vsel %vm4511, %v4432, 0
        %v4555 = vsel %vm4511, %v4433, 0
        %v4558 = vsel %vm4511, %v4434, 0
        %v4561 = vsel %vm4511, %v4435, 0
        %v4564 = vsel %vm4511, %v4436, 0
        %v4567 = vsel %vm4511, %v4437, 0
        %v4570 = vsel %vm4511, %v4438, 0
        %v4573 = vsel %vm4511, %v4439, 0
        %v4576 = vsel %vm4511, %v4440, 0
        %v4579 = vsel %vm4511, %v4441, 0
        %v4582 = vsel %vm4511, %v4442, 0
        %v4585 = vsel %vm4511, %v4443, 0
        %v4588 = vsel %vm4511, %v4444, 0
        %v4591 = vsel %vm4511, %v4445, 0
        %v4594 = vsel %vm4511, %v4446, 0
        %v4597 = vsel %vm4511, %v4447, 0
        %v4600 = vsel %vm4511, %v4448, 0
        %v4603 = vsel %vm4511, %v4449, 0
        %v4606 = vsel %vm4511, %v4450, 0
        %4608 = vmatprep.subr.mxu0 0.0
        %4609 = vmatpush1.msra.mxu0 %v4464
        %4610 = vmatprep.subr.mxu0 0.0
        %4611 = vmatpush1.msra.mxu0 %v4465
        %4612 = vmatprep.subr.mxu0 0.0
        %4613 = vmatpush1.msra.mxu0 %v4466
        %4614 = vmatprep.subr.mxu0 0.0
        %4615 = vmatpush1.msra.mxu0 %v4467
        %4616 = vmatprep.subr.mxu0 0.0
        %4617 = vmatpush1.msra.mxu0 %v4468
        %4618 = vmatprep.subr.mxu0 0.0
        %4619 = vmatpush1.msra.mxu0 %v4469
        %4620 = vmatprep.subr.mxu0 0.0
        %4621 = vmatpush1.msra.mxu0 %v4470
        %4622 = vmatprep.subr.mxu0 0.0
        %4623 = vmatpush1.msra.mxu0 %v4471
        %4624 = vmatprep.subr.mxu0 0.0
        %4625 = vmatpush1.msra.mxu0 %v4472
        %4626 = vmatprep.subr.mxu0 0.0
        %4627 = vmatpush1.msra.mxu0 0.0
        %4628 = vmatprep.subr.mxu0 0.0
        %4629 = vmatpush1.msra.mxu0 0.0
        %4630 = vmatprep.subr.mxu0 0.0
        %4631 = vmatpush1.msra.mxu0 0.0
        %4632 = vmatprep.subr.mxu0 0.0
        %4633 = vmatpush1.msra.mxu0 0.0
        %4634 = vmatprep.subr.mxu0 0.0
        %4635 = vmatpush1.msra.mxu0 0.0
        %4636 = vmatprep.subr.mxu0 0.0
        %4637 = vmatpush1.msra.mxu0 0.0
        %4638 = vmatprep.subr.mxu0 0.0
        %4639 = vmatpush1.msra.mxu0 0.0
        %4640 = vmatprep.subr.mxu0 0.0
        %4641 = vmatpush1.msra.mxu0 0.0
        %4642 = vmatprep.subr.mxu0 0.0
        %4643 = vmatpush1.msra.mxu0 0.0
        %4644 = vmatprep.subr.mxu0 0.0
        %4645 = vmatpush1.msra.mxu0 0.0
        %4646 = vmatprep.subr.mxu0 0.0
        %4647 = vmatpush1.msra.mxu0 0.0
        %4648 = vmatprep.subr.mxu0 0.0
        %4649 = vmatpush1.msra.mxu0 0.0
        %4650 = vmatprep.subr.mxu0 0.0
        %4651 = vmatpush1.msra.mxu0 0.0
        %4652 = vmatprep.subr.mxu0 0.0
        %4653 = vmatpush1.msra.mxu0 0.0
        %4654 = vmatprep.subr.mxu0 0.0
        %4655 = vmatpush1.msra.mxu0 0.0
        %4656 = vmatprep.subr.mxu0 0.0
        %4657 = vmatpush1.msra.mxu0 0.0
        %4658 = vmatprep.subr.mxu0 0.0
        %4659 = vmatpush1.msra.mxu0 0.0
        %4660 = vmatprep.subr.mxu0 0.0
        %4661 = vmatpush1.msra.mxu0 0.0
        %4662 = vmatprep.subr.mxu0 0.0
        %4663 = vmatpush1.msra.mxu0 0.0
        %4664 = vmatprep.subr.mxu0 0.0
        %4665 = vmatpush1.msra.mxu0 0.0
        %4666 = vmatprep.subr.mxu0 0.0
        %4667 = vmatpush1.msra.mxu0 0.0
        %4668 = vmatprep.subr.mxu0 0.0
        %4669 = vmatpush1.msra.mxu0 0.0
        %4670 = vmatprep.subr.mxu0 0.0
        %4671 = vmatpush1.msra.mxu0 0.0
        %4672 = vmatprep.mubr.f32.mxu0 0.0
        %4673 = vmatmul.mubr.f32.gmra.mrb[0].mxu0 %v4513
        %v4674 = vpop.f32.mrb[0].mxu0
        %v4675 = vadd.f32 %v4479, %v4674
        %v4676 = vpop.f32.mrb[0].mxu0
        %4677 = vmatprep.mubr.f32.mxu0 0.0
        %4678 = vmatmul.mubr.f32.gmra.mrb[0].mxu0 %v4516
        %v4679 = vpop.f32.mrb[0].mxu0
        %v4680 = vadd.f32 %v4480, %v4679
        %v4681 = vpop.f32.mrb[0].mxu0
        %4682 = vmatprep.mubr.f32.mxu0 0.0
        %4683 = vmatmul.mubr.f32.gmra.mrb[0].mxu0 %v4519
        %v4684 = vpop.f32.mrb[0].mxu0
        %v4685 = vadd.f32 %v4481, %v4684
        %v4686 = vpop.f32.mrb[0].mxu0
        %4687 = vmatprep.mubr.f32.mxu0 0.0
        %4688 = vmatmul.mubr.f32.gmra.mrb[0].mxu0 %v4522
        %v4689 = vpop.f32.mrb[0].mxu0
        %v4690 = vadd.f32 %v4482, %v4689
        %v4691 = vpop.f32.mrb[0].mxu0
        %4692 = vmatprep.mubr.f32.mxu0 0.0
        %4693 = vmatmul.mubr.f32.gmra.mrb[0].mxu0 %v4525
        %v4694 = vpop.f32.mrb[0].mxu0
        %v4695 = vadd.f32 %v4483, %v4694
        %v4696 = vpop.f32.mrb[0].mxu0
        %4697 = vmatprep.mubr.f32.mxu0 0.0
        %4698 = vmatmul.mubr.f32.gmra.mrb[0].mxu0 %v4528
        %v4699 = vpop.f32.mrb[0].mxu0
        %v4700 = vadd.f32 %v4484, %v4699
        %v4701 = vpop.f32.mrb[0].mxu0
        %4702 = vmatprep.mubr.f32.mxu0 0.0
        %4703 = vmatmul.mubr.f32.gmra.mrb[0].mxu0 %v4531
        %v4704 = vpop.f32.mrb[0].mxu0
        %v4705 = vadd.f32 %v4485, %v4704
        %v4706 = vpop.f32.mrb[0].mxu0
        %4707 = vmatprep.mubr.f32.mxu0 0.0
        %4708 = vmatmul.mubr.f32.gmra.mrb[0].mxu0 %v4534
        %v4709 = vpop.f32.mrb[0].mxu0
        %v4710 = vadd.f32 %v4486, %v4709
        %v4711 = vpop.f32.mrb[0].mxu0
        %4712 = vmatprep.mubr.f32.mxu0 0.0
        %4713 = vmatmul.mubr.f32.gmra.mrb[0].mxu0 %v4537
        %v4714 = vpop.f32.mrb[0].mxu0
        %v4715 = vadd.f32 %v4487, %v4714
        %v4716 = vpop.f32.mrb[0].mxu0
        %4717 = vmatprep.mubr.f32.mxu0 0.0
        %4718 = vmatmul.mubr.f32.gmra.mrb[0].mxu0 %v4540
        %v4719 = vpop.f32.mrb[0].mxu0
        %v4720 = vadd.f32 %v4488, %v4719
        %v4721 = vpop.f32.mrb[0].mxu0
        %4722 = vmatprep.mubr.f32.mxu0 0.0
        %4723 = vmatmul.mubr.f32.gmra.mrb[0].mxu0 %v4543
        %v4724 = vpop.f32.mrb[0].mxu0
        %v4725 = vadd.f32 %v4489, %v4724
        %v4726 = vpop.f32.mrb[0].mxu0
        %4727 = vmatprep.mubr.f32.mxu0 0.0
        %4728 = vmatmul.mubr.f32.gmra.mrb[0].mxu0 %v4546
        %v4729 = vpop.f32.mrb[0].mxu0
        %v4730 = vadd.f32 %v4490, %v4729
        %v4731 = vpop.f32.mrb[0].mxu0
        %4732 = vmatprep.mubr.f32.mxu0 0.0
        %4733 = vmatmul.mubr.f32.gmra.mrb[0].mxu0 %v4549
        %v4734 = vpop.f32.mrb[0].mxu0
        %v4735 = vadd.f32 %v4491, %v4734
        %v4736 = vpop.f32.mrb[0].mxu0
        %4737 = vmatprep.mubr.f32.mxu0 0.0
        %4738 = vmatmul.mubr.f32.gmra.mrb[0].mxu0 %v4552
        %v4739 = vpop.f32.mrb[0].mxu0
        %v4740 = vadd.f32 %v4492, %v4739
        %v4741 = vpop.f32.mrb[0].mxu0
        %4742 = vmatprep.mubr.f32.mxu0 0.0
        %4743 = vmatmul.mubr.f32.gmra.mrb[0].mxu0 %v4555
        %v4744 = vpop.f32.mrb[0].mxu0
        %v4745 = vadd.f32 %v4493, %v4744
        %v4746 = vpop.f32.mrb[0].mxu0
        %4747 = vmatprep.mubr.f32.mxu0 0.0
        %4748 = vmatmul.mubr.f32.gmra.mrb[0].mxu0 %v4558
        %v4749 = vpop.f32.mrb[0].mxu0
        %v4750 = vadd.f32 %v4494, %v4749
        %v4751 = vpop.f32.mrb[0].mxu0
        %4752 = vmatprep.mubr.f32.mxu0 0.0
        %4753 = vmatmul.mubr.f32.gmra.mrb[0].mxu0 %v4561
        %v4754 = vpop.f32.mrb[0].mxu0
        %v4755 = vadd.f32 %v4495, %v4754
        %v4756 = vpop.f32.mrb[0].mxu0
        %4757 = vmatprep.mubr.f32.mxu0 0.0
        %4758 = vmatmul.mubr.f32.gmra.mrb[0].mxu0 %v4564
        %v4759 = vpop.f32.mrb[0].mxu0
        %v4760 = vadd.f32 %v4496, %v4759
        %v4761 = vpop.f32.mrb[0].mxu0
        %4762 = vmatprep.mubr.f32.mxu0 0.0
        %4763 = vmatmul.mubr.f32.gmra.mrb[0].mxu0 %v4567
        %v4764 = vpop.f32.mrb[0].mxu0
        %v4765 = vadd.f32 %v4497, %v4764
        %v4766 = vpop.f32.mrb[0].mxu0
        %4767 = vmatprep.mubr.f32.mxu0 0.0
        %4768 = vmatmul.mubr.f32.gmra.mrb[0].mxu0 %v4570
        %v4769 = vpop.f32.mrb[0].mxu0
        %v4770 = vadd.f32 %v4498, %v4769
        %v4771 = vpop.f32.mrb[0].mxu0
        %4772 = vmatprep.mubr.f32.mxu0 0.0
        %4773 = vmatmul.mubr.f32.gmra.mrb[0].mxu0 %v4573
        %v4774 = vpop.f32.mrb[0].mxu0
        %v4775 = vadd.f32 %v4499, %v4774
        %v4776 = vpop.f32.mrb[0].mxu0
        %4777 = vmatprep.mubr.f32.mxu0 0.0
        %4778 = vmatmul.mubr.f32.gmra.mrb[0].mxu0 %v4576
        %v4779 = vpop.f32.mrb[0].mxu0
        %v4780 = vadd.f32 %v4500, %v4779
        %v4781 = vpop.f32.mrb[0].mxu0
        %4782 = vmatprep.mubr.f32.mxu0 0.0
        %4783 = vmatmul.mubr.f32.gmra.mrb[0].mxu0 %v4579
        %v4784 = vpop.f32.mrb[0].mxu0
        %v4785 = vadd.f32 %v4501, %v4784
        %v4786 = vpop.f32.mrb[0].mxu0
        %4787 = vmatprep.mubr.f32.mxu0 0.0
        %4788 = vmatmul.mubr.f32.gmra.mrb[0].mxu0 %v4582
        %v4789 = vpop.f32.mrb[0].mxu0
        %v4790 = vadd.f32 %v4502, %v4789
        %v4791 = vpop.f32.mrb[0].mxu0
        %4792 = vmatprep.mubr.f32.mxu0 0.0
        %4793 = vmatmul.mubr.f32.gmra.mrb[0].mxu0 %v4585
        %v4794 = vpop.f32.mrb[0].mxu0
        %v4795 = vadd.f32 %v4503, %v4794
        %v4796 = vpop.f32.mrb[0].mxu0
        %4797 = vmatprep.mubr.f32.mxu0 0.0
        %4798 = vmatmul.mubr.f32.gmra.mrb[0].mxu0 %v4588
        %v4799 = vpop.f32.mrb[0].mxu0
        %v4800 = vadd.f32 %v4504, %v4799
        %v4801 = vpop.f32.mrb[0].mxu0
        %4802 = vmatprep.mubr.f32.mxu0 0.0
        %4803 = vmatmul.mubr.f32.gmra.mrb[0].mxu0 %v4591
        %v4804 = vpop.f32.mrb[0].mxu0
        %v4805 = vadd.f32 %v4505, %v4804
        %v4806 = vpop.f32.mrb[0].mxu0
        %4807 = vmatprep.mubr.f32.mxu0 0.0
        %4808 = vmatmul.mubr.f32.gmra.mrb[0].mxu0 %v4594
        %v4809 = vpop.f32.mrb[0].mxu0
        %v4810 = vadd.f32 %v4506, %v4809
        %v4811 = vpop.f32.mrb[0].mxu0
        %4812 = vmatprep.mubr.f32.mxu0 0.0
        %4813 = vmatmul.mubr.f32.gmra.mrb[0].mxu0 %v4597
        %v4814 = vpop.f32.mrb[0].mxu0
        %v4815 = vadd.f32 %v4507, %v4814
        %v4816 = vpop.f32.mrb[0].mxu0
        %4817 = vmatprep.mubr.f32.mxu0 0.0
        %4818 = vmatmul.mubr.f32.gmra.mrb[0].mxu0 %v4600
        %v4819 = vpop.f32.mrb[0].mxu0
        %v4820 = vadd.f32 %v4508, %v4819
        %v4821 = vpop.f32.mrb[0].mxu0
        %4822 = vmatprep.mubr.f32.mxu0 0.0
        %4823 = vmatmul.mubr.f32.gmra.mrb[0].mxu0 %v4603
        %v4824 = vpop.f32.mrb[0].mxu0
        %v4825 = vadd.f32 %v4509, %v4824
        %v4826 = vpop.f32.mrb[0].mxu0
        %4827 = vmatprep.mubr.f32.mxu0 0.0
        %4828 = vmatmul.mubr.f32.gmra.mrb[0].mxu0 %v4606
        %v4829 = vpop.f32.mrb[0].mxu0
        %v4830 = vadd.f32 %v4510, %v4829
        %v4831 = vpop.f32.mrb[0].mxu0
        %4832 = vdwg.mxu0
        %v4834 = vlaneseq
        %v4835 = vshrl.u32 %v4834, 7
        %v4836 = vsub.s32 0, %v4835
        %v4837 = vrot.slane %v804, %v4836
        %v4839 = vadd.f32 %v4675, %v4837
        %v4840 = vadd.f32 %v4680, %v4837
        %v4841 = vadd.f32 %v4685, %v4837
        %v4842 = vadd.f32 %v4690, %v4837
        %v4843 = vadd.f32 %v4695, %v4837
        %v4844 = vadd.f32 %v4700, %v4837
        %v4845 = vadd.f32 %v4705, %v4837
        %v4846 = vadd.f32 %v4710, %v4837
        %v4847 = vadd.f32 %v4715, %v4837
        %v4848 = vadd.f32 %v4720, %v4837
        %v4849 = vadd.f32 %v4725, %v4837
        %v4850 = vadd.f32 %v4730, %v4837
        %v4851 = vadd.f32 %v4735, %v4837
        %v4852 = vadd.f32 %v4740, %v4837
        %v4853 = vadd.f32 %v4745, %v4837
        %v4854 = vadd.f32 %v4750, %v4837
        %v4855 = vadd.f32 %v4755, %v4837
        %v4856 = vadd.f32 %v4760, %v4837
        %v4857 = vadd.f32 %v4765, %v4837
        %v4858 = vadd.f32 %v4770, %v4837
        %v4859 = vadd.f32 %v4775, %v4837
        %v4860 = vadd.f32 %v4780, %v4837
        %v4861 = vadd.f32 %v4785, %v4837
        %v4862 = vadd.f32 %v4790, %v4837
        %v4863 = vadd.f32 %v4795, %v4837
        %v4864 = vadd.f32 %v4800, %v4837
        %v4865 = vadd.f32 %v4805, %v4837
        %v4866 = vadd.f32 %v4810, %v4837
        %v4867 = vadd.f32 %v4815, %v4837
        %v4868 = vadd.f32 %v4820, %v4837
        %v4869 = vadd.f32 %v4825, %v4837
        %v4870 = vadd.f32 %v4830, %v4837
        %vm4871 = vcmp.ge.f32.partialorder %v4839, 0.0
        %vm4872 = vcmp.ge.f32.partialorder %v4840, 0.0
        %vm4873 = vcmp.ge.f32.partialorder %v4841, 0.0
        %vm4874 = vcmp.ge.f32.partialorder %v4842, 0.0
        %vm4875 = vcmp.ge.f32.partialorder %v4843, 0.0
        %vm4876 = vcmp.ge.f32.partialorder %v4844, 0.0
        %vm4877 = vcmp.ge.f32.partialorder %v4845, 0.0
        %vm4878 = vcmp.ge.f32.partialorder %v4846, 0.0
        %vm4879 = vcmp.ge.f32.partialorder %v4847, 0.0
        %vm4880 = vcmp.ge.f32.partialorder %v4848, 0.0
        %vm4881 = vcmp.ge.f32.partialorder %v4849, 0.0
        %vm4882 = vcmp.ge.f32.partialorder %v4850, 0.0
        %vm4883 = vcmp.ge.f32.partialorder %v4851, 0.0
        %vm4884 = vcmp.ge.f32.partialorder %v4852, 0.0
        %vm4885 = vcmp.ge.f32.partialorder %v4853, 0.0
        %vm4886 = vcmp.ge.f32.partialorder %v4854, 0.0
        %vm4887 = vcmp.ge.f32.partialorder %v4855, 0.0
        %vm4888 = vcmp.ge.f32.partialorder %v4856, 0.0
        %vm4889 = vcmp.ge.f32.partialorder %v4857, 0.0
        %vm4890 = vcmp.ge.f32.partialorder %v4858, 0.0
        %vm4891 = vcmp.ge.f32.partialorder %v4859, 0.0
        %vm4892 = vcmp.ge.f32.partialorder %v4860, 0.0
        %vm4893 = vcmp.ge.f32.partialorder %v4861, 0.0
        %vm4894 = vcmp.ge.f32.partialorder %v4862, 0.0
        %vm4895 = vcmp.ge.f32.partialorder %v4863, 0.0
        %vm4896 = vcmp.ge.f32.partialorder %v4864, 0.0
        %vm4897 = vcmp.ge.f32.partialorder %v4865, 0.0
        %vm4898 = vcmp.ge.f32.partialorder %v4866, 0.0
        %vm4899 = vcmp.ge.f32.partialorder %v4867, 0.0
        %vm4900 = vcmp.ge.f32.partialorder %v4868, 0.0
        %vm4901 = vcmp.ge.f32.partialorder %v4869, 0.0
        %vm4902 = vcmp.ge.f32.partialorder %v4870, 0.0
        %v4903 = vmul.f32 %v4839, 0.2
        %v4904 = vmul.f32 %v4840, 0.2
        %v4905 = vmul.f32 %v4841, 0.2
        %v4906 = vmul.f32 %v4842, 0.2
        %v4907 = vmul.f32 %v4843, 0.2
        %v4908 = vmul.f32 %v4844, 0.2
        %v4909 = vmul.f32 %v4845, 0.2
        %v4910 = vmul.f32 %v4846, 0.2
        %v4911 = vmul.f32 %v4847, 0.2
        %v4912 = vmul.f32 %v4848, 0.2
        %v4913 = vmul.f32 %v4849, 0.2
        %v4914 = vmul.f32 %v4850, 0.2
        %v4915 = vmul.f32 %v4851, 0.2
        %v4916 = vmul.f32 %v4852, 0.2
        %v4917 = vmul.f32 %v4853, 0.2
        %v4918 = vmul.f32 %v4854, 0.2
        %v4919 = vmul.f32 %v4855, 0.2
        %v4920 = vmul.f32 %v4856, 0.2
        %v4921 = vmul.f32 %v4857, 0.2
        %v4922 = vmul.f32 %v4858, 0.2
        %v4923 = vmul.f32 %v4859, 0.2
        %v4924 = vmul.f32 %v4860, 0.2
        %v4925 = vmul.f32 %v4861, 0.2
        %v4926 = vmul.f32 %v4862, 0.2
        %v4927 = vmul.f32 %v4863, 0.2
        %v4928 = vmul.f32 %v4864, 0.2
        %v4929 = vmul.f32 %v4865, 0.2
        %v4930 = vmul.f32 %v4866, 0.2
        %v4931 = vmul.f32 %v4867, 0.2
        %v4932 = vmul.f32 %v4868, 0.2
        %v4933 = vmul.f32 %v4869, 0.2
        %v4934 = vmul.f32 %v4870, 0.2
        %v4935 = vsel %vm4871, %v4839, %v4903
        %v4936 = vsel %vm4872, %v4840, %v4904
        %v4937 = vsel %vm4873, %v4841, %v4905
        %v4938 = vsel %vm4874, %v4842, %v4906
        %v4939 = vsel %vm4875, %v4843, %v4907
        %v4940 = vsel %vm4876, %v4844, %v4908
        %v4941 = vsel %vm4877, %v4845, %v4909
        %v4942 = vsel %vm4878, %v4846, %v4910
        %v4943 = vsel %vm4879, %v4847, %v4911
        %v4944 = vsel %vm4880, %v4848, %v4912
        %v4945 = vsel %vm4881, %v4849, %v4913
        %v4946 = vsel %vm4882, %v4850, %v4914
        %v4947 = vsel %vm4883, %v4851, %v4915
        %v4948 = vsel %vm4884, %v4852, %v4916
        %v4949 = vsel %vm4885, %v4853, %v4917
        %v4950 = vsel %vm4886, %v4854, %v4918
        %v4951 = vsel %vm4887, %v4855, %v4919
        %v4952 = vsel %vm4888, %v4856, %v4920
        %v4953 = vsel %vm4889, %v4857, %v4921
        %v4954 = vsel %vm4890, %v4858, %v4922
        %v4955 = vsel %vm4891, %v4859, %v4923
        %v4956 = vsel %vm4892, %v4860, %v4924
        %v4957 = vsel %vm4893, %v4861, %v4925
        %v4958 = vsel %vm4894, %v4862, %v4926
        %v4959 = vsel %vm4895, %v4863, %v4927
        %v4960 = vsel %vm4896, %v4864, %v4928
        %v4961 = vsel %vm4897, %v4865, %v4929
        %v4962 = vsel %vm4898, %v4866, %v4930
        %v4963 = vsel %vm4899, %v4867, %v4931
        %v4964 = vsel %vm4900, %v4868, %v4932
        %v4965 = vsel %vm4901, %v4869, %v4933
        %v4966 = vsel %vm4902, %v4870, %v4934
        %4967 = vst.msk [vmem:[%s678] sm:$0xff] %vm2034, %v4935
        %4968 = vst.msk [vmem:[%s678 + $0x8] sm:$0xff] %vm2034, %v4936
        %4969 = vst.msk [vmem:[%s678 + $0x10] sm:$0xff] %vm2034, %v4937
        %4970 = vst.msk [vmem:[%s678 + $0x18] sm:$0xff] %vm2034, %v4938
        %4971 = vst.msk [vmem:[%s678 + $0x20] sm:$0xff] %vm2034, %v4939
        %4972 = vst.msk [vmem:[%s678 + $0x28] sm:$0xff] %vm2034, %v4940
        %4973 = vst.msk [vmem:[%s678 + $0x30] sm:$0xff] %vm2034, %v4941
        %4974 = vst.msk [vmem:[%s678 + $0x38] sm:$0xff] %vm2034, %v4942
        %4975 = vst.msk [vmem:[%s678 + $0x40] sm:$0xff] %vm2034, %v4943
        %4976 = vst.msk [vmem:[%s678 + $0x48] sm:$0xff] %vm2034, %v4944
        %4977 = vst.msk [vmem:[%s678 + $0x50] sm:$0xff] %vm2034, %v4945
        %4978 = vst.msk [vmem:[%s678 + $0x58] sm:$0xff] %vm2034, %v4946
        %4979 = vst.msk [vmem:[%s678 + $0x60] sm:$0xff] %vm2034, %v4947
        %4980 = vst.msk [vmem:[%s678 + $0x68] sm:$0xff] %vm2034, %v4948
        %4981 = vst.msk [vmem:[%s678 + $0x70] sm:$0xff] %vm2034, %v4949
        %4982 = vst.msk [vmem:[%s678 + $0x78] sm:$0xff] %vm2034, %v4950
        %4983 = vst.msk [vmem:[%s678 + $0x80] sm:$0xff] %vm2034, %v4951
        %4984 = vst.msk [vmem:[%s678 + $0x88] sm:$0xff] %vm2034, %v4952
        %4985 = vst.msk [vmem:[%s678 + $0x90] sm:$0xff] %vm2034, %v4953
        %4986 = vst.msk [vmem:[%s678 + $0x98] sm:$0xff] %vm2034, %v4954
        %4987 = vst.msk [vmem:[%s678 + $0xa0] sm:$0xff] %vm2034, %v4955
        %4988 = vst.msk [vmem:[%s678 + $0xa8] sm:$0xff] %vm2034, %v4956
        %4989 = vst.msk [vmem:[%s678 + $0xb0] sm:$0xff] %vm2034, %v4957
        %4990 = vst.msk [vmem:[%s678 + $0xb8] sm:$0xff] %vm2034, %v4958
        %4991 = vst.msk [vmem:[%s678 + $0xc0] sm:$0xff] %vm2034, %v4959
        %4992 = vst.msk [vmem:[%s678 + $0xc8] sm:$0xff] %vm2034, %v4960
        %4993 = vst.msk [vmem:[%s678 + $0xd0] sm:$0xff] %vm2034, %v4961
        %4994 = vst.msk [vmem:[%s678 + $0xd8] sm:$0xff] %vm2034, %v4962
        %4995 = vst.msk [vmem:[%s678 + $0xe0] sm:$0xff] %vm2034, %v4963
        %4996 = vst.msk [vmem:[%s678 + $0xe8] sm:$0xff] %vm2034, %v4964
        %4997 = vst.msk [vmem:[%s678 + $0xf0] sm:$0xff] %vm2034, %v4965
        %4998 = vst.msk [vmem:[%s678 + $0xf8] sm:$0xff] %vm2034, %v4966
        %4999 = vrot.lane.b32.xlu0 %v943, 116
        %v5000 = vpop.permute.xlu0 %4999
        %v5002 = vmul.f32 %v4935, %v5000
        %v5003 = vmul.f32 %v4936, %v5000
        %v5004 = vmul.f32 %v4937, %v5000
        %v5005 = vmul.f32 %v4938, %v5000
        %v5006 = vmul.f32 %v4939, %v5000
        %v5007 = vmul.f32 %v4940, %v5000
        %v5008 = vmul.f32 %v4941, %v5000
        %v5009 = vmul.f32 %v4942, %v5000
        %v5010 = vmul.f32 %v4943, %v5000
        %v5011 = vmul.f32 %v4944, %v5000
        %v5012 = vmul.f32 %v4945, %v5000
        %v5013 = vmul.f32 %v4946, %v5000
        %v5014 = vmul.f32 %v4947, %v5000
        %v5015 = vmul.f32 %v4948, %v5000
        %v5016 = vmul.f32 %v4949, %v5000
        %v5017 = vmul.f32 %v4950, %v5000
        %v5018 = vmul.f32 %v4951, %v5000
        %v5019 = vmul.f32 %v4952, %v5000
        %v5020 = vmul.f32 %v4953, %v5000
        %v5021 = vmul.f32 %v4954, %v5000
        %v5022 = vmul.f32 %v4955, %v5000
        %v5023 = vmul.f32 %v4956, %v5000
        %v5024 = vmul.f32 %v4957, %v5000
        %v5025 = vmul.f32 %v4958, %v5000
        %v5026 = vmul.f32 %v4959, %v5000
        %v5027 = vmul.f32 %v4960, %v5000
        %v5028 = vmul.f32 %v4961, %v5000
        %v5029 = vmul.f32 %v4962, %v5000
        %v5030 = vmul.f32 %v4963, %v5000
        %v5031 = vmul.f32 %v4964, %v5000
        %v5032 = vmul.f32 %v4965, %v5000
        %v5033 = vmul.f32 %v4966, %v5000
        %v5034 = vld [vmem:[#allocation17] sm:$0xff]
        %v5035 = vld [vmem:[%s624] sm:$0xff]
        %v5036 = vld [vmem:[%s624 + $0x8] sm:$0xff]
        %v5037 = vld [vmem:[%s624 + $0x10] sm:$0xff]
        %v5038 = vld [vmem:[%s624 + $0x18] sm:$0xff]
        %v5039 = vld [vmem:[%s624 + $0x20] sm:$0xff]
        %v5040 = vld [vmem:[%s624 + $0x28] sm:$0xff]
        %v5041 = vld [vmem:[%s624 + $0x30] sm:$0xff]
        %v5042 = vld [vmem:[%s624 + $0x38] sm:$0xff]
        %v5043 = vld [vmem:[%s624 + $0x40] sm:$0xff]
        %v5044 = vld [vmem:[%s624 + $0x48] sm:$0xff]
        %v5045 = vld [vmem:[%s624 + $0x50] sm:$0xff]
        %v5046 = vld [vmem:[%s624 + $0x58] sm:$0xff]
        %v5047 = vld [vmem:[%s624 + $0x60] sm:$0xff]
        %v5048 = vld [vmem:[%s624 + $0x68] sm:$0xff]
        %v5049 = vld [vmem:[%s624 + $0x70] sm:$0xff]
        %v5050 = vld [vmem:[%s624 + $0x78] sm:$0xff]
        %v5051 = vld [vmem:[%s624 + $0x80] sm:$0xff]
        %v5052 = vld [vmem:[%s624 + $0x88] sm:$0xff]
        %v5053 = vld [vmem:[%s624 + $0x90] sm:$0xff]
        %v5054 = vld [vmem:[%s624 + $0x98] sm:$0xff]
        %v5055 = vld [vmem:[%s624 + $0xa0] sm:$0xff]
        %v5056 = vld [vmem:[%s624 + $0xa8] sm:$0xff]
        %v5057 = vld [vmem:[%s624 + $0xb0] sm:$0xff]
        %v5058 = vld [vmem:[%s624 + $0xb8] sm:$0xff]
        %v5059 = vld [vmem:[%s624 + $0xc0] sm:$0xff]
        %v5060 = vld [vmem:[%s624 + $0xc8] sm:$0xff]
        %v5061 = vld [vmem:[%s624 + $0xd0] sm:$0xff]
        %v5062 = vld [vmem:[%s624 + $0xd8] sm:$0xff]
        %v5063 = vld [vmem:[%s624 + $0xe0] sm:$0xff]
        %v5064 = vld [vmem:[%s624 + $0xe8] sm:$0xff]
        %v5065 = vld [vmem:[%s624 + $0xf0] sm:$0xff]
        %v5066 = vld [vmem:[%s624 + $0xf8] sm:$0xff]
        %v5068 = vsel %vm2034, %v5002, 0
        %v5071 = vsel %vm2034, %v5003, 0
        %v5074 = vsel %vm2034, %v5004, 0
        %v5077 = vsel %vm2034, %v5005, 0
        %v5080 = vsel %vm2034, %v5006, 0
        %v5083 = vsel %vm2034, %v5007, 0
        %v5086 = vsel %vm2034, %v5008, 0
        %v5089 = vsel %vm2034, %v5009, 0
        %v5092 = vsel %vm2034, %v5010, 0
        %v5095 = vsel %vm2034, %v5011, 0
        %v5098 = vsel %vm2034, %v5012, 0
        %v5101 = vsel %vm2034, %v5013, 0
        %v5104 = vsel %vm2034, %v5014, 0
        %v5107 = vsel %vm2034, %v5015, 0
        %v5110 = vsel %vm2034, %v5016, 0
        %v5113 = vsel %vm2034, %v5017, 0
        %v5116 = vsel %vm2034, %v5018, 0
        %v5119 = vsel %vm2034, %v5019, 0
        %v5122 = vsel %vm2034, %v5020, 0
        %v5125 = vsel %vm2034, %v5021, 0
        %v5128 = vsel %vm2034, %v5022, 0
        %v5131 = vsel %vm2034, %v5023, 0
        %v5134 = vsel %vm2034, %v5024, 0
        %v5137 = vsel %vm2034, %v5025, 0
        %v5140 = vsel %vm2034, %v5026, 0
        %v5143 = vsel %vm2034, %v5027, 0
        %v5146 = vsel %vm2034, %v5028, 0
        %v5149 = vsel %vm2034, %v5029, 0
        %v5152 = vsel %vm2034, %v5030, 0
        %v5155 = vsel %vm2034, %v5031, 0
        %v5158 = vsel %vm2034, %v5032, 0
        %v5161 = vsel %vm2034, %v5033, 0
        %5163 = vmatprep.subr.mxu0 0.0
        %5164 = vmatpush1.msra.mxu0 %v5034
        %5165 = vmatprep.subr.mxu0 0.0
        %5166 = vmatpush1.msra.mxu0 0.0
        %5167 = vmatprep.subr.mxu0 0.0
        %5168 = vmatpush1.msra.mxu0 0.0
        %5169 = vmatprep.subr.mxu0 0.0
        %5170 = vmatpush1.msra.mxu0 0.0
        %5171 = vmatprep.subr.mxu0 0.0
        %5172 = vmatpush1.msra.mxu0 0.0
        %5173 = vmatprep.subr.mxu0 0.0
        %5174 = vmatpush1.msra.mxu0 0.0
        %5175 = vmatprep.subr.mxu0 0.0
        %5176 = vmatpush1.msra.mxu0 0.0
        %5177 = vmatprep.subr.mxu0 0.0
        %5178 = vmatpush1.msra.mxu0 0.0
        %5179 = vmatprep.subr.mxu0 0.0
        %5180 = vmatpush1.msra.mxu0 0.0
        %5181 = vmatprep.subr.mxu0 0.0
        %5182 = vmatpush1.msra.mxu0 0.0
        %5183 = vmatprep.subr.mxu0 0.0
        %5184 = vmatpush1.msra.mxu0 0.0
        %5185 = vmatprep.subr.mxu0 0.0
        %5186 = vmatpush1.msra.mxu0 0.0
        %5187 = vmatprep.subr.mxu0 0.0
        %5188 = vmatpush1.msra.mxu0 0.0
        %5189 = vmatprep.subr.mxu0 0.0
        %5190 = vmatpush1.msra.mxu0 0.0
        %5191 = vmatprep.subr.mxu0 0.0
        %5192 = vmatpush1.msra.mxu0 0.0
        %5193 = vmatprep.subr.mxu0 0.0
        %5194 = vmatpush1.msra.mxu0 0.0
        %5195 = vmatprep.subr.mxu0 0.0
        %5196 = vmatpush1.msra.mxu0 0.0
        %5197 = vmatprep.subr.mxu0 0.0
        %5198 = vmatpush1.msra.mxu0 0.0
        %5199 = vmatprep.subr.mxu0 0.0
        %5200 = vmatpush1.msra.mxu0 0.0
        %5201 = vmatprep.subr.mxu0 0.0
        %5202 = vmatpush1.msra.mxu0 0.0
        %5203 = vmatprep.subr.mxu0 0.0
        %5204 = vmatpush1.msra.mxu0 0.0
        %5205 = vmatprep.subr.mxu0 0.0
        %5206 = vmatpush1.msra.mxu0 0.0
        %5207 = vmatprep.subr.mxu0 0.0
        %5208 = vmatpush1.msra.mxu0 0.0
        %5209 = vmatprep.subr.mxu0 0.0
        %5210 = vmatpush1.msra.mxu0 0.0
        %5211 = vmatprep.subr.mxu0 0.0
        %5212 = vmatpush1.msra.mxu0 0.0
        %5213 = vmatprep.subr.mxu0 0.0
        %5214 = vmatpush1.msra.mxu0 0.0
        %5215 = vmatprep.subr.mxu0 0.0
        %5216 = vmatpush1.msra.mxu0 0.0
        %5217 = vmatprep.subr.mxu0 0.0
        %5218 = vmatpush1.msra.mxu0 0.0
        %5219 = vmatprep.subr.mxu0 0.0
        %5220 = vmatpush1.msra.mxu0 0.0
        %5221 = vmatprep.subr.mxu0 0.0
        %5222 = vmatpush1.msra.mxu0 0.0
        %5223 = vmatprep.subr.mxu0 0.0
        %5224 = vmatpush1.msra.mxu0 0.0
        %5225 = vmatprep.subr.mxu0 0.0
        %5226 = vmatpush1.msra.mxu0 0.0
        %5227 = vmatprep.mubr.f32.mxu0 0.0
        %5228 = vmatmul.mubr.f32.gmra.mrb[0].mxu0 %v5068
        %v5229 = vpop.f32.mrb[0].mxu0
        %v5230 = vadd.f32 %v5035, %v5229
        %v5231 = vpop.f32.mrb[0].mxu0
        %5232 = vmatprep.mubr.f32.mxu0 0.0
        %5233 = vmatmul.mubr.f32.gmra.mrb[0].mxu0 %v5071
        %v5234 = vpop.f32.mrb[0].mxu0
        %v5235 = vadd.f32 %v5036, %v5234
        %v5236 = vpop.f32.mrb[0].mxu0
        %5237 = vmatprep.mubr.f32.mxu0 0.0
        %5238 = vmatmul.mubr.f32.gmra.mrb[0].mxu0 %v5074
        %v5239 = vpop.f32.mrb[0].mxu0
        %v5240 = vadd.f32 %v5037, %v5239
        %v5241 = vpop.f32.mrb[0].mxu0
        %5242 = vmatprep.mubr.f32.mxu0 0.0
        %5243 = vmatmul.mubr.f32.gmra.mrb[0].mxu0 %v5077
        %v5244 = vpop.f32.mrb[0].mxu0
        %v5245 = vadd.f32 %v5038, %v5244
        %v5246 = vpop.f32.mrb[0].mxu0
        %5247 = vmatprep.mubr.f32.mxu0 0.0
        %5248 = vmatmul.mubr.f32.gmra.mrb[0].mxu0 %v5080
        %v5249 = vpop.f32.mrb[0].mxu0
        %v5250 = vadd.f32 %v5039, %v5249
        %v5251 = vpop.f32.mrb[0].mxu0
        %5252 = vmatprep.mubr.f32.mxu0 0.0
        %5253 = vmatmul.mubr.f32.gmra.mrb[0].mxu0 %v5083
        %v5254 = vpop.f32.mrb[0].mxu0
        %v5255 = vadd.f32 %v5040, %v5254
        %v5256 = vpop.f32.mrb[0].mxu0
        %5257 = vmatprep.mubr.f32.mxu0 0.0
        %5258 = vmatmul.mubr.f32.gmra.mrb[0].mxu0 %v5086
        %v5259 = vpop.f32.mrb[0].mxu0
        %v5260 = vadd.f32 %v5041, %v5259
        %v5261 = vpop.f32.mrb[0].mxu0
        %5262 = vmatprep.mubr.f32.mxu0 0.0
        %5263 = vmatmul.mubr.f32.gmra.mrb[0].mxu0 %v5089
        %v5264 = vpop.f32.mrb[0].mxu0
        %v5265 = vadd.f32 %v5042, %v5264
        %v5266 = vpop.f32.mrb[0].mxu0
        %5267 = vmatprep.mubr.f32.mxu0 0.0
        %5268 = vmatmul.mubr.f32.gmra.mrb[0].mxu0 %v5092
        %v5269 = vpop.f32.mrb[0].mxu0
        %v5270 = vadd.f32 %v5043, %v5269
        %v5271 = vpop.f32.mrb[0].mxu0
        %5272 = vmatprep.mubr.f32.mxu0 0.0
        %5273 = vmatmul.mubr.f32.gmra.mrb[0].mxu0 %v5095
        %v5274 = vpop.f32.mrb[0].mxu0
        %v5275 = vadd.f32 %v5044, %v5274
        %v5276 = vpop.f32.mrb[0].mxu0
        %5277 = vmatprep.mubr.f32.mxu0 0.0
        %5278 = vmatmul.mubr.f32.gmra.mrb[0].mxu0 %v5098
        %v5279 = vpop.f32.mrb[0].mxu0
        %v5280 = vadd.f32 %v5045, %v5279
        %v5281 = vpop.f32.mrb[0].mxu0
        %5282 = vmatprep.mubr.f32.mxu0 0.0
        %5283 = vmatmul.mubr.f32.gmra.mrb[0].mxu0 %v5101
        %v5284 = vpop.f32.mrb[0].mxu0
        %v5285 = vadd.f32 %v5046, %v5284
        %v5286 = vpop.f32.mrb[0].mxu0
        %5287 = vmatprep.mubr.f32.mxu0 0.0
        %5288 = vmatmul.mubr.f32.gmra.mrb[0].mxu0 %v5104
        %v5289 = vpop.f32.mrb[0].mxu0
        %v5290 = vadd.f32 %v5047, %v5289
        %v5291 = vpop.f32.mrb[0].mxu0
        %5292 = vmatprep.mubr.f32.mxu0 0.0
        %5293 = vmatmul.mubr.f32.gmra.mrb[0].mxu0 %v5107
        %v5294 = vpop.f32.mrb[0].mxu0
        %v5295 = vadd.f32 %v5048, %v5294
        %v5296 = vpop.f32.mrb[0].mxu0
        %5297 = vmatprep.mubr.f32.mxu0 0.0
        %5298 = vmatmul.mubr.f32.gmra.mrb[0].mxu0 %v5110
        %v5299 = vpop.f32.mrb[0].mxu0
        %v5300 = vadd.f32 %v5049, %v5299
        %v5301 = vpop.f32.mrb[0].mxu0
        %5302 = vmatprep.mubr.f32.mxu0 0.0
        %5303 = vmatmul.mubr.f32.gmra.mrb[0].mxu0 %v5113
        %v5304 = vpop.f32.mrb[0].mxu0
        %v5305 = vadd.f32 %v5050, %v5304
        %v5306 = vpop.f32.mrb[0].mxu0
        %5307 = vmatprep.mubr.f32.mxu0 0.0
        %5308 = vmatmul.mubr.f32.gmra.mrb[0].mxu0 %v5116
        %v5309 = vpop.f32.mrb[0].mxu0
        %v5310 = vadd.f32 %v5051, %v5309
        %v5311 = vpop.f32.mrb[0].mxu0
        %5312 = vmatprep.mubr.f32.mxu0 0.0
        %5313 = vmatmul.mubr.f32.gmra.mrb[0].mxu0 %v5119
        %v5314 = vpop.f32.mrb[0].mxu0
        %v5315 = vadd.f32 %v5052, %v5314
        %v5316 = vpop.f32.mrb[0].mxu0
        %5317 = vmatprep.mubr.f32.mxu0 0.0
        %5318 = vmatmul.mubr.f32.gmra.mrb[0].mxu0 %v5122
        %v5319 = vpop.f32.mrb[0].mxu0
        %v5320 = vadd.f32 %v5053, %v5319
        %v5321 = vpop.f32.mrb[0].mxu0
        %5322 = vmatprep.mubr.f32.mxu0 0.0
        %5323 = vmatmul.mubr.f32.gmra.mrb[0].mxu0 %v5125
        %v5324 = vpop.f32.mrb[0].mxu0
        %v5325 = vadd.f32 %v5054, %v5324
        %v5326 = vpop.f32.mrb[0].mxu0
        %5327 = vmatprep.mubr.f32.mxu0 0.0
        %5328 = vmatmul.mubr.f32.gmra.mrb[0].mxu0 %v5128
        %v5329 = vpop.f32.mrb[0].mxu0
        %v5330 = vadd.f32 %v5055, %v5329
        %v5331 = vpop.f32.mrb[0].mxu0
        %5332 = vmatprep.mubr.f32.mxu0 0.0
        %5333 = vmatmul.mubr.f32.gmra.mrb[0].mxu0 %v5131
        %v5334 = vpop.f32.mrb[0].mxu0
        %v5335 = vadd.f32 %v5056, %v5334
        %v5336 = vpop.f32.mrb[0].mxu0
        %5337 = vmatprep.mubr.f32.mxu0 0.0
        %5338 = vmatmul.mubr.f32.gmra.mrb[0].mxu0 %v5134
        %v5339 = vpop.f32.mrb[0].mxu0
        %v5340 = vadd.f32 %v5057, %v5339
        %v5341 = vpop.f32.mrb[0].mxu0
        %5342 = vmatprep.mubr.f32.mxu0 0.0
        %5343 = vmatmul.mubr.f32.gmra.mrb[0].mxu0 %v5137
        %v5344 = vpop.f32.mrb[0].mxu0
        %v5345 = vadd.f32 %v5058, %v5344
        %v5346 = vpop.f32.mrb[0].mxu0
        %5347 = vmatprep.mubr.f32.mxu0 0.0
        %5348 = vmatmul.mubr.f32.gmra.mrb[0].mxu0 %v5140
        %v5349 = vpop.f32.mrb[0].mxu0
        %v5350 = vadd.f32 %v5059, %v5349
        %v5351 = vpop.f32.mrb[0].mxu0
        %5352 = vmatprep.mubr.f32.mxu0 0.0
        %5353 = vmatmul.mubr.f32.gmra.mrb[0].mxu0 %v5143
        %v5354 = vpop.f32.mrb[0].mxu0
        %v5355 = vadd.f32 %v5060, %v5354
        %v5356 = vpop.f32.mrb[0].mxu0
        %5357 = vmatprep.mubr.f32.mxu0 0.0
        %5358 = vmatmul.mubr.f32.gmra.mrb[0].mxu0 %v5146
        %v5359 = vpop.f32.mrb[0].mxu0
        %v5360 = vadd.f32 %v5061, %v5359
        %v5361 = vpop.f32.mrb[0].mxu0
        %5362 = vmatprep.mubr.f32.mxu0 0.0
        %5363 = vmatmul.mubr.f32.gmra.mrb[0].mxu0 %v5149
        %v5364 = vpop.f32.mrb[0].mxu0
        %v5365 = vadd.f32 %v5062, %v5364
        %v5366 = vpop.f32.mrb[0].mxu0
        %5367 = vmatprep.mubr.f32.mxu0 0.0
        %5368 = vmatmul.mubr.f32.gmra.mrb[0].mxu0 %v5152
        %v5369 = vpop.f32.mrb[0].mxu0
        %v5370 = vadd.f32 %v5063, %v5369
        %v5371 = vpop.f32.mrb[0].mxu0
        %5372 = vmatprep.mubr.f32.mxu0 0.0
        %5373 = vmatmul.mubr.f32.gmra.mrb[0].mxu0 %v5155
        %v5374 = vpop.f32.mrb[0].mxu0
        %v5375 = vadd.f32 %v5064, %v5374
        %v5376 = vpop.f32.mrb[0].mxu0
        %5377 = vmatprep.mubr.f32.mxu0 0.0
        %5378 = vmatmul.mubr.f32.gmra.mrb[0].mxu0 %v5158
        %v5379 = vpop.f32.mrb[0].mxu0
        %v5380 = vadd.f32 %v5065, %v5379
        %v5381 = vpop.f32.mrb[0].mxu0
        %5382 = vmatprep.mubr.f32.mxu0 0.0
        %5383 = vmatmul.mubr.f32.gmra.mrb[0].mxu0 %v5161
        %v5384 = vpop.f32.mrb[0].mxu0
        %v5385 = vadd.f32 %v5066, %v5384
        %v5386 = vpop.f32.mrb[0].mxu0
        %5387 = vdwg.mxu0
        %vm5388 = vcmask 23552
        %5389 = vst.msk [vmem:[%s685] sm:$0xff] %vm5388, %v5230
        %5390 = vst.msk [vmem:[%s685 + $0x8] sm:$0xff] %vm5388, %v5235
        %5391 = vst.msk [vmem:[%s685 + $0x10] sm:$0xff] %vm5388, %v5240
        %5392 = vst.msk [vmem:[%s685 + $0x18] sm:$0xff] %vm5388, %v5245
        %5393 = vst.msk [vmem:[%s685 + $0x20] sm:$0xff] %vm5388, %v5250
        %5394 = vst.msk [vmem:[%s685 + $0x28] sm:$0xff] %vm5388, %v5255
        %5395 = vst.msk [vmem:[%s685 + $0x30] sm:$0xff] %vm5388, %v5260
        %5396 = vst.msk [vmem:[%s685 + $0x38] sm:$0xff] %vm5388, %v5265
        %5397 = vst.msk [vmem:[%s685 + $0x40] sm:$0xff] %vm5388, %v5270
        %5398 = vst.msk [vmem:[%s685 + $0x48] sm:$0xff] %vm5388, %v5275
        %5399 = vst.msk [vmem:[%s685 + $0x50] sm:$0xff] %vm5388, %v5280
        %5400 = vst.msk [vmem:[%s685 + $0x58] sm:$0xff] %vm5388, %v5285
        %5401 = vst.msk [vmem:[%s685 + $0x60] sm:$0xff] %vm5388, %v5290
        %5402 = vst.msk [vmem:[%s685 + $0x68] sm:$0xff] %vm5388, %v5295
        %5403 = vst.msk [vmem:[%s685 + $0x70] sm:$0xff] %vm5388, %v5300
        %5404 = vst.msk [vmem:[%s685 + $0x78] sm:$0xff] %vm5388, %v5305
        %5405 = vst.msk [vmem:[%s685 + $0x80] sm:$0xff] %vm5388, %v5310
        %5406 = vst.msk [vmem:[%s685 + $0x88] sm:$0xff] %vm5388, %v5315
        %5407 = vst.msk [vmem:[%s685 + $0x90] sm:$0xff] %vm5388, %v5320
        %5408 = vst.msk [vmem:[%s685 + $0x98] sm:$0xff] %vm5388, %v5325
        %5409 = vst.msk [vmem:[%s685 + $0xa0] sm:$0xff] %vm5388, %v5330
        %5410 = vst.msk [vmem:[%s685 + $0xa8] sm:$0xff] %vm5388, %v5335
        %5411 = vst.msk [vmem:[%s685 + $0xb0] sm:$0xff] %vm5388, %v5340
        %5412 = vst.msk [vmem:[%s685 + $0xb8] sm:$0xff] %vm5388, %v5345
        %5413 = vst.msk [vmem:[%s685 + $0xc0] sm:$0xff] %vm5388, %v5350
        %5414 = vst.msk [vmem:[%s685 + $0xc8] sm:$0xff] %vm5388, %v5355
        %5415 = vst.msk [vmem:[%s685 + $0xd0] sm:$0xff] %vm5388, %v5360
        %5416 = vst.msk [vmem:[%s685 + $0xd8] sm:$0xff] %vm5388, %v5365
        %5417 = vst.msk [vmem:[%s685 + $0xe0] sm:$0xff] %vm5388, %v5370
        %5418 = vst.msk [vmem:[%s685 + $0xe8] sm:$0xff] %vm5388, %v5375
        %5419 = vst.msk [vmem:[%s685 + $0xf0] sm:$0xff] %vm5388, %v5380
        %5420 = vst.msk [vmem:[%s685 + $0xf8] sm:$0xff] %vm5388, %v5385
        %s5421 = sand.u32 %s321, 1
        %s5422 = scalar_lea.sflag [#allocation5], %s5421
        %s5423 = sand.u32 %s321, 1
        %s5424 = smul.addr %s5423, 256
        %s5425 = scalar_lea.vmem [#allocation22], %s5424
        %s5426 = sand.u32 %s347, 1
        %s5427 = scalar_lea.sflag [#allocation24], %s5426
        %s5428 = sand.u32 %s347, 1
        %s5429 = smul.addr %s5428, 256
        %s5430 = scalar_lea.vmem [#allocation23], %s5429
        // Predicated region
        $region117: #{tpu_custom_call.1} parent=67 // pred_check
          %p5431 = pneg %p331
        $region118: #{tpu_custom_call.1} parent=67 // pred_check_branch
          %5433 = sbr.rel (%p5431) target = $region120
        $region119: #{tpu_custom_call.1} parent=67 // pred_region
          %s5435 = ssub.s32 4096, 4096
          %5436 = vsyncadd %s5422, %s5435
          %s5437 = smul.addr %s41, 32
          %s5438 = smul.addr %s5437, 128
          %s5439 = scalar_lea.hbm %s12, %s5438
          %s5440 = sshll.u32 %s5425, 4
          %s5441 = int_to_ptr.vmem [resolvable:$true] %s5440
          %5446 = dma.vmem_to_hbm [thread:$0]  %s5441, 4096, %s5439, %s5422, 128, 128, 8
        $region120: #{tpu_custom_call.1} parent=67 // pred_fallthru
          _
        // Predicated region
        $region121: #{tpu_custom_call.1} parent=67 // pred_check
          %p5447 = pneg %p357
        $region122: #{tpu_custom_call.1} parent=67 // pred_check_branch
          %5449 = sbr.rel (%p5447) target = $region124
        $region123: #{tpu_custom_call.1} parent=67 // pred_region
          %s5451 = ssub.s32 4096, 4096
          %5452 = vsyncadd %s5427, %s5451
          %s5453 = smul.addr %s41, 32
          %s5454 = smul.addr %s5453, 128
          %s5455 = scalar_lea.hbm %s13, %s5454
          %s5456 = sshll.u32 %s5430, 4
          %s5457 = int_to_ptr.vmem [resolvable:$true] %s5456
          %5462 = dma.vmem_to_hbm [thread:$0]  %s5457, 4096, %s5455, %s5427, 128, 128, 8
        $region124: #{tpu_custom_call.1} parent=67 // pred_fallthru
          _
      $region68: #{tpu_custom_call.1} parent=5 // pred_fallthru
        _
      %p5463 = scmp.le.s32.totalorder 2, %s36
      // Predicated region
      $region125: #{tpu_custom_call.1} parent=5 // pred_check
        %p5464 = pneg %p5463
      $region126: #{tpu_custom_call.1} parent=5 // pred_check_branch
        %5466 = sbr.rel (%p5464) target = $region128
      $region127: #{tpu_custom_call.1} parent=5 // pred_region
        %s5467 = ssub.s32 %s36, 2
        // Predicated region
        $region129: #{tpu_custom_call.1} parent=127 // pred_check
          %p5468 = pneg %p337
        $region130: #{tpu_custom_call.1} parent=127 // pred_check_branch
          %5470 = sbr.rel (%p5468) target = $region132
        $region131: #{tpu_custom_call.1} parent=127 // pred_region
          %s5471 = sand.u32 %s322, 1
          %s5472 = scalar_lea.sflag [#allocation5], %s5471
          %s5473 = sand.u32 %s322, 1
          %s5474 = smul.addr %s5473, 256
          %s5475 = scalar_lea.vmem [#allocation22], %s5474
          %5476 = dma.done %s5472, 4096
        $region132: #{tpu_custom_call.1} parent=127 // pred_fallthru
          _
        // Predicated region
        $region133: #{tpu_custom_call.1} parent=127 // pred_check
          %p5477 = pneg %p363
        $region134: #{tpu_custom_call.1} parent=127 // pred_check_branch
          %5479 = sbr.rel (%p5477) target = $region136
        $region135: #{tpu_custom_call.1} parent=127 // pred_region
          %s5480 = sand.u32 %s348, 1
          %s5481 = scalar_lea.sflag [#allocation24], %s5480
          %s5482 = sand.u32 %s348, 1
          %s5483 = smul.addr %s5482, 256
          %s5484 = scalar_lea.vmem [#allocation23], %s5483
          %5485 = dma.done %s5481, 4096
        $region136: #{tpu_custom_call.1} parent=127 // pred_fallthru
          _
      $region128: #{tpu_custom_call.1} parent=5 // pred_fallthru
        _
    $region6: #{tpu_custom_call.1} parent=1 // loop_footer
      %s40 = sadd.s32 1, %s36
    $region7: #{tpu_custom_call.1} parent=1 // loop_footer_branch
      %35 = sbr.rel target = $region3
    $region8: #{tpu_custom_call.1} parent=1 // loop_exit
      _
    %5486 = vsyncpa [#allocation4], 1
    %s5487 = scalar_lea.sflag [#allocation4], 1
    %5488 = vsyncpa %s5487, 1
    %5489 = vsyncpa [#allocation7], 1
    %5490 = vsyncpa [#allocation10], 1
    %s5491 = scalar_lea.sflag [#allocation10], 1
    %5492 = vsyncpa %s5491, 1
    %5493 = vsyncpa [#allocation13], 1
    %5494 = vsyncpa [#allocation16], 1
    %5495 = vsyncpa [#allocation19], 1
    %5496 = vsyncpa [#allocation5], 1
    %s5497 = scalar_lea.sflag [#allocation5], 1
    %5498 = vsyncpa %s5497, 1
    %5499 = vsyncpa [#allocation24], 1
    %s5500 = scalar_lea.sflag [#allocation24], 1
    %5501 = vsyncpa %s5500, 1

</llo_original>
